<compile_context>
chip_gen: v7x
topology: tpu7x:2x2x1
jax: 0.10.0
libtpu: 0.0.40
codegen_flags: <defaults>
</compile_context>

<pallas_src>
import functools

import jax
import jax.numpy as jnp
from jax.experimental import pallas as pl
from jax.experimental.pallas import tpu as pltpu

# ------------------------- small deterministic config -------------------------
B, T = 2, 3                 # batch, frames
H, W = 32, 32               # input image
CIN = 3                     # RGB
STRIDE = 4                  # backbone2d_stride
FH, FW = H // STRIDE, W // STRIDE
P = FH * FW                 # feature pixels per frame (64)
C = 8                       # 2D feature channels
VOXEL_DIM = (8, 8, 8)
NX, NY, NZ = VOXEL_DIM
V = NX * NY * NZ            # 512 voxels (lane-dense: 4 x 128)
VOXEL_SIZE = 0.25
ORIGIN = jnp.array([-1.0, -1.0, 0.5], dtype=jnp.float32)
PIXEL_MEAN = jnp.array([123.675, 116.28, 103.53], dtype=jnp.float32)
PIXEL_STD = jnp.array([58.395, 57.12, 57.375], dtype=jnp.float32)


# ------------------------------- fused kernel ----------------------------------
def atlas_fused_kernel(proj_ref, x_ref, params_ref, world_ref, vol_ref, cnt_ref,
                       *, height, width, n_frames, n_pix, batch, cin):
    """Fused (folded) normalizer+1x1-conv + backproject + frame accumulation + average.

    proj_ref:   (B*T*12,) f32 in SMEM — flattened, stride-scaled 3x4 projections
    x_ref:      (B, T, CIN, P)  raw sub-sampled RGB pixels (normalizer folded into params)
    params_ref: (C, CIN+1)      folded 1x1-conv weights (cols 0..CIN-1) and bias (col CIN)
    world_ref:  (4, V)          homogeneous world coords of all voxel centers
    vol_ref:    (B, C, V)       output: averaged feature volume (valid==0 -> 0)
    cnt_ref:    (B, 1, V)       output: per-voxel view count ("valid")
    """
    world = world_ref[...]                                                # (4, V)
    wx, wy, wz, wo = world[0:1, :], world[1:2, :], world[2:3, :], world[3:4, :]
    n_vox = world.shape[1]
    iota_p = jax.lax.broadcasted_iota(jnp.int32, (n_pix, n_vox), 0)       # (P, V), hoisted

    params = params_ref[...]                                              # (C, CIN+1)
    w_cols = [params[:, i:i + 1] for i in range(cin)]                     # each (C, 1)
    bias = params[:, cin:cin + 1]                                         # (C, 1)
    cout = params.shape[0]

    for b in range(batch):                                                # unrolled (B=2)
        vol = jnp.zeros((cout, n_vox), jnp.float32)
        cnt = jnp.zeros((1, n_vox), jnp.float32)

        for t in range(n_frames):                                         # unrolled (T=3)
            # normalizer + feature_2d (1x1 conv) — normalizer folded into w'/b'
            xn = x_ref[b, t]                                              # (CIN, P)
            feat = (w_cols[0] * xn[0:1, :] + w_cols[1] * xn[1:2, :]
                    + w_cols[2] * xn[2:3, :] + bias)                      # (C, P) f32
            feat_bf = feat.astype(jnp.bfloat16)

            # camera = projection @ world, from SMEM scalars (scalar * vector broadcasts)
            base = (b * n_frames + t) * 12
            p = [proj_ref[base + k] for k in range(12)]
            camx = p[0] * wx + p[1] * wy + p[2] * wz + p[3] * wo          # (1, V)
            camy = p[4] * wx + p[5] * wy + p[6] * wz + p[7] * wo
            camz = p[8] * wx + p[9] * wy + p[10] * wz + p[11] * wo
            safe_z = jnp.where(camz > 0, camz, 1.0)
            inv_z = 1.0 / safe_z                                          # exact, reused
            px = jnp.round(camx * inv_z)
            py = jnp.round(camy * inv_z)
            valid = (px >= 0) & (py >= 0) & (px < width) & (py < height) & (camz > 0)
            # invalid voxels get pix = -1, which never matches the iota -> zero one-hot col
            pix = jnp.where(valid, py * width + px, -1.0).astype(jnp.int32)   # (1, V)
            onehot = (iota_p == pix).astype(jnp.bfloat16)                 # (P, V), exact 0/1

            # gather via MXU: (C, P) @ (P, V) accumulated in f32 (no concat of one-hots)
            vol = vol + jnp.dot(feat_bf, onehot, preferred_element_type=jnp.float32)
            cnt = cnt + valid.astype(jnp.float32)

        # inference2 prologue: volume / valid, valid==0 voxels zeroed
        seen = cnt > 0.0
        inv = pl.reciprocal(jnp.where(seen, cnt, 1.0), approx=True)
        scale = jnp.where(seen, inv, 0.0)                                 # (1, V)
        vol_ref[b] = vol * scale
        cnt_ref[b] = cnt


# ------------------------------- wrappers --------------------------------------
def make_world_homogeneous():
    xs, ys, zs = jnp.meshgrid(jnp.arange(NX), jnp.arange(NY), jnp.arange(NZ), indexing="ij")
    coords = jnp.stack([xs.ravel(), ys.ravel(), zs.ravel()], axis=0).astype(jnp.float32)  # (3,V)
    world = coords * VOXEL_SIZE + ORIGIN[:, None]
    return jnp.concatenate([world, jnp.ones((1, V), jnp.float32)], axis=0)                # (4,V)


def init_params(key):
    k1, k2 = jax.random.split(key)
    return {
        "pixel_mean": PIXEL_MEAN,
        "pixel_std": PIXEL_STD,
        "w2d": 0.1 * jax.random.normal(k1, (CIN, C), jnp.float32),
        "b2d": 0.01 * jax.random.normal(k2, (C,), jnp.float32),
    }


def atlas_forward(imgs, projection, params):
    """imgs: (B, T, 3, H, W) NCHW frames; projection: (B, T, 3, 4)."""
    # TODO(synk): self.fpn / self.feature_2d are external registry-built backbones;
    # here the spatial stride is a plain subsample and the channel mix is a 1x1 conv.
    sub = imgs[:, :, :, ::STRIDE, ::STRIDE]                               # (B, T, CIN, FH, FW)
    x = sub.reshape(B, T, CIN, P)                                         # pure view

    # fold normalizer into the 1x1-conv params: w' = w/std (per in-channel), b' = b-(mean/std)@w
    inv_std = 1.0 / params["pixel_std"]                                   # (CIN,)
    w_fold = params["w2d"] * inv_std[:, None]                             # (CIN, C)
    mscale = params["pixel_mean"] * inv_std                               # (CIN,)
    b_fold = params["b2d"] - jnp.sum(mscale[:, None] * params["w2d"], axis=0)   # (C,)
    param_blk = jnp.concatenate([w_fold.T, b_fold[:, None]], axis=1)      # (C, CIN+1)

    # inference1 glue: projection[:, :2, :] /= backbone2d_stride; flatten for SMEM
    proj_scaled = jnp.concatenate(
        [projection[:, :, :2, :] / STRIDE, projection[:, :, 2:, :]], axis=2)  # (B, T, 3, 4)
    proj_flat = proj_scaled.reshape(-1).astype(jnp.float32)               # (B*T*12,)

    world = make_world_homogeneous()                                      # (4, V)

    kernel = functools.partial(atlas_fused_kernel, height=float(FH), width=float(FW),
                               n_frames=T, n_pix=P, batch=B, cin=CIN)
    vol, cnt = pl.pallas_call(
        kernel,
        out_shape=(jax.ShapeDtypeStruct((B, C, V), jnp.float32),
                   jax.ShapeDtypeStruct((B, 1, V), jnp.float32)),
        in_specs=[
            pl.BlockSpec(memory_space=pltpu.MemorySpace.SMEM),            # projections (scalars)
            pl.BlockSpec(memory_space=pltpu.MemorySpace.VMEM),            # raw pixels
            pl.BlockSpec(memory_space=pltpu.MemorySpace.VMEM),            # folded conv params
            pl.BlockSpec(memory_space=pltpu.MemorySpace.VMEM),            # world coords
        ],
        out_specs=(
            pl.BlockSpec(memory_space=pltpu.MemorySpace.VMEM),
            pl.BlockSpec(memory_space=pltpu.MemorySpace.VMEM),
        ),
    )(proj_flat, x, param_blk, world)

    volume = vol.reshape(B, C, NX, NY, NZ)        # already channels-first -> pure view
    valid = cnt.reshape(B, 1, NX, NY, NZ)
    # TODO(synk): self.backbone3d (3D CNN), self.tsdf_head, TSDF/mesh post-processing and
    # distributed loss parsing are external registry modules; not implemented here.
    return {"feature_volume": volume, "valid_count": valid}


# --------------------------- pure-JAX reference --------------------------------
def atlas_reference(imgs, projection, params):
    sub = imgs[:, :, :, ::STRIDE, ::STRIDE].reshape(B, T, CIN, P)
    mean = params["pixel_mean"].reshape(1, 1, CIN, 1)
    std = params["pixel_std"].reshape(1, 1, CIN, 1)
    xn = (sub - mean) / std                                               # (B, T, CIN, P)
    w = params["w2d"]                                                     # (CIN, C)
    bias = params["b2d"]                                                  # (C,)
    feat = (xn[:, :, 0][:, :, None, :] * w[0][None, None, :, None]
            + xn[:, :, 1][:, :, None, :] * w[1][None, None, :, None]
            + xn[:, :, 2][:, :, None, :] * w[2][None, None, :, None]
            + bias[None, None, :, None])                                  # (B, T, C, P)

    proj_scaled = jnp.concatenate(
        [projection[:, :, :2, :] / STRIDE, projection[:, :, 2:, :]], axis=2)
    world = make_world_homogeneous()                                      # (4, V)

    vol = jnp.zeros((B, C, V), jnp.float32)
    cnt = jnp.zeros((B, 1, V), jnp.float32)
    for b in range(B):
        for t in range(T):
            p = proj_scaled[b, t]                                         # (3, 4)
            camx = p[0, 0] * world[0] + p[0, 1] * world[1] + p[0, 2] * world[2] + p[0, 3] * world[3]
            camy = p[1, 0] * world[0] + p[1, 1] * world[1] + p[1, 2] * world[2] + p[1, 3] * world[3]
            camz = p[2, 0] * world[0] + p[2, 1] * world[1] + p[2, 2] * world[2] + p[2, 3] * world[3]
            safe_z = jnp.where(camz > 0, camz, 1.0)
            inv_z = 1.0 / safe_z
            px = jnp.round(camx * inv_z)
            py = jnp.round(camy * inv_z)
            valid = (px >= 0) & (py >= 0) & (px < FW) & (py < FH) & (camz > 0)
            pix = jnp.clip(py * FW + px, 0, P - 1).astype(jnp.int32)      # (V,)
            gathered = jnp.take(feat[b, t], pix, axis=1)                  # (C, V)
            vol = vol.at[b].add(gathered * valid[None, :].astype(jnp.float32))
            cnt = cnt.at[b, 0].add(valid.astype(jnp.float32))
    avg = jnp.where(cnt > 0, vol / jnp.where(cnt > 0, cnt, 1.0), 0.0)
    return avg.reshape(B, C, NX, NY, NZ), cnt.reshape(B, 1, NX, NY, NZ)


def make_projections(key):
    f, cx, cy = 16.0, 16.0, 16.0
    trans = 0.1 * jax.random.normal(key, (B, T, 3), jnp.float32)
    tx, ty, tz = trans[..., 0], trans[..., 1], trans[..., 2]
    row0 = jnp.stack([jnp.full_like(tx, f), jnp.zeros_like(tx), jnp.full_like(tx, cx),
                      f * tx + cx * tz], axis=-1)
    row1 = jnp.stack([jnp.zeros_like(tx), jnp.full_like(tx, f), jnp.full_like(tx, cy),
                      f * ty + cy * tz], axis=-1)
    row2 = jnp.stack([jnp.zeros_like(tx), jnp.zeros_like(tx), jnp.ones_like(tx), tz], axis=-1)
    return jnp.stack([row0, row1, row2], axis=-2)   # (B, T, 3, 4)


if __name__ == "__main__":
    key = jax.random.PRNGKey(0)
    k_img, k_proj, k_param = jax.random.split(key, 3)
    imgs = jax.random.uniform(k_img, (B, T, CIN, H, W), jnp.float32, 0.0, 255.0)
    projection = make_projections(k_proj)
    params = init_params(k_param)

    out = jax.jit(lambda a, b: atlas_forward(a, b, params))(imgs, projection)
    out = jax.block_until_ready(out)

    ref_vol, ref_cnt = atlas_reference(imgs, projection, params)
    assert out["feature_volume"].shape == (B, C, NX, NY, NZ)
    assert out["valid_count"].shape == (B, 1, NX, NY, NZ)
    assert bool(jnp.all(jnp.isfinite(out["feature_volume"])))
    assert jnp.allclose(out["valid_count"], ref_cnt, atol=1e-3, rtol=1e-3)
    assert jnp.allclose(out["feature_volume"], ref_vol, atol=1e-2, rtol=1e-2)
    print("KERNEL_OK")
</pallas_src>

<mosaic_0001>
module attributes {stable_mosaic.version = 11 : i64} {
  func.func @atlas_fused_kernel(%arg0: memref<72xf32, #tpu.memory_space<smem>>, %arg1: memref<2x3x3x64xf32, #tpu.memory_space<vmem>>, %arg2: memref<8x4xf32, #tpu.memory_space<vmem>>, %arg3: memref<4x512xf32, #tpu.memory_space<vmem>>, %arg4: memref<2x8x512xf32, #tpu.memory_space<vmem>>, %arg5: memref<2x1x512xf32, #tpu.memory_space<vmem>>) attributes {dimension_semantics = [], scalar_prefetch = 0 : i64, scratch_operands = 0 : i64, tpu.core_type = #tpu.core_type<tc>} {
    %c0 = arith.constant 0 : index
    %c0_0 = arith.constant 0 : index
    %0 = vector.load %arg3[%c0, %c0_0] : memref<4x512xf32, #tpu.memory_space<vmem>>, vector<4x512xf32>
    %1 = vector.extract_strided_slice %0 {offsets = [0, 0], sizes = [1, 512], strides = [1, 1]} : vector<4x512xf32> to vector<1x512xf32>
    %2 = vector.extract_strided_slice %0 {offsets = [1, 0], sizes = [1, 512], strides = [1, 1]} : vector<4x512xf32> to vector<1x512xf32>
    %3 = vector.extract_strided_slice %0 {offsets = [2, 0], sizes = [1, 512], strides = [1, 1]} : vector<4x512xf32> to vector<1x512xf32>
    %4 = vector.extract_strided_slice %0 {offsets = [3, 0], sizes = [1, 512], strides = [1, 1]} : vector<4x512xf32> to vector<1x512xf32>
    %5 = tpu.iota {dimensions = array<i32: 0>} : vector<64x512xi32>
    %c0_1 = arith.constant 0 : index
    %c0_2 = arith.constant 0 : index
    %6 = vector.load %arg2[%c0_1, %c0_2] : memref<8x4xf32, #tpu.memory_space<vmem>>, vector<8x4xf32>
    %7 = vector.extract_strided_slice %6 {offsets = [0, 0], sizes = [8, 1], strides = [1, 1]} : vector<8x4xf32> to vector<8x1xf32>
    %8 = vector.extract_strided_slice %6 {offsets = [0, 1], sizes = [8, 1], strides = [1, 1]} : vector<8x4xf32> to vector<8x1xf32>
    %9 = vector.extract_strided_slice %6 {offsets = [0, 2], sizes = [8, 1], strides = [1, 1]} : vector<8x4xf32> to vector<8x1xf32>
    %10 = vector.extract_strided_slice %6 {offsets = [0, 3], sizes = [8, 1], strides = [1, 1]} : vector<8x4xf32> to vector<8x1xf32>
    %cst = arith.constant 0.000000e+00 : f32
    %11 = vector.broadcast %cst : f32 to vector<8x512xf32>
    %cst_3 = arith.constant 0.000000e+00 : f32
    %12 = vector.broadcast %cst_3 : f32 to vector<1x512xf32>
    %c0_4 = arith.constant 0 : index
    %c0_5 = arith.constant 0 : index
    %c0_6 = arith.constant 0 : index
    %c0_7 = arith.constant 0 : index
    %13 = vector.load %arg1[%c0_4, %c0_5, %c0_6, %c0_7] : memref<2x3x3x64xf32, #tpu.memory_space<vmem>>, vector<1x1x3x64xf32>
    %14 = vector.shape_cast %13 : vector<1x1x3x64xf32> to vector<3x64xf32>
    %15 = vector.extract_strided_slice %14 {offsets = [0, 0], sizes = [1, 64], strides = [1, 1]} : vector<3x64xf32> to vector<1x64xf32>
    %16 = vector.broadcast %7 : vector<8x1xf32> to vector<8x64xf32>
    %17 = vector.broadcast %15 : vector<1x64xf32> to vector<8x64xf32>
    %18 = arith.mulf %16, %17 : vector<8x64xf32>
    %19 = vector.extract_strided_slice %14 {offsets = [1, 0], sizes = [1, 64], strides = [1, 1]} : vector<3x64xf32> to vector<1x64xf32>
    %20 = vector.broadcast %8 : vector<8x1xf32> to vector<8x64xf32>
    %21 = vector.broadcast %19 : vector<1x64xf32> to vector<8x64xf32>
    %22 = arith.mulf %20, %21 : vector<8x64xf32>
    %23 = arith.addf %18, %22 : vector<8x64xf32>
    %24 = vector.extract_strided_slice %14 {offsets = [2, 0], sizes = [1, 64], strides = [1, 1]} : vector<3x64xf32> to vector<1x64xf32>
    %25 = vector.broadcast %9 : vector<8x1xf32> to vector<8x64xf32>
    %26 = vector.broadcast %24 : vector<1x64xf32> to vector<8x64xf32>
    %27 = arith.mulf %25, %26 : vector<8x64xf32>
    %28 = arith.addf %23, %27 : vector<8x64xf32>
    %29 = vector.broadcast %10 : vector<8x1xf32> to vector<8x64xf32>
    %30 = arith.addf %28, %29 : vector<8x64xf32>
    %31 = arith.truncf %30 : vector<8x64xf32> to vector<8x64xbf16>
    %c0_8 = arith.constant 0 : index
    %32 = memref.load %arg0[%c0_8] : memref<72xf32, #tpu.memory_space<smem>>
    %c1 = arith.constant 1 : index
    %33 = memref.load %arg0[%c1] : memref<72xf32, #tpu.memory_space<smem>>
    %c2 = arith.constant 2 : index
    %34 = memref.load %arg0[%c2] : memref<72xf32, #tpu.memory_space<smem>>
    %c3 = arith.constant 3 : index
    %35 = memref.load %arg0[%c3] : memref<72xf32, #tpu.memory_space<smem>>
    %c4 = arith.constant 4 : index
    %36 = memref.load %arg0[%c4] : memref<72xf32, #tpu.memory_space<smem>>
    %c5 = arith.constant 5 : index
    %37 = memref.load %arg0[%c5] : memref<72xf32, #tpu.memory_space<smem>>
    %c6 = arith.constant 6 : index
    %38 = memref.load %arg0[%c6] : memref<72xf32, #tpu.memory_space<smem>>
    %c7 = arith.constant 7 : index
    %39 = memref.load %arg0[%c7] : memref<72xf32, #tpu.memory_space<smem>>
    %c8 = arith.constant 8 : index
    %40 = memref.load %arg0[%c8] : memref<72xf32, #tpu.memory_space<smem>>
    %c9 = arith.constant 9 : index
    %41 = memref.load %arg0[%c9] : memref<72xf32, #tpu.memory_space<smem>>
    %c10 = arith.constant 10 : index
    %42 = memref.load %arg0[%c10] : memref<72xf32, #tpu.memory_space<smem>>
    %c11 = arith.constant 11 : index
    %43 = memref.load %arg0[%c11] : memref<72xf32, #tpu.memory_space<smem>>
    %44 = vector.broadcast %32 : f32 to vector<1x512xf32>
    %45 = arith.mulf %44, %1 : vector<1x512xf32>
    %46 = vector.broadcast %33 : f32 to vector<1x512xf32>
    %47 = arith.mulf %46, %2 : vector<1x512xf32>
    %48 = arith.addf %45, %47 : vector<1x512xf32>
    %49 = vector.broadcast %34 : f32 to vector<1x512xf32>
    %50 = arith.mulf %49, %3 : vector<1x512xf32>
    %51 = arith.addf %48, %50 : vector<1x512xf32>
    %52 = vector.broadcast %35 : f32 to vector<1x512xf32>
    %53 = arith.mulf %52, %4 : vector<1x512xf32>
    %54 = arith.addf %51, %53 : vector<1x512xf32>
    %55 = vector.broadcast %36 : f32 to vector<1x512xf32>
    %56 = arith.mulf %55, %1 : vector<1x512xf32>
    %57 = vector.broadcast %37 : f32 to vector<1x512xf32>
    %58 = arith.mulf %57, %2 : vector<1x512xf32>
    %59 = arith.addf %56, %58 : vector<1x512xf32>
    %60 = vector.broadcast %38 : f32 to vector<1x512xf32>
    %61 = arith.mulf %60, %3 : vector<1x512xf32>
    %62 = arith.addf %59, %61 : vector<1x512xf32>
    %63 = vector.broadcast %39 : f32 to vector<1x512xf32>
    %64 = arith.mulf %63, %4 : vector<1x512xf32>
    %65 = arith.addf %62, %64 : vector<1x512xf32>
    %66 = vector.broadcast %40 : f32 to vector<1x512xf32>
    %67 = arith.mulf %66, %1 : vector<1x512xf32>
    %68 = vector.broadcast %41 : f32 to vector<1x512xf32>
    %69 = arith.mulf %68, %2 : vector<1x512xf32>
    %70 = arith.addf %67, %69 : vector<1x512xf32>
    %71 = vector.broadcast %42 : f32 to vector<1x512xf32>
    %72 = arith.mulf %71, %3 : vector<1x512xf32>
    %73 = arith.addf %70, %72 : vector<1x512xf32>
    %74 = vector.broadcast %43 : f32 to vector<1x512xf32>
    %75 = arith.mulf %74, %4 : vector<1x512xf32>
    %76 = arith.addf %73, %75 : vector<1x512xf32>
    %cst_9 = arith.constant 0.000000e+00 : f32
    %77 = vector.broadcast %cst_9 : f32 to vector<1x512xf32>
    %78 = arith.cmpf ogt, %76, %77 : vector<1x512xf32>
    %cst_10 = arith.constant 1.000000e+00 : f32
    %79 = vector.broadcast %cst_10 : f32 to vector<1x512xf32>
    %80 = arith.select %78, %76, %79 : vector<1x512xi1>, vector<1x512xf32>
    %cst_11 = arith.constant 1.000000e+00 : f32
    %81 = vector.broadcast %cst_11 : f32 to vector<1x512xf32>
    %82 = arith.divf %81, %80 : vector<1x512xf32>
    %83 = arith.mulf %54, %82 : vector<1x512xf32>
    %84 = math.roundeven %83 : vector<1x512xf32>
    %85 = arith.mulf %65, %82 : vector<1x512xf32>
    %86 = math.roundeven %85 : vector<1x512xf32>
    %cst_12 = arith.constant 0.000000e+00 : f32
    %87 = vector.broadcast %cst_12 : f32 to vector<1x512xf32>
    %88 = arith.cmpf oge, %84, %87 : vector<1x512xf32>
    %cst_13 = arith.constant 0.000000e+00 : f32
    %89 = vector.broadcast %cst_13 : f32 to vector<1x512xf32>
    %90 = arith.cmpf oge, %86, %89 : vector<1x512xf32>
    %91 = arith.andi %88, %90 : vector<1x512xi1>
    %cst_14 = arith.constant 8.000000e+00 : f32
    %92 = vector.broadcast %cst_14 : f32 to vector<1x512xf32>
    %93 = arith.cmpf olt, %84, %92 : vector<1x512xf32>
    %94 = arith.andi %91, %93 : vector<1x512xi1>
    %cst_15 = arith.constant 8.000000e+00 : f32
    %95 = vector.broadcast %cst_15 : f32 to vector<1x512xf32>
    %96 = arith.cmpf olt, %86, %95 : vector<1x512xf32>
    %97 = arith.andi %94, %96 : vector<1x512xi1>
    %cst_16 = arith.constant 0.000000e+00 : f32
    %98 = vector.broadcast %cst_16 : f32 to vector<1x512xf32>
    %99 = arith.cmpf ogt, %76, %98 : vector<1x512xf32>
    %100 = arith.andi %97, %99 : vector<1x512xi1>
    %cst_17 = arith.constant 8.000000e+00 : f32
    %101 = vector.broadcast %cst_17 : f32 to vector<1x512xf32>
    %102 = arith.mulf %86, %101 : vector<1x512xf32>
    %103 = arith.addf %102, %84 : vector<1x512xf32>
    %cst_18 = arith.constant -1.000000e+00 : f32
    %104 = vector.broadcast %cst_18 : f32 to vector<1x512xf32>
    %105 = arith.select %100, %103, %104 : vector<1x512xi1>, vector<1x512xf32>
    %106 = arith.fptosi %105 : vector<1x512xf32> to vector<1x512xi32>
    %107 = vector.broadcast %106 : vector<1x512xi32> to vector<64x512xi32>
    %108 = arith.cmpi eq, %5, %107 : vector<64x512xi32>
    %109 = arith.extui %108 : vector<64x512xi1> to vector<64x512xi32>
    %110 = arith.sitofp %109 : vector<64x512xi32> to vector<64x512xf32>
    %111 = arith.truncf %110 : vector<64x512xf32> to vector<64x512xbf16>
    %cst_19 = arith.constant dense<0.000000e+00> : vector<8x512xf32>
    %112 = tpu.matmul %31, %111, %cst_19 {dimension_numbers = #tpu.dot_dimension_numbers<[1], [0], [0], [1], [0, 0, 1, 1], [], []>} : vector<8x64xbf16>, vector<64x512xbf16>, vector<8x512xf32> -> vector<8x512xf32>
    %113 = arith.addf %11, %112 : vector<8x512xf32>
    %114 = arith.extui %100 : vector<1x512xi1> to vector<1x512xi32>
    %115 = arith.sitofp %114 : vector<1x512xi32> to vector<1x512xf32>
    %116 = arith.addf %12, %115 : vector<1x512xf32>
    %c0_20 = arith.constant 0 : index
    %c1_21 = arith.constant 1 : index
    %c0_22 = arith.constant 0 : index
    %c0_23 = arith.constant 0 : index
    %117 = vector.load %arg1[%c0_20, %c1_21, %c0_22, %c0_23] : memref<2x3x3x64xf32, #tpu.memory_space<vmem>>, vector<1x1x3x64xf32>
    %118 = vector.shape_cast %117 : vector<1x1x3x64xf32> to vector<3x64xf32>
    %119 = vector.extract_strided_slice %118 {offsets = [0, 0], sizes = [1, 64], strides = [1, 1]} : vector<3x64xf32> to vector<1x64xf32>
    %120 = vector.broadcast %7 : vector<8x1xf32> to vector<8x64xf32>
    %121 = vector.broadcast %119 : vector<1x64xf32> to vector<8x64xf32>
    %122 = arith.mulf %120, %121 : vector<8x64xf32>
    %123 = vector.extract_strided_slice %118 {offsets = [1, 0], sizes = [1, 64], strides = [1, 1]} : vector<3x64xf32> to vector<1x64xf32>
    %124 = vector.broadcast %8 : vector<8x1xf32> to vector<8x64xf32>
    %125 = vector.broadcast %123 : vector<1x64xf32> to vector<8x64xf32>
    %126 = arith.mulf %124, %125 : vector<8x64xf32>
    %127 = arith.addf %122, %126 : vector<8x64xf32>
    %128 = vector.extract_strided_slice %118 {offsets = [2, 0], sizes = [1, 64], strides = [1, 1]} : vector<3x64xf32> to vector<1x64xf32>
    %129 = vector.broadcast %9 : vector<8x1xf32> to vector<8x64xf32>
    %130 = vector.broadcast %128 : vector<1x64xf32> to vector<8x64xf32>
    %131 = arith.mulf %129, %130 : vector<8x64xf32>
    %132 = arith.addf %127, %131 : vector<8x64xf32>
    %133 = vector.broadcast %10 : vector<8x1xf32> to vector<8x64xf32>
    %134 = arith.addf %132, %133 : vector<8x64xf32>
    %135 = arith.truncf %134 : vector<8x64xf32> to vector<8x64xbf16>
    %c12 = arith.constant 12 : index
    %136 = memref.load %arg0[%c12] : memref<72xf32, #tpu.memory_space<smem>>
    %c13 = arith.constant 13 : index
    %137 = memref.load %arg0[%c13] : memref<72xf32, #tpu.memory_space<smem>>
    %c14 = arith.constant 14 : index
    %138 = memref.load %arg0[%c14] : memref<72xf32, #tpu.memory_space<smem>>
    %c15 = arith.constant 15 : index
    %139 = memref.load %arg0[%c15] : memref<72xf32, #tpu.memory_space<smem>>
    %c16 = arith.constant 16 : index
    %140 = memref.load %arg0[%c16] : memref<72xf32, #tpu.memory_space<smem>>
    %c17 = arith.constant 17 : index
    %141 = memref.load %arg0[%c17] : memref<72xf32, #tpu.memory_space<smem>>
    %c18 = arith.constant 18 : index
    %142 = memref.load %arg0[%c18] : memref<72xf32, #tpu.memory_space<smem>>
    %c19 = arith.constant 19 : index
    %143 = memref.load %arg0[%c19] : memref<72xf32, #tpu.memory_space<smem>>
    %c20 = arith.constant 20 : index
    %144 = memref.load %arg0[%c20] : memref<72xf32, #tpu.memory_space<smem>>
    %c21 = arith.constant 21 : index
    %145 = memref.load %arg0[%c21] : memref<72xf32, #tpu.memory_space<smem>>
    %c22 = arith.constant 22 : index
    %146 = memref.load %arg0[%c22] : memref<72xf32, #tpu.memory_space<smem>>
    %c23 = arith.constant 23 : index
    %147 = memref.load %arg0[%c23] : memref<72xf32, #tpu.memory_space<smem>>
    %148 = vector.broadcast %136 : f32 to vector<1x512xf32>
    %149 = arith.mulf %148, %1 : vector<1x512xf32>
    %150 = vector.broadcast %137 : f32 to vector<1x512xf32>
    %151 = arith.mulf %150, %2 : vector<1x512xf32>
    %152 = arith.addf %149, %151 : vector<1x512xf32>
    %153 = vector.broadcast %138 : f32 to vector<1x512xf32>
    %154 = arith.mulf %153, %3 : vector<1x512xf32>
    %155 = arith.addf %152, %154 : vector<1x512xf32>
    %156 = vector.broadcast %139 : f32 to vector<1x512xf32>
    %157 = arith.mulf %156, %4 : vector<1x512xf32>
    %158 = arith.addf %155, %157 : vector<1x512xf32>
    %159 = vector.broadcast %140 : f32 to vector<1x512xf32>
    %160 = arith.mulf %159, %1 : vector<1x512xf32>
    %161 = vector.broadcast %141 : f32 to vector<1x512xf32>
    %162 = arith.mulf %161, %2 : vector<1x512xf32>
    %163 = arith.addf %160, %162 : vector<1x512xf32>
    %164 = vector.broadcast %142 : f32 to vector<1x512xf32>
    %165 = arith.mulf %164, %3 : vector<1x512xf32>
    %166 = arith.addf %163, %165 : vector<1x512xf32>
    %167 = vector.broadcast %143 : f32 to vector<1x512xf32>
    %168 = arith.mulf %167, %4 : vector<1x512xf32>
    %169 = arith.addf %166, %168 : vector<1x512xf32>
    %170 = vector.broadcast %144 : f32 to vector<1x512xf32>
    %171 = arith.mulf %170, %1 : vector<1x512xf32>
    %172 = vector.broadcast %145 : f32 to vector<1x512xf32>
    %173 = arith.mulf %172, %2 : vector<1x512xf32>
    %174 = arith.addf %171, %173 : vector<1x512xf32>
    %175 = vector.broadcast %146 : f32 to vector<1x512xf32>
    %176 = arith.mulf %175, %3 : vector<1x512xf32>
    %177 = arith.addf %174, %176 : vector<1x512xf32>
    %178 = vector.broadcast %147 : f32 to vector<1x512xf32>
    %179 = arith.mulf %178, %4 : vector<1x512xf32>
    %180 = arith.addf %177, %179 : vector<1x512xf32>
    %cst_24 = arith.constant 0.000000e+00 : f32
    %181 = vector.broadcast %cst_24 : f32 to vector<1x512xf32>
    %182 = arith.cmpf ogt, %180, %181 : vector<1x512xf32>
    %cst_25 = arith.constant 1.000000e+00 : f32
    %183 = vector.broadcast %cst_25 : f32 to vector<1x512xf32>
    %184 = arith.select %182, %180, %183 : vector<1x512xi1>, vector<1x512xf32>
    %cst_26 = arith.constant 1.000000e+00 : f32
    %185 = vector.broadcast %cst_26 : f32 to vector<1x512xf32>
    %186 = arith.divf %185, %184 : vector<1x512xf32>
    %187 = arith.mulf %158, %186 : vector<1x512xf32>
    %188 = math.roundeven %187 : vector<1x512xf32>
    %189 = arith.mulf %169, %186 : vector<1x512xf32>
    %190 = math.roundeven %189 : vector<1x512xf32>
    %cst_27 = arith.constant 0.000000e+00 : f32
    %191 = vector.broadcast %cst_27 : f32 to vector<1x512xf32>
    %192 = arith.cmpf oge, %188, %191 : vector<1x512xf32>
    %cst_28 = arith.constant 0.000000e+00 : f32
    %193 = vector.broadcast %cst_28 : f32 to vector<1x512xf32>
    %194 = arith.cmpf oge, %190, %193 : vector<1x512xf32>
    %195 = arith.andi %192, %194 : vector<1x512xi1>
    %cst_29 = arith.constant 8.000000e+00 : f32
    %196 = vector.broadcast %cst_29 : f32 to vector<1x512xf32>
    %197 = arith.cmpf olt, %188, %196 : vector<1x512xf32>
    %198 = arith.andi %195, %197 : vector<1x512xi1>
    %cst_30 = arith.constant 8.000000e+00 : f32
    %199 = vector.broadcast %cst_30 : f32 to vector<1x512xf32>
    %200 = arith.cmpf olt, %190, %199 : vector<1x512xf32>
    %201 = arith.andi %198, %200 : vector<1x512xi1>
    %cst_31 = arith.constant 0.000000e+00 : f32
    %202 = vector.broadcast %cst_31 : f32 to vector<1x512xf32>
    %203 = arith.cmpf ogt, %180, %202 : vector<1x512xf32>
    %204 = arith.andi %201, %203 : vector<1x512xi1>
    %cst_32 = arith.constant 8.000000e+00 : f32
    %205 = vector.broadcast %cst_32 : f32 to vector<1x512xf32>
    %206 = arith.mulf %190, %205 : vector<1x512xf32>
    %207 = arith.addf %206, %188 : vector<1x512xf32>
    %cst_33 = arith.constant -1.000000e+00 : f32
    %208 = vector.broadcast %cst_33 : f32 to vector<1x512xf32>
    %209 = arith.select %204, %207, %208 : vector<1x512xi1>, vector<1x512xf32>
    %210 = arith.fptosi %209 : vector<1x512xf32> to vector<1x512xi32>
    %211 = vector.broadcast %210 : vector<1x512xi32> to vector<64x512xi32>
    %212 = arith.cmpi eq, %5, %211 : vector<64x512xi32>
    %213 = arith.extui %212 : vector<64x512xi1> to vector<64x512xi32>
    %214 = arith.sitofp %213 : vector<64x512xi32> to vector<64x512xf32>
    %215 = arith.truncf %214 : vector<64x512xf32> to vector<64x512xbf16>
    %cst_34 = arith.constant dense<0.000000e+00> : vector<8x512xf32>
    %216 = tpu.matmul %135, %215, %cst_34 {dimension_numbers = #tpu.dot_dimension_numbers<[1], [0], [0], [1], [0, 0, 1, 1], [], []>} : vector<8x64xbf16>, vector<64x512xbf16>, vector<8x512xf32> -> vector<8x512xf32>
    %217 = arith.addf %113, %216 : vector<8x512xf32>
    %218 = arith.extui %204 : vector<1x512xi1> to vector<1x512xi32>
    %219 = arith.sitofp %218 : vector<1x512xi32> to vector<1x512xf32>
    %220 = arith.addf %116, %219 : vector<1x512xf32>
    %c0_35 = arith.constant 0 : index
    %c2_36 = arith.constant 2 : index
    %c0_37 = arith.constant 0 : index
    %c0_38 = arith.constant 0 : index
    %221 = vector.load %arg1[%c0_35, %c2_36, %c0_37, %c0_38] : memref<2x3x3x64xf32, #tpu.memory_space<vmem>>, vector<1x1x3x64xf32>
    %222 = vector.shape_cast %221 : vector<1x1x3x64xf32> to vector<3x64xf32>
    %223 = vector.extract_strided_slice %222 {offsets = [0, 0], sizes = [1, 64], strides = [1, 1]} : vector<3x64xf32> to vector<1x64xf32>
    %224 = vector.broadcast %7 : vector<8x1xf32> to vector<8x64xf32>
    %225 = vector.broadcast %223 : vector<1x64xf32> to vector<8x64xf32>
    %226 = arith.mulf %224, %225 : vector<8x64xf32>
    %227 = vector.extract_strided_slice %222 {offsets = [1, 0], sizes = [1, 64], strides = [1, 1]} : vector<3x64xf32> to vector<1x64xf32>
    %228 = vector.broadcast %8 : vector<8x1xf32> to vector<8x64xf32>
    %229 = vector.broadcast %227 : vector<1x64xf32> to vector<8x64xf32>
    %230 = arith.mulf %228, %229 : vector<8x64xf32>
    %231 = arith.addf %226, %230 : vector<8x64xf32>
    %232 = vector.extract_strided_slice %222 {offsets = [2, 0], sizes = [1, 64], strides = [1, 1]} : vector<3x64xf32> to vector<1x64xf32>
    %233 = vector.broadcast %9 : vector<8x1xf32> to vector<8x64xf32>
    %234 = vector.broadcast %232 : vector<1x64xf32> to vector<8x64xf32>
    %235 = arith.mulf %233, %234 : vector<8x64xf32>
    %236 = arith.addf %231, %235 : vector<8x64xf32>
    %237 = vector.broadcast %10 : vector<8x1xf32> to vector<8x64xf32>
    %238 = arith.addf %236, %237 : vector<8x64xf32>
    %239 = arith.truncf %238 : vector<8x64xf32> to vector<8x64xbf16>
    %c24 = arith.constant 24 : index
    %240 = memref.load %arg0[%c24] : memref<72xf32, #tpu.memory_space<smem>>
    %c25 = arith.constant 25 : index
    %241 = memref.load %arg0[%c25] : memref<72xf32, #tpu.memory_space<smem>>
    %c26 = arith.constant 26 : index
    %242 = memref.load %arg0[%c26] : memref<72xf32, #tpu.memory_space<smem>>
    %c27 = arith.constant 27 : index
    %243 = memref.load %arg0[%c27] : memref<72xf32, #tpu.memory_space<smem>>
    %c28 = arith.constant 28 : index
    %244 = memref.load %arg0[%c28] : memref<72xf32, #tpu.memory_space<smem>>
    %c29 = arith.constant 29 : index
    %245 = memref.load %arg0[%c29] : memref<72xf32, #tpu.memory_space<smem>>
    %c30 = arith.constant 30 : index
    %246 = memref.load %arg0[%c30] : memref<72xf32, #tpu.memory_space<smem>>
    %c31 = arith.constant 31 : index
    %247 = memref.load %arg0[%c31] : memref<72xf32, #tpu.memory_space<smem>>
    %c32 = arith.constant 32 : index
    %248 = memref.load %arg0[%c32] : memref<72xf32, #tpu.memory_space<smem>>
    %c33 = arith.constant 33 : index
    %249 = memref.load %arg0[%c33] : memref<72xf32, #tpu.memory_space<smem>>
    %c34 = arith.constant 34 : index
    %250 = memref.load %arg0[%c34] : memref<72xf32, #tpu.memory_space<smem>>
    %c35 = arith.constant 35 : index
    %251 = memref.load %arg0[%c35] : memref<72xf32, #tpu.memory_space<smem>>
    %252 = vector.broadcast %240 : f32 to vector<1x512xf32>
    %253 = arith.mulf %252, %1 : vector<1x512xf32>
    %254 = vector.broadcast %241 : f32 to vector<1x512xf32>
    %255 = arith.mulf %254, %2 : vector<1x512xf32>
    %256 = arith.addf %253, %255 : vector<1x512xf32>
    %257 = vector.broadcast %242 : f32 to vector<1x512xf32>
    %258 = arith.mulf %257, %3 : vector<1x512xf32>
    %259 = arith.addf %256, %258 : vector<1x512xf32>
    %260 = vector.broadcast %243 : f32 to vector<1x512xf32>
    %261 = arith.mulf %260, %4 : vector<1x512xf32>
    %262 = arith.addf %259, %261 : vector<1x512xf32>
    %263 = vector.broadcast %244 : f32 to vector<1x512xf32>
    %264 = arith.mulf %263, %1 : vector<1x512xf32>
    %265 = vector.broadcast %245 : f32 to vector<1x512xf32>
    %266 = arith.mulf %265, %2 : vector<1x512xf32>
    %267 = arith.addf %264, %266 : vector<1x512xf32>
    %268 = vector.broadcast %246 : f32 to vector<1x512xf32>
    %269 = arith.mulf %268, %3 : vector<1x512xf32>
    %270 = arith.addf %267, %269 : vector<1x512xf32>
    %271 = vector.broadcast %247 : f32 to vector<1x512xf32>
    %272 = arith.mulf %271, %4 : vector<1x512xf32>
    %273 = arith.addf %270, %272 : vector<1x512xf32>
    %274 = vector.broadcast %248 : f32 to vector<1x512xf32>
    %275 = arith.mulf %274, %1 : vector<1x512xf32>
    %276 = vector.broadcast %249 : f32 to vector<1x512xf32>
    %277 = arith.mulf %276, %2 : vector<1x512xf32>
    %278 = arith.addf %275, %277 : vector<1x512xf32>
    %279 = vector.broadcast %250 : f32 to vector<1x512xf32>
    %280 = arith.mulf %279, %3 : vector<1x512xf32>
    %281 = arith.addf %278, %280 : vector<1x512xf32>
    %282 = vector.broadcast %251 : f32 to vector<1x512xf32>
    %283 = arith.mulf %282, %4 : vector<1x512xf32>
    %284 = arith.addf %281, %283 : vector<1x512xf32>
    %cst_39 = arith.constant 0.000000e+00 : f32
    %285 = vector.broadcast %cst_39 : f32 to vector<1x512xf32>
    %286 = arith.cmpf ogt, %284, %285 : vector<1x512xf32>
    %cst_40 = arith.constant 1.000000e+00 : f32
    %287 = vector.broadcast %cst_40 : f32 to vector<1x512xf32>
    %288 = arith.select %286, %284, %287 : vector<1x512xi1>, vector<1x512xf32>
    %cst_41 = arith.constant 1.000000e+00 : f32
    %289 = vector.broadcast %cst_41 : f32 to vector<1x512xf32>
    %290 = arith.divf %289, %288 : vector<1x512xf32>
    %291 = arith.mulf %262, %290 : vector<1x512xf32>
    %292 = math.roundeven %291 : vector<1x512xf32>
    %293 = arith.mulf %273, %290 : vector<1x512xf32>
    %294 = math.roundeven %293 : vector<1x512xf32>
    %cst_42 = arith.constant 0.000000e+00 : f32
    %295 = vector.broadcast %cst_42 : f32 to vector<1x512xf32>
    %296 = arith.cmpf oge, %292, %295 : vector<1x512xf32>
    %cst_43 = arith.constant 0.000000e+00 : f32
    %297 = vector.broadcast %cst_43 : f32 to vector<1x512xf32>
    %298 = arith.cmpf oge, %294, %297 : vector<1x512xf32>
    %299 = arith.andi %296, %298 : vector<1x512xi1>
    %cst_44 = arith.constant 8.000000e+00 : f32
    %300 = vector.broadcast %cst_44 : f32 to vector<1x512xf32>
    %301 = arith.cmpf olt, %292, %300 : vector<1x512xf32>
    %302 = arith.andi %299, %301 : vector<1x512xi1>
    %cst_45 = arith.constant 8.000000e+00 : f32
    %303 = vector.broadcast %cst_45 : f32 to vector<1x512xf32>
    %304 = arith.cmpf olt, %294, %303 : vector<1x512xf32>
    %305 = arith.andi %302, %304 : vector<1x512xi1>
    %cst_46 = arith.constant 0.000000e+00 : f32
    %306 = vector.broadcast %cst_46 : f32 to vector<1x512xf32>
    %307 = arith.cmpf ogt, %284, %306 : vector<1x512xf32>
    %308 = arith.andi %305, %307 : vector<1x512xi1>
    %cst_47 = arith.constant 8.000000e+00 : f32
    %309 = vector.broadcast %cst_47 : f32 to vector<1x512xf32>
    %310 = arith.mulf %294, %309 : vector<1x512xf32>
    %311 = arith.addf %310, %292 : vector<1x512xf32>
    %cst_48 = arith.constant -1.000000e+00 : f32
    %312 = vector.broadcast %cst_48 : f32 to vector<1x512xf32>
    %313 = arith.select %308, %311, %312 : vector<1x512xi1>, vector<1x512xf32>
    %314 = arith.fptosi %313 : vector<1x512xf32> to vector<1x512xi32>
    %315 = vector.broadcast %314 : vector<1x512xi32> to vector<64x512xi32>
    %316 = arith.cmpi eq, %5, %315 : vector<64x512xi32>
    %317 = arith.extui %316 : vector<64x512xi1> to vector<64x512xi32>
    %318 = arith.sitofp %317 : vector<64x512xi32> to vector<64x512xf32>
    %319 = arith.truncf %318 : vector<64x512xf32> to vector<64x512xbf16>
    %cst_49 = arith.constant dense<0.000000e+00> : vector<8x512xf32>
    %320 = tpu.matmul %239, %319, %cst_49 {dimension_numbers = #tpu.dot_dimension_numbers<[1], [0], [0], [1], [0, 0, 1, 1], [], []>} : vector<8x64xbf16>, vector<64x512xbf16>, vector<8x512xf32> -> vector<8x512xf32>
    %321 = arith.addf %217, %320 : vector<8x512xf32>
    %322 = arith.extui %308 : vector<1x512xi1> to vector<1x512xi32>
    %323 = arith.sitofp %322 : vector<1x512xi32> to vector<1x512xf32>
    %324 = arith.addf %220, %323 : vector<1x512xf32>
    %cst_50 = arith.constant 0.000000e+00 : f32
    %325 = vector.broadcast %cst_50 : f32 to vector<1x512xf32>
    %326 = arith.cmpf ogt, %324, %325 : vector<1x512xf32>
    %cst_51 = arith.constant 1.000000e+00 : f32
    %327 = vector.broadcast %cst_51 : f32 to vector<1x512xf32>
    %328 = arith.select %326, %324, %327 : vector<1x512xi1>, vector<1x512xf32>
    %329 = tpu.reciprocal %328 {approx = true} : vector<1x512xf32> -> vector<1x512xf32>
    %cst_52 = arith.constant 0.000000e+00 : f32
    %330 = vector.broadcast %cst_52 : f32 to vector<1x512xf32>
    %331 = arith.select %326, %329, %330 : vector<1x512xi1>, vector<1x512xf32>
    %332 = vector.broadcast %331 : vector<1x512xf32> to vector<8x512xf32>
    %333 = arith.mulf %321, %332 : vector<8x512xf32>
    %c0_53 = arith.constant 0 : index
    %c0_54 = arith.constant 0 : index
    %c0_55 = arith.constant 0 : index
    %334 = vector.load %arg4[%c0_53, %c0_54, %c0_55] : memref<2x8x512xf32, #tpu.memory_space<vmem>>, vector<1x8x512xf32>
    %335 = vector.shape_cast %334 : vector<1x8x512xf32> to vector<8x512xf32>
    %336 = vector.shape_cast %333 : vector<8x512xf32> to vector<1x8x512xf32>
    tpu.vector_store %arg4[%c0_53, %c0_54, %c0_55], %336 {strides = array<i32>} : memref<2x8x512xf32, #tpu.memory_space<vmem>>, vector<1x8x512xf32>,
    %c0_56 = arith.constant 0 : index
    %c0_57 = arith.constant 0 : index
    %c0_58 = arith.constant 0 : index
    %337 = vector.load %arg5[%c0_56, %c0_57, %c0_58] : memref<2x1x512xf32, #tpu.memory_space<vmem>>, vector<1x1x512xf32>
    %338 = vector.shape_cast %337 : vector<1x1x512xf32> to vector<1x512xf32>
    %339 = vector.shape_cast %324 : vector<1x512xf32> to vector<1x1x512xf32>
    tpu.vector_store %arg5[%c0_56, %c0_57, %c0_58], %339 {strides = array<i32>} : memref<2x1x512xf32, #tpu.memory_space<vmem>>, vector<1x1x512xf32>,
    %cst_59 = arith.constant 0.000000e+00 : f32
    %340 = vector.broadcast %cst_59 : f32 to vector<8x512xf32>
    %cst_60 = arith.constant 0.000000e+00 : f32
    %341 = vector.broadcast %cst_60 : f32 to vector<1x512xf32>
    %c1_61 = arith.constant 1 : index
    %c0_62 = arith.constant 0 : index
    %c0_63 = arith.constant 0 : index
    %c0_64 = arith.constant 0 : index
    %342 = vector.load %arg1[%c1_61, %c0_62, %c0_63, %c0_64] : memref<2x3x3x64xf32, #tpu.memory_space<vmem>>, vector<1x1x3x64xf32>
    %343 = vector.shape_cast %342 : vector<1x1x3x64xf32> to vector<3x64xf32>
    %344 = vector.extract_strided_slice %343 {offsets = [0, 0], sizes = [1, 64], strides = [1, 1]} : vector<3x64xf32> to vector<1x64xf32>
    %345 = vector.broadcast %7 : vector<8x1xf32> to vector<8x64xf32>
    %346 = vector.broadcast %344 : vector<1x64xf32> to vector<8x64xf32>
    %347 = arith.mulf %345, %346 : vector<8x64xf32>
    %348 = vector.extract_strided_slice %343 {offsets = [1, 0], sizes = [1, 64], strides = [1, 1]} : vector<3x64xf32> to vector<1x64xf32>
    %349 = vector.broadcast %8 : vector<8x1xf32> to vector<8x64xf32>
    %350 = vector.broadcast %348 : vector<1x64xf32> to vector<8x64xf32>
    %351 = arith.mulf %349, %350 : vector<8x64xf32>
    %352 = arith.addf %347, %351 : vector<8x64xf32>
    %353 = vector.extract_strided_slice %343 {offsets = [2, 0], sizes = [1, 64], strides = [1, 1]} : vector<3x64xf32> to vector<1x64xf32>
    %354 = vector.broadcast %9 : vector<8x1xf32> to vector<8x64xf32>
    %355 = vector.broadcast %353 : vector<1x64xf32> to vector<8x64xf32>
    %356 = arith.mulf %354, %355 : vector<8x64xf32>
    %357 = arith.addf %352, %356 : vector<8x64xf32>
    %358 = vector.broadcast %10 : vector<8x1xf32> to vector<8x64xf32>
    %359 = arith.addf %357, %358 : vector<8x64xf32>
    %360 = arith.truncf %359 : vector<8x64xf32> to vector<8x64xbf16>
    %c36 = arith.constant 36 : index
    %361 = memref.load %arg0[%c36] : memref<72xf32, #tpu.memory_space<smem>>
    %c37 = arith.constant 37 : index
    %362 = memref.load %arg0[%c37] : memref<72xf32, #tpu.memory_space<smem>>
    %c38 = arith.constant 38 : index
    %363 = memref.load %arg0[%c38] : memref<72xf32, #tpu.memory_space<smem>>
    %c39 = arith.constant 39 : index
    %364 = memref.load %arg0[%c39] : memref<72xf32, #tpu.memory_space<smem>>
    %c40 = arith.constant 40 : index
    %365 = memref.load %arg0[%c40] : memref<72xf32, #tpu.memory_space<smem>>
    %c41 = arith.constant 41 : index
    %366 = memref.load %arg0[%c41] : memref<72xf32, #tpu.memory_space<smem>>
    %c42 = arith.constant 42 : index
    %367 = memref.load %arg0[%c42] : memref<72xf32, #tpu.memory_space<smem>>
    %c43 = arith.constant 43 : index
    %368 = memref.load %arg0[%c43] : memref<72xf32, #tpu.memory_space<smem>>
    %c44 = arith.constant 44 : index
    %369 = memref.load %arg0[%c44] : memref<72xf32, #tpu.memory_space<smem>>
    %c45 = arith.constant 45 : index
    %370 = memref.load %arg0[%c45] : memref<72xf32, #tpu.memory_space<smem>>
    %c46 = arith.constant 46 : index
    %371 = memref.load %arg0[%c46] : memref<72xf32, #tpu.memory_space<smem>>
    %c47 = arith.constant 47 : index
    %372 = memref.load %arg0[%c47] : memref<72xf32, #tpu.memory_space<smem>>
    %373 = vector.broadcast %361 : f32 to vector<1x512xf32>
    %374 = arith.mulf %373, %1 : vector<1x512xf32>
    %375 = vector.broadcast %362 : f32 to vector<1x512xf32>
    %376 = arith.mulf %375, %2 : vector<1x512xf32>
    %377 = arith.addf %374, %376 : vector<1x512xf32>
    %378 = vector.broadcast %363 : f32 to vector<1x512xf32>
    %379 = arith.mulf %378, %3 : vector<1x512xf32>
    %380 = arith.addf %377, %379 : vector<1x512xf32>
    %381 = vector.broadcast %364 : f32 to vector<1x512xf32>
    %382 = arith.mulf %381, %4 : vector<1x512xf32>
    %383 = arith.addf %380, %382 : vector<1x512xf32>
    %384 = vector.broadcast %365 : f32 to vector<1x512xf32>
    %385 = arith.mulf %384, %1 : vector<1x512xf32>
    %386 = vector.broadcast %366 : f32 to vector<1x512xf32>
    %387 = arith.mulf %386, %2 : vector<1x512xf32>
    %388 = arith.addf %385, %387 : vector<1x512xf32>
    %389 = vector.broadcast %367 : f32 to vector<1x512xf32>
    %390 = arith.mulf %389, %3 : vector<1x512xf32>
    %391 = arith.addf %388, %390 : vector<1x512xf32>
    %392 = vector.broadcast %368 : f32 to vector<1x512xf32>
    %393 = arith.mulf %392, %4 : vector<1x512xf32>
    %394 = arith.addf %391, %393 : vector<1x512xf32>
    %395 = vector.broadcast %369 : f32 to vector<1x512xf32>
    %396 = arith.mulf %395, %1 : vector<1x512xf32>
    %397 = vector.broadcast %370 : f32 to vector<1x512xf32>
    %398 = arith.mulf %397, %2 : vector<1x512xf32>
    %399 = arith.addf %396, %398 : vector<1x512xf32>
    %400 = vector.broadcast %371 : f32 to vector<1x512xf32>
    %401 = arith.mulf %400, %3 : vector<1x512xf32>
    %402 = arith.addf %399, %401 : vector<1x512xf32>
    %403 = vector.broadcast %372 : f32 to vector<1x512xf32>
    %404 = arith.mulf %403, %4 : vector<1x512xf32>
    %405 = arith.addf %402, %404 : vector<1x512xf32>
    %cst_65 = arith.constant 0.000000e+00 : f32
    %406 = vector.broadcast %cst_65 : f32 to vector<1x512xf32>
    %407 = arith.cmpf ogt, %405, %406 : vector<1x512xf32>
    %cst_66 = arith.constant 1.000000e+00 : f32
    %408 = vector.broadcast %cst_66 : f32 to vector<1x512xf32>
    %409 = arith.select %407, %405, %408 : vector<1x512xi1>, vector<1x512xf32>
    %cst_67 = arith.constant 1.000000e+00 : f32
    %410 = vector.broadcast %cst_67 : f32 to vector<1x512xf32>
    %411 = arith.divf %410, %409 : vector<1x512xf32>
    %412 = arith.mulf %383, %411 : vector<1x512xf32>
    %413 = math.roundeven %412 : vector<1x512xf32>
    %414 = arith.mulf %394, %411 : vector<1x512xf32>
    %415 = math.roundeven %414 : vector<1x512xf32>
    %cst_68 = arith.constant 0.000000e+00 : f32
    %416 = vector.broadcast %cst_68 : f32 to vector<1x512xf32>
    %417 = arith.cmpf oge, %413, %416 : vector<1x512xf32>
    %cst_69 = arith.constant 0.000000e+00 : f32
    %418 = vector.broadcast %cst_69 : f32 to vector<1x512xf32>
    %419 = arith.cmpf oge, %415, %418 : vector<1x512xf32>
    %420 = arith.andi %417, %419 : vector<1x512xi1>
    %cst_70 = arith.constant 8.000000e+00 : f32
    %421 = vector.broadcast %cst_70 : f32 to vector<1x512xf32>
    %422 = arith.cmpf olt, %413, %421 : vector<1x512xf32>
    %423 = arith.andi %420, %422 : vector<1x512xi1>
    %cst_71 = arith.constant 8.000000e+00 : f32
    %424 = vector.broadcast %cst_71 : f32 to vector<1x512xf32>
    %425 = arith.cmpf olt, %415, %424 : vector<1x512xf32>
    %426 = arith.andi %423, %425 : vector<1x512xi1>
    %cst_72 = arith.constant 0.000000e+00 : f32
    %427 = vector.broadcast %cst_72 : f32 to vector<1x512xf32>
    %428 = arith.cmpf ogt, %405, %427 : vector<1x512xf32>
    %429 = arith.andi %426, %428 : vector<1x512xi1>
    %cst_73 = arith.constant 8.000000e+00 : f32
    %430 = vector.broadcast %cst_73 : f32 to vector<1x512xf32>
    %431 = arith.mulf %415, %430 : vector<1x512xf32>
    %432 = arith.addf %431, %413 : vector<1x512xf32>
    %cst_74 = arith.constant -1.000000e+00 : f32
    %433 = vector.broadcast %cst_74 : f32 to vector<1x512xf32>
    %434 = arith.select %429, %432, %433 : vector<1x512xi1>, vector<1x512xf32>
    %435 = arith.fptosi %434 : vector<1x512xf32> to vector<1x512xi32>
    %436 = vector.broadcast %435 : vector<1x512xi32> to vector<64x512xi32>
    %437 = arith.cmpi eq, %5, %436 : vector<64x512xi32>
    %438 = arith.extui %437 : vector<64x512xi1> to vector<64x512xi32>
    %439 = arith.sitofp %438 : vector<64x512xi32> to vector<64x512xf32>
    %440 = arith.truncf %439 : vector<64x512xf32> to vector<64x512xbf16>
    %cst_75 = arith.constant dense<0.000000e+00> : vector<8x512xf32>
    %441 = tpu.matmul %360, %440, %cst_75 {dimension_numbers = #tpu.dot_dimension_numbers<[1], [0], [0], [1], [0, 0, 1, 1], [], []>} : vector<8x64xbf16>, vector<64x512xbf16>, vector<8x512xf32> -> vector<8x512xf32>
    %442 = arith.addf %340, %441 : vector<8x512xf32>
    %443 = arith.extui %429 : vector<1x512xi1> to vector<1x512xi32>
    %444 = arith.sitofp %443 : vector<1x512xi32> to vector<1x512xf32>
    %445 = arith.addf %341, %444 : vector<1x512xf32>
    %c1_76 = arith.constant 1 : index
    %c1_77 = arith.constant 1 : index
    %c0_78 = arith.constant 0 : index
    %c0_79 = arith.constant 0 : index
    %446 = vector.load %arg1[%c1_76, %c1_77, %c0_78, %c0_79] : memref<2x3x3x64xf32, #tpu.memory_space<vmem>>, vector<1x1x3x64xf32>
    %447 = vector.shape_cast %446 : vector<1x1x3x64xf32> to vector<3x64xf32>
    %448 = vector.extract_strided_slice %447 {offsets = [0, 0], sizes = [1, 64], strides = [1, 1]} : vector<3x64xf32> to vector<1x64xf32>
    %449 = vector.broadcast %7 : vector<8x1xf32> to vector<8x64xf32>
    %450 = vector.broadcast %448 : vector<1x64xf32> to vector<8x64xf32>
    %451 = arith.mulf %449, %450 : vector<8x64xf32>
    %452 = vector.extract_strided_slice %447 {offsets = [1, 0], sizes = [1, 64], strides = [1, 1]} : vector<3x64xf32> to vector<1x64xf32>
    %453 = vector.broadcast %8 : vector<8x1xf32> to vector<8x64xf32>
    %454 = vector.broadcast %452 : vector<1x64xf32> to vector<8x64xf32>
    %455 = arith.mulf %453, %454 : vector<8x64xf32>
    %456 = arith.addf %451, %455 : vector<8x64xf32>
    %457 = vector.extract_strided_slice %447 {offsets = [2, 0], sizes = [1, 64], strides = [1, 1]} : vector<3x64xf32> to vector<1x64xf32>
    %458 = vector.broadcast %9 : vector<8x1xf32> to vector<8x64xf32>
    %459 = vector.broadcast %457 : vector<1x64xf32> to vector<8x64xf32>
    %460 = arith.mulf %458, %459 : vector<8x64xf32>
    %461 = arith.addf %456, %460 : vector<8x64xf32>
    %462 = vector.broadcast %10 : vector<8x1xf32> to vector<8x64xf32>
    %463 = arith.addf %461, %462 : vector<8x64xf32>
    %464 = arith.truncf %463 : vector<8x64xf32> to vector<8x64xbf16>
    %c48 = arith.constant 48 : index
    %465 = memref.load %arg0[%c48] : memref<72xf32, #tpu.memory_space<smem>>
    %c49 = arith.constant 49 : index
    %466 = memref.load %arg0[%c49] : memref<72xf32, #tpu.memory_space<smem>>
    %c50 = arith.constant 50 : index
    %467 = memref.load %arg0[%c50] : memref<72xf32, #tpu.memory_space<smem>>
    %c51 = arith.constant 51 : index
    %468 = memref.load %arg0[%c51] : memref<72xf32, #tpu.memory_space<smem>>
    %c52 = arith.constant 52 : index
    %469 = memref.load %arg0[%c52] : memref<72xf32, #tpu.memory_space<smem>>
    %c53 = arith.constant 53 : index
    %470 = memref.load %arg0[%c53] : memref<72xf32, #tpu.memory_space<smem>>
    %c54 = arith.constant 54 : index
    %471 = memref.load %arg0[%c54] : memref<72xf32, #tpu.memory_space<smem>>
    %c55 = arith.constant 55 : index
    %472 = memref.load %arg0[%c55] : memref<72xf32, #tpu.memory_space<smem>>
    %c56 = arith.constant 56 : index
    %473 = memref.load %arg0[%c56] : memref<72xf32, #tpu.memory_space<smem>>
    %c57 = arith.constant 57 : index
    %474 = memref.load %arg0[%c57] : memref<72xf32, #tpu.memory_space<smem>>
    %c58 = arith.constant 58 : index
    %475 = memref.load %arg0[%c58] : memref<72xf32, #tpu.memory_space<smem>>
    %c59 = arith.constant 59 : index
    %476 = memref.load %arg0[%c59] : memref<72xf32, #tpu.memory_space<smem>>
    %477 = vector.broadcast %465 : f32 to vector<1x512xf32>
    %478 = arith.mulf %477, %1 : vector<1x512xf32>
    %479 = vector.broadcast %466 : f32 to vector<1x512xf32>
    %480 = arith.mulf %479, %2 : vector<1x512xf32>
    %481 = arith.addf %478, %480 : vector<1x512xf32>
    %482 = vector.broadcast %467 : f32 to vector<1x512xf32>
    %483 = arith.mulf %482, %3 : vector<1x512xf32>
    %484 = arith.addf %481, %483 : vector<1x512xf32>
    %485 = vector.broadcast %468 : f32 to vector<1x512xf32>
    %486 = arith.mulf %485, %4 : vector<1x512xf32>
    %487 = arith.addf %484, %486 : vector<1x512xf32>
    %488 = vector.broadcast %469 : f32 to vector<1x512xf32>
    %489 = arith.mulf %488, %1 : vector<1x512xf32>
    %490 = vector.broadcast %470 : f32 to vector<1x512xf32>
    %491 = arith.mulf %490, %2 : vector<1x512xf32>
    %492 = arith.addf %489, %491 : vector<1x512xf32>
    %493 = vector.broadcast %471 : f32 to vector<1x512xf32>
    %494 = arith.mulf %493, %3 : vector<1x512xf32>
    %495 = arith.addf %492, %494 : vector<1x512xf32>
    %496 = vector.broadcast %472 : f32 to vector<1x512xf32>
    %497 = arith.mulf %496, %4 : vector<1x512xf32>
    %498 = arith.addf %495, %497 : vector<1x512xf32>
    %499 = vector.broadcast %473 : f32 to vector<1x512xf32>
    %500 = arith.mulf %499, %1 : vector<1x512xf32>
    %501 = vector.broadcast %474 : f32 to vector<1x512xf32>
    %502 = arith.mulf %501, %2 : vector<1x512xf32>
    %503 = arith.addf %500, %502 : vector<1x512xf32>
    %504 = vector.broadcast %475 : f32 to vector<1x512xf32>
    %505 = arith.mulf %504, %3 : vector<1x512xf32>
    %506 = arith.addf %503, %505 : vector<1x512xf32>
    %507 = vector.broadcast %476 : f32 to vector<1x512xf32>
    %508 = arith.mulf %507, %4 : vector<1x512xf32>
    %509 = arith.addf %506, %508 : vector<1x512xf32>
    %cst_80 = arith.constant 0.000000e+00 : f32
    %510 = vector.broadcast %cst_80 : f32 to vector<1x512xf32>
    %511 = arith.cmpf ogt, %509, %510 : vector<1x512xf32>
    %cst_81 = arith.constant 1.000000e+00 : f32
    %512 = vector.broadcast %cst_81 : f32 to vector<1x512xf32>
    %513 = arith.select %511, %509, %512 : vector<1x512xi1>, vector<1x512xf32>
    %cst_82 = arith.constant 1.000000e+00 : f32
    %514 = vector.broadcast %cst_82 : f32 to vector<1x512xf32>
    %515 = arith.divf %514, %513 : vector<1x512xf32>
    %516 = arith.mulf %487, %515 : vector<1x512xf32>
    %517 = math.roundeven %516 : vector<1x512xf32>
    %518 = arith.mulf %498, %515 : vector<1x512xf32>
    %519 = math.roundeven %518 : vector<1x512xf32>
    %cst_83 = arith.constant 0.000000e+00 : f32
    %520 = vector.broadcast %cst_83 : f32 to vector<1x512xf32>
    %521 = arith.cmpf oge, %517, %520 : vector<1x512xf32>
    %cst_84 = arith.constant 0.000000e+00 : f32
    %522 = vector.broadcast %cst_84 : f32 to vector<1x512xf32>
    %523 = arith.cmpf oge, %519, %522 : vector<1x512xf32>
    %524 = arith.andi %521, %523 : vector<1x512xi1>
    %cst_85 = arith.constant 8.000000e+00 : f32
    %525 = vector.broadcast %cst_85 : f32 to vector<1x512xf32>
    %526 = arith.cmpf olt, %517, %525 : vector<1x512xf32>
    %527 = arith.andi %524, %526 : vector<1x512xi1>
    %cst_86 = arith.constant 8.000000e+00 : f32
    %528 = vector.broadcast %cst_86 : f32 to vector<1x512xf32>
    %529 = arith.cmpf olt, %519, %528 : vector<1x512xf32>
    %530 = arith.andi %527, %529 : vector<1x512xi1>
    %cst_87 = arith.constant 0.000000e+00 : f32
    %531 = vector.broadcast %cst_87 : f32 to vector<1x512xf32>
    %532 = arith.cmpf ogt, %509, %531 : vector<1x512xf32>
    %533 = arith.andi %530, %532 : vector<1x512xi1>
    %cst_88 = arith.constant 8.000000e+00 : f32
    %534 = vector.broadcast %cst_88 : f32 to vector<1x512xf32>
    %535 = arith.mulf %519, %534 : vector<1x512xf32>
    %536 = arith.addf %535, %517 : vector<1x512xf32>
    %cst_89 = arith.constant -1.000000e+00 : f32
    %537 = vector.broadcast %cst_89 : f32 to vector<1x512xf32>
    %538 = arith.select %533, %536, %537 : vector<1x512xi1>, vector<1x512xf32>
    %539 = arith.fptosi %538 : vector<1x512xf32> to vector<1x512xi32>
    %540 = vector.broadcast %539 : vector<1x512xi32> to vector<64x512xi32>
    %541 = arith.cmpi eq, %5, %540 : vector<64x512xi32>
    %542 = arith.extui %541 : vector<64x512xi1> to vector<64x512xi32>
    %543 = arith.sitofp %542 : vector<64x512xi32> to vector<64x512xf32>
    %544 = arith.truncf %543 : vector<64x512xf32> to vector<64x512xbf16>
    %cst_90 = arith.constant dense<0.000000e+00> : vector<8x512xf32>
    %545 = tpu.matmul %464, %544, %cst_90 {dimension_numbers = #tpu.dot_dimension_numbers<[1], [0], [0], [1], [0, 0, 1, 1], [], []>} : vector<8x64xbf16>, vector<64x512xbf16>, vector<8x512xf32> -> vector<8x512xf32>
    %546 = arith.addf %442, %545 : vector<8x512xf32>
    %547 = arith.extui %533 : vector<1x512xi1> to vector<1x512xi32>
    %548 = arith.sitofp %547 : vector<1x512xi32> to vector<1x512xf32>
    %549 = arith.addf %445, %548 : vector<1x512xf32>
    %c1_91 = arith.constant 1 : index
    %c2_92 = arith.constant 2 : index
    %c0_93 = arith.constant 0 : index
    %c0_94 = arith.constant 0 : index
    %550 = vector.load %arg1[%c1_91, %c2_92, %c0_93, %c0_94] : memref<2x3x3x64xf32, #tpu.memory_space<vmem>>, vector<1x1x3x64xf32>
    %551 = vector.shape_cast %550 : vector<1x1x3x64xf32> to vector<3x64xf32>
    %552 = vector.extract_strided_slice %551 {offsets = [0, 0], sizes = [1, 64], strides = [1, 1]} : vector<3x64xf32> to vector<1x64xf32>
    %553 = vector.broadcast %7 : vector<8x1xf32> to vector<8x64xf32>
    %554 = vector.broadcast %552 : vector<1x64xf32> to vector<8x64xf32>
    %555 = arith.mulf %553, %554 : vector<8x64xf32>
    %556 = vector.extract_strided_slice %551 {offsets = [1, 0], sizes = [1, 64], strides = [1, 1]} : vector<3x64xf32> to vector<1x64xf32>
    %557 = vector.broadcast %8 : vector<8x1xf32> to vector<8x64xf32>
    %558 = vector.broadcast %556 : vector<1x64xf32> to vector<8x64xf32>
    %559 = arith.mulf %557, %558 : vector<8x64xf32>
    %560 = arith.addf %555, %559 : vector<8x64xf32>
    %561 = vector.extract_strided_slice %551 {offsets = [2, 0], sizes = [1, 64], strides = [1, 1]} : vector<3x64xf32> to vector<1x64xf32>
    %562 = vector.broadcast %9 : vector<8x1xf32> to vector<8x64xf32>
    %563 = vector.broadcast %561 : vector<1x64xf32> to vector<8x64xf32>
    %564 = arith.mulf %562, %563 : vector<8x64xf32>
    %565 = arith.addf %560, %564 : vector<8x64xf32>
    %566 = vector.broadcast %10 : vector<8x1xf32> to vector<8x64xf32>
    %567 = arith.addf %565, %566 : vector<8x64xf32>
    %568 = arith.truncf %567 : vector<8x64xf32> to vector<8x64xbf16>
    %c60 = arith.constant 60 : index
    %569 = memref.load %arg0[%c60] : memref<72xf32, #tpu.memory_space<smem>>
    %c61 = arith.constant 61 : index
    %570 = memref.load %arg0[%c61] : memref<72xf32, #tpu.memory_space<smem>>
    %c62 = arith.constant 62 : index
    %571 = memref.load %arg0[%c62] : memref<72xf32, #tpu.memory_space<smem>>
    %c63 = arith.constant 63 : index
    %572 = memref.load %arg0[%c63] : memref<72xf32, #tpu.memory_space<smem>>
    %c64 = arith.constant 64 : index
    %573 = memref.load %arg0[%c64] : memref<72xf32, #tpu.memory_space<smem>>
    %c65 = arith.constant 65 : index
    %574 = memref.load %arg0[%c65] : memref<72xf32, #tpu.memory_space<smem>>
    %c66 = arith.constant 66 : index
    %575 = memref.load %arg0[%c66] : memref<72xf32, #tpu.memory_space<smem>>
    %c67 = arith.constant 67 : index
    %576 = memref.load %arg0[%c67] : memref<72xf32, #tpu.memory_space<smem>>
    %c68 = arith.constant 68 : index
    %577 = memref.load %arg0[%c68] : memref<72xf32, #tpu.memory_space<smem>>
    %c69 = arith.constant 69 : index
    %578 = memref.load %arg0[%c69] : memref<72xf32, #tpu.memory_space<smem>>
    %c70 = arith.constant 70 : index
    %579 = memref.load %arg0[%c70] : memref<72xf32, #tpu.memory_space<smem>>
    %c71 = arith.constant 71 : index
    %580 = memref.load %arg0[%c71] : memref<72xf32, #tpu.memory_space<smem>>
    %581 = vector.broadcast %569 : f32 to vector<1x512xf32>
    %582 = arith.mulf %581, %1 : vector<1x512xf32>
    %583 = vector.broadcast %570 : f32 to vector<1x512xf32>
    %584 = arith.mulf %583, %2 : vector<1x512xf32>
    %585 = arith.addf %582, %584 : vector<1x512xf32>
    %586 = vector.broadcast %571 : f32 to vector<1x512xf32>
    %587 = arith.mulf %586, %3 : vector<1x512xf32>
    %588 = arith.addf %585, %587 : vector<1x512xf32>
    %589 = vector.broadcast %572 : f32 to vector<1x512xf32>
    %590 = arith.mulf %589, %4 : vector<1x512xf32>
    %591 = arith.addf %588, %590 : vector<1x512xf32>
    %592 = vector.broadcast %573 : f32 to vector<1x512xf32>
    %593 = arith.mulf %592, %1 : vector<1x512xf32>
    %594 = vector.broadcast %574 : f32 to vector<1x512xf32>
    %595 = arith.mulf %594, %2 : vector<1x512xf32>
    %596 = arith.addf %593, %595 : vector<1x512xf32>
    %597 = vector.broadcast %575 : f32 to vector<1x512xf32>
    %598 = arith.mulf %597, %3 : vector<1x512xf32>
    %599 = arith.addf %596, %598 : vector<1x512xf32>
    %600 = vector.broadcast %576 : f32 to vector<1x512xf32>
    %601 = arith.mulf %600, %4 : vector<1x512xf32>
    %602 = arith.addf %599, %601 : vector<1x512xf32>
    %603 = vector.broadcast %577 : f32 to vector<1x512xf32>
    %604 = arith.mulf %603, %1 : vector<1x512xf32>
    %605 = vector.broadcast %578 : f32 to vector<1x512xf32>
    %606 = arith.mulf %605, %2 : vector<1x512xf32>
    %607 = arith.addf %604, %606 : vector<1x512xf32>
    %608 = vector.broadcast %579 : f32 to vector<1x512xf32>
    %609 = arith.mulf %608, %3 : vector<1x512xf32>
    %610 = arith.addf %607, %609 : vector<1x512xf32>
    %611 = vector.broadcast %580 : f32 to vector<1x512xf32>
    %612 = arith.mulf %611, %4 : vector<1x512xf32>
    %613 = arith.addf %610, %612 : vector<1x512xf32>
    %cst_95 = arith.constant 0.000000e+00 : f32
    %614 = vector.broadcast %cst_95 : f32 to vector<1x512xf32>
    %615 = arith.cmpf ogt, %613, %614 : vector<1x512xf32>
    %cst_96 = arith.constant 1.000000e+00 : f32
    %616 = vector.broadcast %cst_96 : f32 to vector<1x512xf32>
    %617 = arith.select %615, %613, %616 : vector<1x512xi1>, vector<1x512xf32>
    %cst_97 = arith.constant 1.000000e+00 : f32
    %618 = vector.broadcast %cst_97 : f32 to vector<1x512xf32>
    %619 = arith.divf %618, %617 : vector<1x512xf32>
    %620 = arith.mulf %591, %619 : vector<1x512xf32>
    %621 = math.roundeven %620 : vector<1x512xf32>
    %622 = arith.mulf %602, %619 : vector<1x512xf32>
    %623 = math.roundeven %622 : vector<1x512xf32>
    %cst_98 = arith.constant 0.000000e+00 : f32
    %624 = vector.broadcast %cst_98 : f32 to vector<1x512xf32>
    %625 = arith.cmpf oge, %621, %624 : vector<1x512xf32>
    %cst_99 = arith.constant 0.000000e+00 : f32
    %626 = vector.broadcast %cst_99 : f32 to vector<1x512xf32>
    %627 = arith.cmpf oge, %623, %626 : vector<1x512xf32>
    %628 = arith.andi %625, %627 : vector<1x512xi1>
    %cst_100 = arith.constant 8.000000e+00 : f32
    %629 = vector.broadcast %cst_100 : f32 to vector<1x512xf32>
    %630 = arith.cmpf olt, %621, %629 : vector<1x512xf32>
    %631 = arith.andi %628, %630 : vector<1x512xi1>
    %cst_101 = arith.constant 8.000000e+00 : f32
    %632 = vector.broadcast %cst_101 : f32 to vector<1x512xf32>
    %633 = arith.cmpf olt, %623, %632 : vector<1x512xf32>
    %634 = arith.andi %631, %633 : vector<1x512xi1>
    %cst_102 = arith.constant 0.000000e+00 : f32
    %635 = vector.broadcast %cst_102 : f32 to vector<1x512xf32>
    %636 = arith.cmpf ogt, %613, %635 : vector<1x512xf32>
    %637 = arith.andi %634, %636 : vector<1x512xi1>
    %cst_103 = arith.constant 8.000000e+00 : f32
    %638 = vector.broadcast %cst_103 : f32 to vector<1x512xf32>
    %639 = arith.mulf %623, %638 : vector<1x512xf32>
    %640 = arith.addf %639, %621 : vector<1x512xf32>
    %cst_104 = arith.constant -1.000000e+00 : f32
    %641 = vector.broadcast %cst_104 : f32 to vector<1x512xf32>
    %642 = arith.select %637, %640, %641 : vector<1x512xi1>, vector<1x512xf32>
    %643 = arith.fptosi %642 : vector<1x512xf32> to vector<1x512xi32>
    %644 = vector.broadcast %643 : vector<1x512xi32> to vector<64x512xi32>
    %645 = arith.cmpi eq, %5, %644 : vector<64x512xi32>
    %646 = arith.extui %645 : vector<64x512xi1> to vector<64x512xi32>
    %647 = arith.sitofp %646 : vector<64x512xi32> to vector<64x512xf32>
    %648 = arith.truncf %647 : vector<64x512xf32> to vector<64x512xbf16>
    %cst_105 = arith.constant dense<0.000000e+00> : vector<8x512xf32>
    %649 = tpu.matmul %568, %648, %cst_105 {dimension_numbers = #tpu.dot_dimension_numbers<[1], [0], [0], [1], [0, 0, 1, 1], [], []>} : vector<8x64xbf16>, vector<64x512xbf16>, vector<8x512xf32> -> vector<8x512xf32>
    %650 = arith.addf %546, %649 : vector<8x512xf32>
    %651 = arith.extui %637 : vector<1x512xi1> to vector<1x512xi32>
    %652 = arith.sitofp %651 : vector<1x512xi32> to vector<1x512xf32>
    %653 = arith.addf %549, %652 : vector<1x512xf32>
    %cst_106 = arith.constant 0.000000e+00 : f32
    %654 = vector.broadcast %cst_106 : f32 to vector<1x512xf32>
    %655 = arith.cmpf ogt, %653, %654 : vector<1x512xf32>
    %cst_107 = arith.constant 1.000000e+00 : f32
    %656 = vector.broadcast %cst_107 : f32 to vector<1x512xf32>
    %657 = arith.select %655, %653, %656 : vector<1x512xi1>, vector<1x512xf32>
    %658 = tpu.reciprocal %657 {approx = true} : vector<1x512xf32> -> vector<1x512xf32>
    %cst_108 = arith.constant 0.000000e+00 : f32
    %659 = vector.broadcast %cst_108 : f32 to vector<1x512xf32>
    %660 = arith.select %655, %658, %659 : vector<1x512xi1>, vector<1x512xf32>
    %661 = vector.broadcast %660 : vector<1x512xf32> to vector<8x512xf32>
    %662 = arith.mulf %650, %661 : vector<8x512xf32>
    %c1_109 = arith.constant 1 : index
    %c0_110 = arith.constant 0 : index
    %c0_111 = arith.constant 0 : index
    %663 = vector.load %arg4[%c1_109, %c0_110, %c0_111] : memref<2x8x512xf32, #tpu.memory_space<vmem>>, vector<1x8x512xf32>
    %664 = vector.shape_cast %663 : vector<1x8x512xf32> to vector<8x512xf32>
    %665 = vector.shape_cast %662 : vector<8x512xf32> to vector<1x8x512xf32>
    tpu.vector_store %arg4[%c1_109, %c0_110, %c0_111], %665 {strides = array<i32>} : memref<2x8x512xf32, #tpu.memory_space<vmem>>, vector<1x8x512xf32>,
    %c1_112 = arith.constant 1 : index
    %c0_113 = arith.constant 0 : index
    %c0_114 = arith.constant 0 : index
    %666 = vector.load %arg5[%c1_112, %c0_113, %c0_114] : memref<2x1x512xf32, #tpu.memory_space<vmem>>, vector<1x1x512xf32>
    %667 = vector.shape_cast %666 : vector<1x1x512xf32> to vector<1x512xf32>
    %668 = vector.shape_cast %653 : vector<1x512xf32> to vector<1x1x512xf32>
    tpu.vector_store %arg5[%c1_112, %c0_113, %c0_114], %668 {strides = array<i32>} : memref<2x1x512xf32, #tpu.memory_space<vmem>>, vector<1x1x512xf32>,
    return
  }
}

</mosaic_0001>

<llo_original>
// kernel: _lambda_.1
$region0: #{_lambda_.1}
  #allocation0 [shape = 'u32[]', space=smem, size = 0x4, offset = 0x4, fixed_abs, tag = 'smem constant byte address 0x4 - core index']
  #allocation1 [shape = 'u32[144,128]{1,0:T(1,128)}', space=vmem, size = 0x12000, scoped, tag = 'internal scratch']
  %s0 = inlined_call_operand.vmem [shape: f32[72], index: 0, kind: input, shape index: {}]
  %s1 = inlined_call_operand.vmem [shape: f32[2,3,3,64], index: 1, kind: input, shape index: {}]
  %s2 = inlined_call_operand.vmem [shape: f32[8,4], index: 2, kind: input, shape index: {}]
  %s3 = inlined_call_operand.vmem [shape: f32[4,512], index: 3, kind: input, shape index: {}]
  %s4 = inlined_call_operand.vmem [shape: f32[2,8,512], index: 4, kind: output, shape index: {0}]
  %s5 = inlined_call_operand.vmem [shape: f32[2,1,512], index: 5, kind: output, shape index: {1}]
  %6 = xla_tuple %s4, %s5
  %s7 = sld [smem:[#allocation0]]
  $region38: #{_lambda_.1} parent=0
    _
  %s9 = ssub.s32 1, %s7
  %s10 = scalar_select 0, %s9, %s7
  $region1: #{_lambda_.1} parent=0
    #allocation2 [shape = 'u8[512]{0}', space=smem, size = 0x200, scoped, tag = 'input window, operand 0, single buffered']
    #allocation3 [shape = 's32[1]{0}', space=sflag, size = 0x4, scoped, tag = 'scoped memory for _lambda_.1']
    %11 = vsyncpa [#allocation3], 0
    // Predicated region
    $region2: #{_lambda_.1} parent=1 // pred_check
      _
    $region3: #{_lambda_.1} parent=1 // pred_check_branch
      %13 = sbr.rel (0) target = $region5
    $region4: #{_lambda_.1} parent=1 // pred_region
      %s15 = ssub.s32 16, 16
      %16 = vsyncadd [#allocation3], %s15
      %s18 = sshll.u32 %s0, 4
      %s19 = int_to_ptr.vmem [resolvable:$true] %s18
      %21 = dma.vmem_to_smem %s19, 16, [#allocation2], [#allocation3]
    $region5: #{_lambda_.1} parent=1 // pred_fallthru
      _
    // Predicated region
    $region6: #{_lambda_.1} parent=1 // pred_check
      _
    $region7: #{_lambda_.1} parent=1 // pred_check_branch
      %23 = sbr.rel (0) target = $region9
    $region8: #{_lambda_.1} parent=1 // pred_region
      _
    $region9: #{_lambda_.1} parent=1 // pred_fallthru
      _
    // Predicated region
    $region10: #{_lambda_.1} parent=1 // pred_check
      _
    $region11: #{_lambda_.1} parent=1 // pred_check_branch
      %25 = sbr.rel (0) target = $region13
    $region12: #{_lambda_.1} parent=1 // pred_region
      _
    $region13: #{_lambda_.1} parent=1 // pred_fallthru
      _
    // Predicated region
    $region14: #{_lambda_.1} parent=1 // pred_check
      _
    $region15: #{_lambda_.1} parent=1 // pred_check_branch
      %27 = sbr.rel (0) target = $region17
    $region16: #{_lambda_.1} parent=1 // pred_region
      _
    $region17: #{_lambda_.1} parent=1 // pred_fallthru
      _
    // Predicated region
    $region18: #{_lambda_.1} parent=1 // pred_check
      _
    $region19: #{_lambda_.1} parent=1 // pred_check_branch
      %29 = sbr.rel (0) target = $region21
    $region20: #{_lambda_.1} parent=1 // pred_region
      %30 = dma.done [#allocation3], 16
    $region21: #{_lambda_.1} parent=1 // pred_fallthru
      _
    %31 = sfence
    %v33 = vld [vmem:[%s3] sm:$0xff]
    %v34 = vld [vmem:[%s3 + $0x8] sm:$0xff]
    %v35 = vlaneseq
    %v36 = vshrl.u32 %v35, 7
    %v37 = vadd.s32 %v36, 8
    %v38 = vadd.s32 %v36, 16
    %v39 = vadd.s32 %v36, 24
    %v40 = vadd.s32 %v36, 32
    %v41 = vadd.s32 %v36, 40
    %v42 = vadd.s32 %v36, 48
    %v43 = vadd.s32 %v36, 56
    %v44 = vld [vmem:[%s2] sm:$0xff]
    %v45 = vld [vmem:[%s1] sm:$0x7]
    %47 = vset.pattern.permute.xlu0 0
    %48 = vperm.xlu0 %47, %v44
    %v49 = vpop.permute.xlu0 %48
    %v51 = vlaneseq
    %v52 = vshrl.u32 %v51, 7
    %v53 = vsub.s32 0, %v52
    %v54 = vrot.slane %v45, %v53
    %v55 = vmul.f32 %v49, %v54
    %56 = vset.pattern.permute.xlu0 1
    %57 = vperm.xlu0 %56, %v44
    %v58 = vpop.permute.xlu0 %57
    %v60 = vlaneseq
    %v61 = vshrl.u32 %v60, 7
    %v62 = vsub.s32 1, %v61
    %v63 = vrot.slane %v45, %v62
    %v64 = vmul.f32 %v58, %v63
    %v65 = vadd.f32 %v55, %v64
    %66 = vset.pattern.permute.xlu0 2
    %67 = vperm.xlu0 %66, %v44
    %v68 = vpop.permute.xlu0 %67
    %v70 = vlaneseq
    %v71 = vshrl.u32 %v70, 7
    %v72 = vsub.s32 2, %v71
    %v73 = vrot.slane %v45, %v72
    %v74 = vmul.f32 %v68, %v73
    %v75 = vadd.f32 %v65, %v74
    %76 = vset.pattern.permute.xlu0 3
    %77 = vperm.xlu0 %76, %v44
    %v78 = vpop.permute.xlu0 %77
    %v80 = vadd.f32 %v75, %v78
    %v81 = vpack.c.bf16 %v80, %v80
    %s82 = sld [smem:[#allocation2]]
    %s83 = sld [smem:[#allocation2 + $0x1]]
    %s84 = sld [smem:[#allocation2 + $0x2]]
    %s85 = sld [smem:[#allocation2 + $0x3]]
    %s86 = sld [smem:[#allocation2 + $0x4]]
    %s87 = sld [smem:[#allocation2 + $0x5]]
    %s88 = sld [smem:[#allocation2 + $0x6]]
    %s89 = sld [smem:[#allocation2 + $0x7]]
    %s90 = sld [smem:[#allocation2 + $0x8]]
    %s91 = sld [smem:[#allocation2 + $0x9]]
    %s92 = sld [smem:[#allocation2 + $0xa]]
    %s93 = sld [smem:[#allocation2 + $0xb]]
    %v94 = vstv %s82
    %v95 = vmul.f32 %v94, %v33
    %v96 = vmul.f32 %v94, %v34
    %v97 = vstv %s83
    %v98 = vmul.f32 %v97, %v33
    %v99 = vmul.f32 %v97, %v34
    %v102 = vrot.slane %v98, 5
    %v103 = vrot.slane %v102, 4
    %v104 = vrot.slane %v99, 5
    %v105 = vrot.slane %v104, 4
    %v108 = vadd.f32 %v95, %v103
    %v109 = vadd.f32 %v96, %v105
    %v110 = vstv %s84
    %v111 = vmul.f32 %v110, %v33
    %v112 = vmul.f32 %v110, %v34
    %v115 = vrot.slane %v111, 6
    %v116 = vrot.slane %v115, 4
    %v117 = vrot.slane %v112, 6
    %v118 = vrot.slane %v117, 4
    %v121 = vadd.f32 %v108, %v116
    %v122 = vadd.f32 %v109, %v118
    %v123 = vstv %s85
    %v124 = vmul.f32 %v123, %v33
    %v125 = vmul.f32 %v123, %v34
    %v128 = vrot.slane %v124, 7
    %v129 = vrot.slane %v128, 4
    %v130 = vrot.slane %v125, 7
    %v131 = vrot.slane %v130, 4
    %v134 = vadd.f32 %v121, %v129
    %v135 = vadd.f32 %v122, %v131
    %v136 = vstv %s86
    %v137 = vmul.f32 %v136, %v33
    %v138 = vmul.f32 %v136, %v34
    %v139 = vstv %s87
    %v140 = vmul.f32 %v139, %v33
    %v141 = vmul.f32 %v139, %v34
    %v144 = vrot.slane %v140, 5
    %v145 = vrot.slane %v144, 4
    %v146 = vrot.slane %v141, 5
    %v147 = vrot.slane %v146, 4
    %v150 = vadd.f32 %v137, %v145
    %v151 = vadd.f32 %v138, %v147
    %v152 = vstv %s88
    %v153 = vmul.f32 %v152, %v33
    %v154 = vmul.f32 %v152, %v34
    %v157 = vrot.slane %v153, 6
    %v158 = vrot.slane %v157, 4
    %v159 = vrot.slane %v154, 6
    %v160 = vrot.slane %v159, 4
    %v163 = vadd.f32 %v150, %v158
    %v164 = vadd.f32 %v151, %v160
    %v165 = vstv %s89
    %v166 = vmul.f32 %v165, %v33
    %v167 = vmul.f32 %v165, %v34
    %v170 = vrot.slane %v166, 7
    %v171 = vrot.slane %v170, 4
    %v172 = vrot.slane %v167, 7
    %v173 = vrot.slane %v172, 4
    %v176 = vadd.f32 %v163, %v171
    %v177 = vadd.f32 %v164, %v173
    %v178 = vstv %s90
    %v179 = vmul.f32 %v178, %v33
    %v180 = vmul.f32 %v178, %v34
    %v181 = vstv %s91
    %v182 = vmul.f32 %v181, %v33
    %v183 = vmul.f32 %v181, %v34
    %v186 = vrot.slane %v182, 5
    %v187 = vrot.slane %v186, 4
    %v188 = vrot.slane %v183, 5
    %v189 = vrot.slane %v188, 4
    %v192 = vadd.f32 %v179, %v187
    %v193 = vadd.f32 %v180, %v189
    %v194 = vstv %s92
    %v195 = vmul.f32 %v194, %v33
    %v196 = vmul.f32 %v194, %v34
    %v199 = vrot.slane %v195, 6
    %v200 = vrot.slane %v199, 4
    %v201 = vrot.slane %v196, 6
    %v202 = vrot.slane %v201, 4
    %v205 = vadd.f32 %v192, %v200
    %v206 = vadd.f32 %v193, %v202
    %v207 = vstv %s93
    %v208 = vmul.f32 %v207, %v33
    %v209 = vmul.f32 %v207, %v34
    %v212 = vrot.slane %v208, 7
    %v213 = vrot.slane %v212, 4
    %v214 = vrot.slane %v209, 7
    %v215 = vrot.slane %v214, 4
    %v218 = vadd.f32 %v205, %v213
    %v219 = vadd.f32 %v206, %v215
    %vm220 = vcmp.gt.f32.partialorder %v218, 0.0
    %vm221 = vcmp.gt.f32.partialorder %v219, 0.0
    %v222 = vsel %vm220, %v218, 1.0
    %v223 = vsel %vm221, %v219, 1.0
    %v224 = vrcp.pop %v222
    %v225 = vmul.f32 1.0, %v224
    %v226 = vrcp.pop %v223
    %v227 = vmul.f32 1.0, %v226
    %v228 = vmul.f32 %v134, %v225
    %v229 = vmul.f32 %v135, %v227
    %v230 = vround.ne.pseudo %v228
    %v231 = vround.ne.pseudo %v229
    %v232 = vmul.f32 %v176, %v225
    %v233 = vmul.f32 %v177, %v227
    %v234 = vround.ne.pseudo %v232
    %v235 = vround.ne.pseudo %v233
    %vm236 = vcmp.ge.f32.partialorder %v230, 0.0
    %vm237 = vcmp.ge.f32.partialorder %v231, 0.0
    %vm238 = vcmp.ge.f32.partialorder %v234, 0.0
    %vm239 = vcmp.ge.f32.partialorder %v235, 0.0
    %vm240 = vmand %vm236, %vm238
    %vm241 = vmand %vm237, %vm239
    %vm242 = vcmp.lt.f32.partialorder %v230, 8.0
    %vm243 = vcmp.lt.f32.partialorder %v231, 8.0
    %vm244 = vmand %vm240, %vm242
    %vm245 = vmand %vm241, %vm243
    %vm246 = vcmp.lt.f32.partialorder %v234, 8.0
    %vm247 = vcmp.lt.f32.partialorder %v235, 8.0
    %vm248 = vmand %vm244, %vm246
    %vm249 = vmand %vm245, %vm247
    %vm250 = vmand %vm248, %vm220
    %vm251 = vmand %vm249, %vm221
    %v252 = vmul.f32 %v234, 8.0
    %v253 = vmul.f32 %v235, 8.0
    %v254 = vadd.f32 %v252, %v230
    %v255 = vadd.f32 %v253, %v231
    %v256 = vsel %vm250, %v254, -1.0
    %v257 = vsel %vm251, %v255, -1.0
    %v258 = vcvt.f32.s32.to.zero.pseudo %v256
    %v259 = vcvt.f32.s32.to.zero.pseudo %v257
    %v260 = vlaneseq
    %v261 = vshrl.u32 %v260, 7
    %v262 = vsub.s32 0, %v261
    %v263 = vrot.slane %v258, %v262
    %v264 = vlaneseq
    %v265 = vshrl.u32 %v264, 7
    %v266 = vsub.s32 4, %v265
    %v267 = vrot.slane %v258, %v266
    %v268 = vlaneseq
    %v269 = vshrl.u32 %v268, 7
    %v270 = vsub.s32 0, %v269
    %v271 = vrot.slane %v259, %v270
    %v272 = vlaneseq
    %v273 = vshrl.u32 %v272, 7
    %v274 = vsub.s32 4, %v273
    %v275 = vrot.slane %v259, %v274
    %v276 = vlaneseq
    %v277 = vshrl.u32 %v276, 7
    %v278 = vsub.s32 0, %v277
    %v279 = vrot.slane %v263, %v278
    %v280 = vlaneseq
    %v281 = vshrl.u32 %v280, 7
    %v282 = vsub.s32 0, %v281
    %v283 = vrot.slane %v267, %v282
    %v284 = vlaneseq
    %v285 = vshrl.u32 %v284, 7
    %v286 = vsub.s32 0, %v285
    %v287 = vrot.slane %v271, %v286
    %v288 = vlaneseq
    %v289 = vshrl.u32 %v288, 7
    %v290 = vsub.s32 0, %v289
    %v291 = vrot.slane %v275, %v290
    %vm292 = vcmp.eq.s32.totalorder %v36, %v279
    %vm293 = vcmp.eq.s32.totalorder %v36, %v283
    %vm294 = vcmp.eq.s32.totalorder %v36, %v287
    %vm295 = vcmp.eq.s32.totalorder %v36, %v291
    %vm296 = vcmp.eq.s32.totalorder %v37, %v279
    %vm297 = vcmp.eq.s32.totalorder %v37, %v283
    %vm298 = vcmp.eq.s32.totalorder %v37, %v287
    %vm299 = vcmp.eq.s32.totalorder %v37, %v291
    %vm300 = vcmp.eq.s32.totalorder %v38, %v279
    %vm301 = vcmp.eq.s32.totalorder %v38, %v283
    %vm302 = vcmp.eq.s32.totalorder %v38, %v287
    %vm303 = vcmp.eq.s32.totalorder %v38, %v291
    %vm304 = vcmp.eq.s32.totalorder %v39, %v279
    %vm305 = vcmp.eq.s32.totalorder %v39, %v283
    %vm306 = vcmp.eq.s32.totalorder %v39, %v287
    %vm307 = vcmp.eq.s32.totalorder %v39, %v291
    %vm308 = vcmp.eq.s32.totalorder %v40, %v279
    %vm309 = vcmp.eq.s32.totalorder %v40, %v283
    %vm310 = vcmp.eq.s32.totalorder %v40, %v287
    %vm311 = vcmp.eq.s32.totalorder %v40, %v291
    %vm312 = vcmp.eq.s32.totalorder %v41, %v279
    %vm313 = vcmp.eq.s32.totalorder %v41, %v283
    %vm314 = vcmp.eq.s32.totalorder %v41, %v287
    %vm315 = vcmp.eq.s32.totalorder %v41, %v291
    %vm316 = vcmp.eq.s32.totalorder %v42, %v279
    %vm317 = vcmp.eq.s32.totalorder %v42, %v283
    %vm318 = vcmp.eq.s32.totalorder %v42, %v287
    %vm319 = vcmp.eq.s32.totalorder %v42, %v291
    %vm320 = vcmp.eq.s32.totalorder %v43, %v279
    %vm321 = vcmp.eq.s32.totalorder %v43, %v283
    %vm322 = vcmp.eq.s32.totalorder %v43, %v287
    %vm323 = vcmp.eq.s32.totalorder %v43, %v291
    %v324 = vsel %vm292, 1, 0
    %v325 = vsel %vm293, 1, 0
    %v326 = vsel %vm294, 1, 0
    %v327 = vsel %vm295, 1, 0
    %v328 = vsel %vm296, 1, 0
    %v329 = vsel %vm297, 1, 0
    %v330 = vsel %vm298, 1, 0
    %v331 = vsel %vm299, 1, 0
    %v332 = vsel %vm300, 1, 0
    %v333 = vsel %vm301, 1, 0
    %v334 = vsel %vm302, 1, 0
    %v335 = vsel %vm303, 1, 0
    %v336 = vsel %vm304, 1, 0
    %v337 = vsel %vm305, 1, 0
    %v338 = vsel %vm306, 1, 0
    %v339 = vsel %vm307, 1, 0
    %v340 = vsel %vm308, 1, 0
    %v341 = vsel %vm309, 1, 0
    %v342 = vsel %vm310, 1, 0
    %v343 = vsel %vm311, 1, 0
    %v344 = vsel %vm312, 1, 0
    %v345 = vsel %vm313, 1, 0
    %v346 = vsel %vm314, 1, 0
    %v347 = vsel %vm315, 1, 0
    %v348 = vsel %vm316, 1, 0
    %v349 = vsel %vm317, 1, 0
    %v350 = vsel %vm318, 1, 0
    %v351 = vsel %vm319, 1, 0
    %v352 = vsel %vm320, 1, 0
    %v353 = vsel %vm321, 1, 0
    %v354 = vsel %vm322, 1, 0
    %v355 = vsel %vm323, 1, 0
    %v356 = vcvt.s32.f32 %v324
    %v357 = vcvt.s32.f32 %v325
    %v358 = vcvt.s32.f32 %v326
    %v359 = vcvt.s32.f32 %v327
    %v360 = vcvt.s32.f32 %v328
    %v361 = vcvt.s32.f32 %v329
    %v362 = vcvt.s32.f32 %v330
    %v363 = vcvt.s32.f32 %v331
    %v364 = vcvt.s32.f32 %v332
    %v365 = vcvt.s32.f32 %v333
    %v366 = vcvt.s32.f32 %v334
    %v367 = vcvt.s32.f32 %v335
    %v368 = vcvt.s32.f32 %v336
    %v369 = vcvt.s32.f32 %v337
    %v370 = vcvt.s32.f32 %v338
    %v371 = vcvt.s32.f32 %v339
    %v372 = vcvt.s32.f32 %v340
    %v373 = vcvt.s32.f32 %v341
    %v374 = vcvt.s32.f32 %v342
    %v375 = vcvt.s32.f32 %v343
    %v376 = vcvt.s32.f32 %v344
    %v377 = vcvt.s32.f32 %v345
    %v378 = vcvt.s32.f32 %v346
    %v379 = vcvt.s32.f32 %v347
    %v380 = vcvt.s32.f32 %v348
    %v381 = vcvt.s32.f32 %v349
    %v382 = vcvt.s32.f32 %v350
    %v383 = vcvt.s32.f32 %v351
    %v384 = vcvt.s32.f32 %v352
    %v385 = vcvt.s32.f32 %v353
    %v386 = vcvt.s32.f32 %v354
    %v387 = vcvt.s32.f32 %v355
    %v388 = vpack.c.bf16 %v360, %v356
    %v389 = vpack.c.bf16 %v361, %v357
    %v390 = vpack.c.bf16 %v362, %v358
    %v391 = vpack.c.bf16 %v363, %v359
    %v392 = vpack.c.bf16 %v368, %v364
    %v393 = vpack.c.bf16 %v369, %v365
    %v394 = vpack.c.bf16 %v370, %v366
    %v395 = vpack.c.bf16 %v371, %v367
    %v396 = vpack.c.bf16 %v376, %v372
    %v397 = vpack.c.bf16 %v377, %v373
    %v398 = vpack.c.bf16 %v378, %v374
    %v399 = vpack.c.bf16 %v379, %v375
    %v400 = vpack.c.bf16 %v384, %v380
    %v401 = vpack.c.bf16 %v385, %v381
    %v402 = vpack.c.bf16 %v386, %v382
    %v403 = vpack.c.bf16 %v387, %v383
    %v404 = vsel %vm250, 1, 0
    %v405 = vsel %vm251, 1, 0
    %v406 = vcvt.s32.f32 %v404
    %v407 = vcvt.s32.f32 %v405
    %v408 = vadd.f32 %v406, 0.0
    %v409 = vadd.f32 %v407, 0.0
    %s410 = scalar_lea.vmem %s1, 4
    %v411 = vld [vmem:[%s410] sm:$0x7]
    %v412 = vlaneseq
    %v413 = vshrl.u32 %v412, 7
    %v414 = vsub.s32 0, %v413
    %v415 = vrot.slane %v411, %v414
    %v416 = vmul.f32 %v49, %v415
    %v417 = vlaneseq
    %v418 = vshrl.u32 %v417, 7
    %v419 = vsub.s32 1, %v418
    %v420 = vrot.slane %v411, %v419
    %v421 = vmul.f32 %v58, %v420
    %v422 = vadd.f32 %v416, %v421
    %v423 = vlaneseq
    %v424 = vshrl.u32 %v423, 7
    %v425 = vsub.s32 2, %v424
    %v426 = vrot.slane %v411, %v425
    %v427 = vmul.f32 %v68, %v426
    %v428 = vadd.f32 %v422, %v427
    %v429 = vadd.f32 %v428, %v78
    %v430 = vpack.c.bf16 %v429, %v429
    %s431 = sld [smem:[#allocation2 + $0xc]]
    %s432 = sld [smem:[#allocation2 + $0xd]]
    %s433 = sld [smem:[#allocation2 + $0xe]]
    %s434 = sld [smem:[#allocation2 + $0xf]]
    %s435 = sld [smem:[#allocation2 + $0x10]]
    %s436 = sld [smem:[#allocation2 + $0x11]]
    %s437 = sld [smem:[#allocation2 + $0x12]]
    %s438 = sld [smem:[#allocation2 + $0x13]]
    %s439 = sld [smem:[#allocation2 + $0x14]]
    %s440 = sld [smem:[#allocation2 + $0x15]]
    %s441 = sld [smem:[#allocation2 + $0x16]]
    %s442 = sld [smem:[#allocation2 + $0x17]]
    %v443 = vstv %s431
    %v444 = vmul.f32 %v443, %v33
    %v445 = vmul.f32 %v443, %v34
    %v446 = vstv %s432
    %v447 = vmul.f32 %v446, %v33
    %v448 = vmul.f32 %v446, %v34
    %v451 = vrot.slane %v447, 5
    %v452 = vrot.slane %v451, 4
    %v453 = vrot.slane %v448, 5
    %v454 = vrot.slane %v453, 4
    %v457 = vadd.f32 %v444, %v452
    %v458 = vadd.f32 %v445, %v454
    %v459 = vstv %s433
    %v460 = vmul.f32 %v459, %v33
    %v461 = vmul.f32 %v459, %v34
    %v464 = vrot.slane %v460, 6
    %v465 = vrot.slane %v464, 4
    %v466 = vrot.slane %v461, 6
    %v467 = vrot.slane %v466, 4
    %v470 = vadd.f32 %v457, %v465
    %v471 = vadd.f32 %v458, %v467
    %v472 = vstv %s434
    %v473 = vmul.f32 %v472, %v33
    %v474 = vmul.f32 %v472, %v34
    %v477 = vrot.slane %v473, 7
    %v478 = vrot.slane %v477, 4
    %v479 = vrot.slane %v474, 7
    %v480 = vrot.slane %v479, 4
    %v483 = vadd.f32 %v470, %v478
    %v484 = vadd.f32 %v471, %v480
    %v485 = vstv %s435
    %v486 = vmul.f32 %v485, %v33
    %v487 = vmul.f32 %v485, %v34
    %v488 = vstv %s436
    %v489 = vmul.f32 %v488, %v33
    %v490 = vmul.f32 %v488, %v34
    %v493 = vrot.slane %v489, 5
    %v494 = vrot.slane %v493, 4
    %v495 = vrot.slane %v490, 5
    %v496 = vrot.slane %v495, 4
    %v499 = vadd.f32 %v486, %v494
    %v500 = vadd.f32 %v487, %v496
    %v501 = vstv %s437
    %v502 = vmul.f32 %v501, %v33
    %v503 = vmul.f32 %v501, %v34
    %v506 = vrot.slane %v502, 6
    %v507 = vrot.slane %v506, 4
    %v508 = vrot.slane %v503, 6
    %v509 = vrot.slane %v508, 4
    %v512 = vadd.f32 %v499, %v507
    %v513 = vadd.f32 %v500, %v509
    %v514 = vstv %s438
    %v515 = vmul.f32 %v514, %v33
    %v516 = vmul.f32 %v514, %v34
    %v519 = vrot.slane %v515, 7
    %v520 = vrot.slane %v519, 4
    %v521 = vrot.slane %v516, 7
    %v522 = vrot.slane %v521, 4
    %v525 = vadd.f32 %v512, %v520
    %v526 = vadd.f32 %v513, %v522
    %v527 = vstv %s439
    %v528 = vmul.f32 %v527, %v33
    %v529 = vmul.f32 %v527, %v34
    %v530 = vstv %s440
    %v531 = vmul.f32 %v530, %v33
    %v532 = vmul.f32 %v530, %v34
    %v535 = vrot.slane %v531, 5
    %v536 = vrot.slane %v535, 4
    %v537 = vrot.slane %v532, 5
    %v538 = vrot.slane %v537, 4
    %v541 = vadd.f32 %v528, %v536
    %v542 = vadd.f32 %v529, %v538
    %v543 = vstv %s441
    %v544 = vmul.f32 %v543, %v33
    %v545 = vmul.f32 %v543, %v34
    %v548 = vrot.slane %v544, 6
    %v549 = vrot.slane %v548, 4
    %v550 = vrot.slane %v545, 6
    %v551 = vrot.slane %v550, 4
    %v554 = vadd.f32 %v541, %v549
    %v555 = vadd.f32 %v542, %v551
    %v556 = vstv %s442
    %v557 = vmul.f32 %v556, %v33
    %v558 = vmul.f32 %v556, %v34
    %v561 = vrot.slane %v557, 7
    %v562 = vrot.slane %v561, 4
    %v563 = vrot.slane %v558, 7
    %v564 = vrot.slane %v563, 4
    %v567 = vadd.f32 %v554, %v562
    %v568 = vadd.f32 %v555, %v564
    %vm569 = vcmp.gt.f32.partialorder %v567, 0.0
    %vm570 = vcmp.gt.f32.partialorder %v568, 0.0
    %v571 = vsel %vm569, %v567, 1.0
    %v572 = vsel %vm570, %v568, 1.0
    %v573 = vrcp.pop %v571
    %v574 = vmul.f32 1.0, %v573
    %v575 = vrcp.pop %v572
    %v576 = vmul.f32 1.0, %v575
    %v577 = vmul.f32 %v483, %v574
    %v578 = vmul.f32 %v484, %v576
    %v579 = vround.ne.pseudo %v577
    %v580 = vround.ne.pseudo %v578
    %v581 = vmul.f32 %v525, %v574
    %v582 = vmul.f32 %v526, %v576
    %v583 = vround.ne.pseudo %v581
    %v584 = vround.ne.pseudo %v582
    %vm585 = vcmp.ge.f32.partialorder %v579, 0.0
    %vm586 = vcmp.ge.f32.partialorder %v580, 0.0
    %vm587 = vcmp.ge.f32.partialorder %v583, 0.0
    %vm588 = vcmp.ge.f32.partialorder %v584, 0.0
    %vm589 = vmand %vm585, %vm587
    %vm590 = vmand %vm586, %vm588
    %vm591 = vcmp.lt.f32.partialorder %v579, 8.0
    %vm592 = vcmp.lt.f32.partialorder %v580, 8.0
    %vm593 = vmand %vm589, %vm591
    %vm594 = vmand %vm590, %vm592
    %vm595 = vcmp.lt.f32.partialorder %v583, 8.0
    %vm596 = vcmp.lt.f32.partialorder %v584, 8.0
    %vm597 = vmand %vm593, %vm595
    %vm598 = vmand %vm594, %vm596
    %vm599 = vmand %vm597, %vm569
    %vm600 = vmand %vm598, %vm570
    %v601 = vmul.f32 %v583, 8.0
    %v602 = vmul.f32 %v584, 8.0
    %v603 = vadd.f32 %v601, %v579
    %v604 = vadd.f32 %v602, %v580
    %v605 = vsel %vm599, %v603, -1.0
    %v606 = vsel %vm600, %v604, -1.0
    %v607 = vcvt.f32.s32.to.zero.pseudo %v605
    %v608 = vcvt.f32.s32.to.zero.pseudo %v606
    %v609 = vlaneseq
    %v610 = vshrl.u32 %v609, 7
    %v611 = vsub.s32 0, %v610
    %v612 = vrot.slane %v607, %v611
    %v613 = vlaneseq
    %v614 = vshrl.u32 %v613, 7
    %v615 = vsub.s32 4, %v614
    %v616 = vrot.slane %v607, %v615
    %v617 = vlaneseq
    %v618 = vshrl.u32 %v617, 7
    %v619 = vsub.s32 0, %v618
    %v620 = vrot.slane %v608, %v619
    %v621 = vlaneseq
    %v622 = vshrl.u32 %v621, 7
    %v623 = vsub.s32 4, %v622
    %v624 = vrot.slane %v608, %v623
    %v625 = vlaneseq
    %v626 = vshrl.u32 %v625, 7
    %v627 = vsub.s32 0, %v626
    %v628 = vrot.slane %v612, %v627
    %v629 = vlaneseq
    %v630 = vshrl.u32 %v629, 7
    %v631 = vsub.s32 0, %v630
    %v632 = vrot.slane %v616, %v631
    %v633 = vlaneseq
    %v634 = vshrl.u32 %v633, 7
    %v635 = vsub.s32 0, %v634
    %v636 = vrot.slane %v620, %v635
    %v637 = vlaneseq
    %v638 = vshrl.u32 %v637, 7
    %v639 = vsub.s32 0, %v638
    %v640 = vrot.slane %v624, %v639
    %vm641 = vcmp.eq.s32.totalorder %v36, %v628
    %vm642 = vcmp.eq.s32.totalorder %v36, %v632
    %vm643 = vcmp.eq.s32.totalorder %v36, %v636
    %vm644 = vcmp.eq.s32.totalorder %v36, %v640
    %vm645 = vcmp.eq.s32.totalorder %v37, %v628
    %vm646 = vcmp.eq.s32.totalorder %v37, %v632
    %vm647 = vcmp.eq.s32.totalorder %v37, %v636
    %vm648 = vcmp.eq.s32.totalorder %v37, %v640
    %vm649 = vcmp.eq.s32.totalorder %v38, %v628
    %vm650 = vcmp.eq.s32.totalorder %v38, %v632
    %vm651 = vcmp.eq.s32.totalorder %v38, %v636
    %vm652 = vcmp.eq.s32.totalorder %v38, %v640
    %vm653 = vcmp.eq.s32.totalorder %v39, %v628
    %vm654 = vcmp.eq.s32.totalorder %v39, %v632
    %vm655 = vcmp.eq.s32.totalorder %v39, %v636
    %vm656 = vcmp.eq.s32.totalorder %v39, %v640
    %vm657 = vcmp.eq.s32.totalorder %v40, %v628
    %vm658 = vcmp.eq.s32.totalorder %v40, %v632
    %vm659 = vcmp.eq.s32.totalorder %v40, %v636
    %vm660 = vcmp.eq.s32.totalorder %v40, %v640
    %vm661 = vcmp.eq.s32.totalorder %v41, %v628
    %vm662 = vcmp.eq.s32.totalorder %v41, %v632
    %vm663 = vcmp.eq.s32.totalorder %v41, %v636
    %vm664 = vcmp.eq.s32.totalorder %v41, %v640
    %vm665 = vcmp.eq.s32.totalorder %v42, %v628
    %vm666 = vcmp.eq.s32.totalorder %v42, %v632
    %vm667 = vcmp.eq.s32.totalorder %v42, %v636
    %vm668 = vcmp.eq.s32.totalorder %v42, %v640
    %vm669 = vcmp.eq.s32.totalorder %v43, %v628
    %vm670 = vcmp.eq.s32.totalorder %v43, %v632
    %vm671 = vcmp.eq.s32.totalorder %v43, %v636
    %vm672 = vcmp.eq.s32.totalorder %v43, %v640
    %v673 = vsel %vm641, 1, 0
    %v674 = vsel %vm642, 1, 0
    %v675 = vsel %vm643, 1, 0
    %v676 = vsel %vm644, 1, 0
    %v677 = vsel %vm645, 1, 0
    %v678 = vsel %vm646, 1, 0
    %v679 = vsel %vm647, 1, 0
    %v680 = vsel %vm648, 1, 0
    %v681 = vsel %vm649, 1, 0
    %v682 = vsel %vm650, 1, 0
    %v683 = vsel %vm651, 1, 0
    %v684 = vsel %vm652, 1, 0
    %v685 = vsel %vm653, 1, 0
    %v686 = vsel %vm654, 1, 0
    %v687 = vsel %vm655, 1, 0
    %v688 = vsel %vm656, 1, 0
    %v689 = vsel %vm657, 1, 0
    %v690 = vsel %vm658, 1, 0
    %v691 = vsel %vm659, 1, 0
    %v692 = vsel %vm660, 1, 0
    %v693 = vsel %vm661, 1, 0
    %v694 = vsel %vm662, 1, 0
    %v695 = vsel %vm663, 1, 0
    %v696 = vsel %vm664, 1, 0
    %v697 = vsel %vm665, 1, 0
    %v698 = vsel %vm666, 1, 0
    %v699 = vsel %vm667, 1, 0
    %v700 = vsel %vm668, 1, 0
    %v701 = vsel %vm669, 1, 0
    %v702 = vsel %vm670, 1, 0
    %v703 = vsel %vm671, 1, 0
    %v704 = vsel %vm672, 1, 0
    %v705 = vcvt.s32.f32 %v673
    %v706 = vcvt.s32.f32 %v674
    %v707 = vcvt.s32.f32 %v675
    %v708 = vcvt.s32.f32 %v676
    %v709 = vcvt.s32.f32 %v677
    %v710 = vcvt.s32.f32 %v678
    %v711 = vcvt.s32.f32 %v679
    %v712 = vcvt.s32.f32 %v680
    %v713 = vcvt.s32.f32 %v681
    %v714 = vcvt.s32.f32 %v682
    %v715 = vcvt.s32.f32 %v683
    %v716 = vcvt.s32.f32 %v684
    %v717 = vcvt.s32.f32 %v685
    %v718 = vcvt.s32.f32 %v686
    %v719 = vcvt.s32.f32 %v687
    %v720 = vcvt.s32.f32 %v688
    %v721 = vcvt.s32.f32 %v689
    %v722 = vcvt.s32.f32 %v690
    %v723 = vcvt.s32.f32 %v691
    %v724 = vcvt.s32.f32 %v692
    %v725 = vcvt.s32.f32 %v693
    %v726 = vcvt.s32.f32 %v694
    %v727 = vcvt.s32.f32 %v695
    %v728 = vcvt.s32.f32 %v696
    %v729 = vcvt.s32.f32 %v697
    %v730 = vcvt.s32.f32 %v698
    %v731 = vcvt.s32.f32 %v699
    %v732 = vcvt.s32.f32 %v700
    %v733 = vcvt.s32.f32 %v701
    %v734 = vcvt.s32.f32 %v702
    %v735 = vcvt.s32.f32 %v703
    %v736 = vcvt.s32.f32 %v704
    %v737 = vpack.c.bf16 %v709, %v705
    %v738 = vpack.c.bf16 %v710, %v706
    %v739 = vpack.c.bf16 %v711, %v707
    %v740 = vpack.c.bf16 %v712, %v708
    %v741 = vpack.c.bf16 %v717, %v713
    %v742 = vpack.c.bf16 %v718, %v714
    %v743 = vpack.c.bf16 %v719, %v715
    %v744 = vpack.c.bf16 %v720, %v716
    %v745 = vpack.c.bf16 %v725, %v721
    %v746 = vpack.c.bf16 %v726, %v722
    %v747 = vpack.c.bf16 %v727, %v723
    %v748 = vpack.c.bf16 %v728, %v724
    %v749 = vpack.c.bf16 %v733, %v729
    %v750 = vpack.c.bf16 %v734, %v730
    %v751 = vpack.c.bf16 %v735, %v731
    %v752 = vpack.c.bf16 %v736, %v732
    %vm753 = vcmask 523264
    %v755 = vsel %vm753, %v430, 0
    %757 = vmatprep.subr.bf16.mxu0 %v738
    %758 = vmatpush1.bf16.msra.mxu0 %v737
    %759 = vmatprep.subr.bf16.mxu0 %v742
    %760 = vmatpush1.bf16.msra.mxu0 %v741
    %761 = vmatprep.subr.bf16.mxu0 %v746
    %762 = vmatpush1.bf16.msra.mxu0 %v745
    %763 = vmatprep.subr.bf16.mxu0 %v750
    %764 = vmatpush1.bf16.msra.mxu0 %v749
    %765 = vmatprep.subr.bf16.mxu0 0
    %766 = vmatpush1.bf16.msra.mxu0 0
    %767 = vmatprep.subr.bf16.mxu0 0
    %768 = vmatpush1.bf16.msra.mxu0 0
    %769 = vmatprep.subr.bf16.mxu0 0
    %770 = vmatpush1.bf16.msra.mxu0 0
    %771 = vmatprep.subr.bf16.mxu0 0
    %772 = vmatpush1.bf16.msra.mxu0 0
    %773 = vmatprep.subr.bf16.mxu0 0
    %774 = vmatpush1.bf16.msra.mxu0 0
    %775 = vmatprep.subr.bf16.mxu0 0
    %776 = vmatpush1.bf16.msra.mxu0 0
    %777 = vmatprep.subr.bf16.mxu0 0
    %778 = vmatpush1.bf16.msra.mxu0 0
    %779 = vmatprep.subr.bf16.mxu0 0
    %780 = vmatpush1.bf16.msra.mxu0 0
    %781 = vmatprep.subr.bf16.mxu0 0
    %782 = vmatpush1.bf16.msra.mxu0 0
    %783 = vmatprep.subr.bf16.mxu0 0
    %784 = vmatpush1.bf16.msra.mxu0 0
    %785 = vmatprep.subr.bf16.mxu0 0
    %786 = vmatpush1.bf16.msra.mxu0 0
    %787 = vmatprep.subr.bf16.mxu0 0
    %788 = vmatpush1.bf16.msra.mxu0 0
    %789 = vmatprep.mubr.bf16.mxu0 0
    %790 = vmatmul.mubr.bf16.gmra.mrb[0].mxu0 %v755
    %v791 = vpop.f32.mrb[0].mxu0
    %v792 = vadd.f32 0.0, %v791
    %v793 = vpop.f32.mrb[0].mxu0
    %v794 = vadd.f32 0.0, %v793
    %v795 = vpop.f32.mrb[0].mxu0
    %v796 = vpop.f32.mrb[0].mxu0
    %797 = vdwg.mxu0
    %798 = vmatprep.subr.bf16.mxu0 %v740
    %799 = vmatpush1.bf16.msra.mxu0 %v739
    %800 = vmatprep.subr.bf16.mxu0 %v744
    %801 = vmatpush1.bf16.msra.mxu0 %v743
    %802 = vmatprep.subr.bf16.mxu0 %v748
    %803 = vmatpush1.bf16.msra.mxu0 %v747
    %804 = vmatprep.subr.bf16.mxu0 %v752
    %805 = vmatpush1.bf16.msra.mxu0 %v751
    %806 = vmatprep.subr.bf16.mxu0 0
    %807 = vmatpush1.bf16.msra.mxu0 0
    %808 = vmatprep.subr.bf16.mxu0 0
    %809 = vmatpush1.bf16.msra.mxu0 0
    %810 = vmatprep.subr.bf16.mxu0 0
    %811 = vmatpush1.bf16.msra.mxu0 0
    %812 = vmatprep.subr.bf16.mxu0 0
    %813 = vmatpush1.bf16.msra.mxu0 0
    %814 = vmatprep.subr.bf16.mxu0 0
    %815 = vmatpush1.bf16.msra.mxu0 0
    %816 = vmatprep.subr.bf16.mxu0 0
    %817 = vmatpush1.bf16.msra.mxu0 0
    %818 = vmatprep.subr.bf16.mxu0 0
    %819 = vmatpush1.bf16.msra.mxu0 0
    %820 = vmatprep.subr.bf16.mxu0 0
    %821 = vmatpush1.bf16.msra.mxu0 0
    %822 = vmatprep.subr.bf16.mxu0 0
    %823 = vmatpush1.bf16.msra.mxu0 0
    %824 = vmatprep.subr.bf16.mxu0 0
    %825 = vmatpush1.bf16.msra.mxu0 0
    %826 = vmatprep.subr.bf16.mxu0 0
    %827 = vmatpush1.bf16.msra.mxu0 0
    %828 = vmatprep.subr.bf16.mxu0 0
    %829 = vmatpush1.bf16.msra.mxu0 0
    %830 = vmatprep.mubr.bf16.mxu0 0
    %831 = vmatmul.mubr.bf16.gmra.mrb[0].mxu0 %v755
    %v832 = vpop.f32.mrb[0].mxu0
    %v833 = vadd.f32 0.0, %v832
    %v834 = vpop.f32.mrb[0].mxu0
    %v835 = vadd.f32 0.0, %v834
    %v836 = vpop.f32.mrb[0].mxu0
    %v837 = vpop.f32.mrb[0].mxu0
    %838 = vdwg.mxu0
    %v840 = vsel %vm753, %v81, 0
    %842 = vmatprep.subr.bf16.mxu0 %v389
    %843 = vmatpush1.bf16.msra.mxu0 %v388
    %844 = vmatprep.subr.bf16.mxu0 %v393
    %845 = vmatpush1.bf16.msra.mxu0 %v392
    %846 = vmatprep.subr.bf16.mxu0 %v397
    %847 = vmatpush1.bf16.msra.mxu0 %v396
    %848 = vmatprep.subr.bf16.mxu0 %v401
    %849 = vmatpush1.bf16.msra.mxu0 %v400
    %850 = vmatprep.subr.bf16.mxu0 0
    %851 = vmatpush1.bf16.msra.mxu0 0
    %852 = vmatprep.subr.bf16.mxu0 0
    %853 = vmatpush1.bf16.msra.mxu0 0
    %854 = vmatprep.subr.bf16.mxu0 0
    %855 = vmatpush1.bf16.msra.mxu0 0
    %856 = vmatprep.subr.bf16.mxu0 0
    %857 = vmatpush1.bf16.msra.mxu0 0
    %858 = vmatprep.subr.bf16.mxu0 0
    %859 = vmatpush1.bf16.msra.mxu0 0
    %860 = vmatprep.subr.bf16.mxu0 0
    %861 = vmatpush1.bf16.msra.mxu0 0
    %862 = vmatprep.subr.bf16.mxu0 0
    %863 = vmatpush1.bf16.msra.mxu0 0
    %864 = vmatprep.subr.bf16.mxu0 0
    %865 = vmatpush1.bf16.msra.mxu0 0
    %866 = vmatprep.subr.bf16.mxu0 0
    %867 = vmatpush1.bf16.msra.mxu0 0
    %868 = vmatprep.subr.bf16.mxu0 0
    %869 = vmatpush1.bf16.msra.mxu0 0
    %870 = vmatprep.subr.bf16.mxu0 0
    %871 = vmatpush1.bf16.msra.mxu0 0
    %872 = vmatprep.subr.bf16.mxu0 0
    %873 = vmatpush1.bf16.msra.mxu0 0
    %874 = vmatprep.mubr.bf16.mxu0 0
    %875 = vmatmul.mubr.bf16.gmra.mrb[0].mxu0 %v840
    %v876 = vpop.f32.mrb[0].mxu0
    %v877 = vadd.f32 %v792, %v876
    %v878 = vpop.f32.mrb[0].mxu0
    %v879 = vadd.f32 %v794, %v878
    %v880 = vpop.f32.mrb[0].mxu0
    %v881 = vpop.f32.mrb[0].mxu0
    %882 = vdwg.mxu0
    %883 = vmatprep.subr.bf16.mxu0 %v391
    %884 = vmatpush1.bf16.msra.mxu0 %v390
    %885 = vmatprep.subr.bf16.mxu0 %v395
    %886 = vmatpush1.bf16.msra.mxu0 %v394
    %887 = vmatprep.subr.bf16.mxu0 %v399
    %888 = vmatpush1.bf16.msra.mxu0 %v398
    %889 = vmatprep.subr.bf16.mxu0 %v403
    %890 = vmatpush1.bf16.msra.mxu0 %v402
    %891 = vmatprep.subr.bf16.mxu0 0
    %892 = vmatpush1.bf16.msra.mxu0 0
    %893 = vmatprep.subr.bf16.mxu0 0
    %894 = vmatpush1.bf16.msra.mxu0 0
    %895 = vmatprep.subr.bf16.mxu0 0
    %896 = vmatpush1.bf16.msra.mxu0 0
    %897 = vmatprep.subr.bf16.mxu0 0
    %898 = vmatpush1.bf16.msra.mxu0 0
    %899 = vmatprep.subr.bf16.mxu0 0
    %900 = vmatpush1.bf16.msra.mxu0 0
    %901 = vmatprep.subr.bf16.mxu0 0
    %902 = vmatpush1.bf16.msra.mxu0 0
    %903 = vmatprep.subr.bf16.mxu0 0
    %904 = vmatpush1.bf16.msra.mxu0 0
    %905 = vmatprep.subr.bf16.mxu0 0
    %906 = vmatpush1.bf16.msra.mxu0 0
    %907 = vmatprep.subr.bf16.mxu0 0
    %908 = vmatpush1.bf16.msra.mxu0 0
    %909 = vmatprep.subr.bf16.mxu0 0
    %910 = vmatpush1.bf16.msra.mxu0 0
    %911 = vmatprep.subr.bf16.mxu0 0
    %912 = vmatpush1.bf16.msra.mxu0 0
    %913 = vmatprep.subr.bf16.mxu0 0
    %914 = vmatpush1.bf16.msra.mxu0 0
    %915 = vmatprep.mubr.bf16.mxu0 0
    %916 = vmatmul.mubr.bf16.gmra.mrb[0].mxu0 %v840
    %v917 = vpop.f32.mrb[0].mxu0
    %v918 = vadd.f32 %v833, %v917
    %v919 = vpop.f32.mrb[0].mxu0
    %v920 = vadd.f32 %v835, %v919
    %v921 = vpop.f32.mrb[0].mxu0
    %v922 = vpop.f32.mrb[0].mxu0
    %923 = vdwg.mxu0
    %v924 = vsel %vm599, 1, 0
    %v925 = vsel %vm600, 1, 0
    %v926 = vcvt.s32.f32 %v924
    %v927 = vcvt.s32.f32 %v925
    %v928 = vadd.f32 %v408, %v926
    %v929 = vadd.f32 %v409, %v927
    %s930 = scalar_lea.vmem %s1, 8
    %v931 = vld [vmem:[%s930] sm:$0x7]
    %v932 = vlaneseq
    %v933 = vshrl.u32 %v932, 7
    %v934 = vsub.s32 0, %v933
    %v935 = vrot.slane %v931, %v934
    %v936 = vmul.f32 %v49, %v935
    %v937 = vlaneseq
    %v938 = vshrl.u32 %v937, 7
    %v939 = vsub.s32 1, %v938
    %v940 = vrot.slane %v931, %v939
    %v941 = vmul.f32 %v58, %v940
    %v942 = vadd.f32 %v936, %v941
    %v943 = vlaneseq
    %v944 = vshrl.u32 %v943, 7
    %v945 = vsub.s32 2, %v944
    %v946 = vrot.slane %v931, %v945
    %v947 = vmul.f32 %v68, %v946
    %v948 = vadd.f32 %v942, %v947
    %v949 = vadd.f32 %v948, %v78
    %v950 = vpack.c.bf16 %v949, %v949
    %s951 = sld [smem:[#allocation2 + $0x18]]
    %s952 = sld [smem:[#allocation2 + $0x19]]
    %s953 = sld [smem:[#allocation2 + $0x1a]]
    %s954 = sld [smem:[#allocation2 + $0x1b]]
    %s955 = sld [smem:[#allocation2 + $0x1c]]
    %s956 = sld [smem:[#allocation2 + $0x1d]]
    %s957 = sld [smem:[#allocation2 + $0x1e]]
    %s958 = sld [smem:[#allocation2 + $0x1f]]
    %s959 = sld [smem:[#allocation2 + $0x20]]
    %s960 = sld [smem:[#allocation2 + $0x21]]
    %s961 = sld [smem:[#allocation2 + $0x22]]
    %s962 = sld [smem:[#allocation2 + $0x23]]
    %v963 = vstv %s951
    %v964 = vmul.f32 %v963, %v33
    %v965 = vmul.f32 %v963, %v34
    %v966 = vstv %s952
    %v967 = vmul.f32 %v966, %v33
    %v968 = vmul.f32 %v966, %v34
    %v971 = vrot.slane %v967, 5
    %v972 = vrot.slane %v971, 4
    %v973 = vrot.slane %v968, 5
    %v974 = vrot.slane %v973, 4
    %v977 = vadd.f32 %v964, %v972
    %v978 = vadd.f32 %v965, %v974
    %v979 = vstv %s953
    %v980 = vmul.f32 %v979, %v33
    %v981 = vmul.f32 %v979, %v34
    %v984 = vrot.slane %v980, 6
    %v985 = vrot.slane %v984, 4
    %v986 = vrot.slane %v981, 6
    %v987 = vrot.slane %v986, 4
    %v990 = vadd.f32 %v977, %v985
    %v991 = vadd.f32 %v978, %v987
    %v992 = vstv %s954
    %v993 = vmul.f32 %v992, %v33
    %v994 = vmul.f32 %v992, %v34
    %v997 = vrot.slane %v993, 7
    %v998 = vrot.slane %v997, 4
    %v999 = vrot.slane %v994, 7
    %v1000 = vrot.slane %v999, 4
    %v1003 = vadd.f32 %v990, %v998
    %v1004 = vadd.f32 %v991, %v1000
    %v1005 = vstv %s955
    %v1006 = vmul.f32 %v1005, %v33
    %v1007 = vmul.f32 %v1005, %v34
    %v1008 = vstv %s956
    %v1009 = vmul.f32 %v1008, %v33
    %v1010 = vmul.f32 %v1008, %v34
    %v1013 = vrot.slane %v1009, 5
    %v1014 = vrot.slane %v1013, 4
    %v1015 = vrot.slane %v1010, 5
    %v1016 = vrot.slane %v1015, 4
    %v1019 = vadd.f32 %v1006, %v1014
    %v1020 = vadd.f32 %v1007, %v1016
    %v1021 = vstv %s957
    %v1022 = vmul.f32 %v1021, %v33
    %v1023 = vmul.f32 %v1021, %v34
    %v1026 = vrot.slane %v1022, 6
    %v1027 = vrot.slane %v1026, 4
    %v1028 = vrot.slane %v1023, 6
    %v1029 = vrot.slane %v1028, 4
    %v1032 = vadd.f32 %v1019, %v1027
    %v1033 = vadd.f32 %v1020, %v1029
    %v1034 = vstv %s958
    %v1035 = vmul.f32 %v1034, %v33
    %v1036 = vmul.f32 %v1034, %v34
    %v1039 = vrot.slane %v1035, 7
    %v1040 = vrot.slane %v1039, 4
    %v1041 = vrot.slane %v1036, 7
    %v1042 = vrot.slane %v1041, 4
    %v1045 = vadd.f32 %v1032, %v1040
    %v1046 = vadd.f32 %v1033, %v1042
    %v1047 = vstv %s959
    %v1048 = vmul.f32 %v1047, %v33
    %v1049 = vmul.f32 %v1047, %v34
    %v1050 = vstv %s960
    %v1051 = vmul.f32 %v1050, %v33
    %v1052 = vmul.f32 %v1050, %v34
    %v1055 = vrot.slane %v1051, 5
    %v1056 = vrot.slane %v1055, 4
    %v1057 = vrot.slane %v1052, 5
    %v1058 = vrot.slane %v1057, 4
    %v1061 = vadd.f32 %v1048, %v1056
    %v1062 = vadd.f32 %v1049, %v1058
    %v1063 = vstv %s961
    %v1064 = vmul.f32 %v1063, %v33
    %v1065 = vmul.f32 %v1063, %v34
    %v1068 = vrot.slane %v1064, 6
    %v1069 = vrot.slane %v1068, 4
    %v1070 = vrot.slane %v1065, 6
    %v1071 = vrot.slane %v1070, 4
    %v1074 = vadd.f32 %v1061, %v1069
    %v1075 = vadd.f32 %v1062, %v1071
    %v1076 = vstv %s962
    %v1077 = vmul.f32 %v1076, %v33
    %v1078 = vmul.f32 %v1076, %v34
    %v1081 = vrot.slane %v1077, 7
    %v1082 = vrot.slane %v1081, 4
    %v1083 = vrot.slane %v1078, 7
    %v1084 = vrot.slane %v1083, 4
    %v1087 = vadd.f32 %v1074, %v1082
    %v1088 = vadd.f32 %v1075, %v1084
    %vm1089 = vcmp.gt.f32.partialorder %v1087, 0.0
    %vm1090 = vcmp.gt.f32.partialorder %v1088, 0.0
    %v1091 = vsel %vm1089, %v1087, 1.0
    %v1092 = vsel %vm1090, %v1088, 1.0
    %v1093 = vrcp.pop %v1091
    %v1094 = vmul.f32 1.0, %v1093
    %v1095 = vrcp.pop %v1092
    %v1096 = vmul.f32 1.0, %v1095
    %v1097 = vmul.f32 %v1003, %v1094
    %v1098 = vmul.f32 %v1004, %v1096
    %v1099 = vround.ne.pseudo %v1097
    %v1100 = vround.ne.pseudo %v1098
    %v1101 = vmul.f32 %v1045, %v1094
    %v1102 = vmul.f32 %v1046, %v1096
    %v1103 = vround.ne.pseudo %v1101
    %v1104 = vround.ne.pseudo %v1102
    %vm1105 = vcmp.ge.f32.partialorder %v1099, 0.0
    %vm1106 = vcmp.ge.f32.partialorder %v1100, 0.0
    %vm1107 = vcmp.ge.f32.partialorder %v1103, 0.0
    %vm1108 = vcmp.ge.f32.partialorder %v1104, 0.0
    %vm1109 = vmand %vm1105, %vm1107
    %vm1110 = vmand %vm1106, %vm1108
    %vm1111 = vcmp.lt.f32.partialorder %v1099, 8.0
    %vm1112 = vcmp.lt.f32.partialorder %v1100, 8.0
    %vm1113 = vmand %vm1109, %vm1111
    %vm1114 = vmand %vm1110, %vm1112
    %vm1115 = vcmp.lt.f32.partialorder %v1103, 8.0
    %vm1116 = vcmp.lt.f32.partialorder %v1104, 8.0
    %vm1117 = vmand %vm1113, %vm1115
    %vm1118 = vmand %vm1114, %vm1116
    %vm1119 = vmand %vm1117, %vm1089
    %vm1120 = vmand %vm1118, %vm1090
    %v1121 = vmul.f32 %v1103, 8.0
    %v1122 = vmul.f32 %v1104, 8.0
    %v1123 = vadd.f32 %v1121, %v1099
    %v1124 = vadd.f32 %v1122, %v1100
    %v1125 = vsel %vm1119, %v1123, -1.0
    %v1126 = vsel %vm1120, %v1124, -1.0
    %v1127 = vcvt.f32.s32.to.zero.pseudo %v1125
    %v1128 = vcvt.f32.s32.to.zero.pseudo %v1126
    %v1129 = vlaneseq
    %v1130 = vshrl.u32 %v1129, 7
    %v1131 = vsub.s32 0, %v1130
    %v1132 = vrot.slane %v1127, %v1131
    %v1133 = vlaneseq
    %v1134 = vshrl.u32 %v1133, 7
    %v1135 = vsub.s32 4, %v1134
    %v1136 = vrot.slane %v1127, %v1135
    %v1137 = vlaneseq
    %v1138 = vshrl.u32 %v1137, 7
    %v1139 = vsub.s32 0, %v1138
    %v1140 = vrot.slane %v1128, %v1139
    %v1141 = vlaneseq
    %v1142 = vshrl.u32 %v1141, 7
    %v1143 = vsub.s32 4, %v1142
    %v1144 = vrot.slane %v1128, %v1143
    %v1145 = vlaneseq
    %v1146 = vshrl.u32 %v1145, 7
    %v1147 = vsub.s32 0, %v1146
    %v1148 = vrot.slane %v1132, %v1147
    %v1149 = vlaneseq
    %v1150 = vshrl.u32 %v1149, 7
    %v1151 = vsub.s32 0, %v1150
    %v1152 = vrot.slane %v1136, %v1151
    %v1153 = vlaneseq
    %v1154 = vshrl.u32 %v1153, 7
    %v1155 = vsub.s32 0, %v1154
    %v1156 = vrot.slane %v1140, %v1155
    %v1157 = vlaneseq
    %v1158 = vshrl.u32 %v1157, 7
    %v1159 = vsub.s32 0, %v1158
    %v1160 = vrot.slane %v1144, %v1159
    %vm1161 = vcmp.eq.s32.totalorder %v36, %v1148
    %vm1162 = vcmp.eq.s32.totalorder %v36, %v1152
    %vm1163 = vcmp.eq.s32.totalorder %v36, %v1156
    %vm1164 = vcmp.eq.s32.totalorder %v36, %v1160
    %vm1165 = vcmp.eq.s32.totalorder %v37, %v1148
    %vm1166 = vcmp.eq.s32.totalorder %v37, %v1152
    %vm1167 = vcmp.eq.s32.totalorder %v37, %v1156
    %vm1168 = vcmp.eq.s32.totalorder %v37, %v1160
    %vm1169 = vcmp.eq.s32.totalorder %v38, %v1148
    %vm1170 = vcmp.eq.s32.totalorder %v38, %v1152
    %vm1171 = vcmp.eq.s32.totalorder %v38, %v1156
    %vm1172 = vcmp.eq.s32.totalorder %v38, %v1160
    %vm1173 = vcmp.eq.s32.totalorder %v39, %v1148
    %vm1174 = vcmp.eq.s32.totalorder %v39, %v1152
    %vm1175 = vcmp.eq.s32.totalorder %v39, %v1156
    %vm1176 = vcmp.eq.s32.totalorder %v39, %v1160
    %vm1177 = vcmp.eq.s32.totalorder %v40, %v1148
    %vm1178 = vcmp.eq.s32.totalorder %v40, %v1152
    %vm1179 = vcmp.eq.s32.totalorder %v40, %v1156
    %vm1180 = vcmp.eq.s32.totalorder %v40, %v1160
    %vm1181 = vcmp.eq.s32.totalorder %v41, %v1148
    %vm1182 = vcmp.eq.s32.totalorder %v41, %v1152
    %vm1183 = vcmp.eq.s32.totalorder %v41, %v1156
    %vm1184 = vcmp.eq.s32.totalorder %v41, %v1160
    %vm1185 = vcmp.eq.s32.totalorder %v42, %v1148
    %vm1186 = vcmp.eq.s32.totalorder %v42, %v1152
    %vm1187 = vcmp.eq.s32.totalorder %v42, %v1156
    %vm1188 = vcmp.eq.s32.totalorder %v42, %v1160
    %vm1189 = vcmp.eq.s32.totalorder %v43, %v1148
    %vm1190 = vcmp.eq.s32.totalorder %v43, %v1152
    %vm1191 = vcmp.eq.s32.totalorder %v43, %v1156
    %vm1192 = vcmp.eq.s32.totalorder %v43, %v1160
    %v1193 = vsel %vm1161, 1, 0
    %v1194 = vsel %vm1162, 1, 0
    %v1195 = vsel %vm1163, 1, 0
    %v1196 = vsel %vm1164, 1, 0
    %v1197 = vsel %vm1165, 1, 0
    %v1198 = vsel %vm1166, 1, 0
    %v1199 = vsel %vm1167, 1, 0
    %v1200 = vsel %vm1168, 1, 0
    %v1201 = vsel %vm1169, 1, 0
    %v1202 = vsel %vm1170, 1, 0
    %v1203 = vsel %vm1171, 1, 0
    %v1204 = vsel %vm1172, 1, 0
    %v1205 = vsel %vm1173, 1, 0
    %v1206 = vsel %vm1174, 1, 0
    %v1207 = vsel %vm1175, 1, 0
    %v1208 = vsel %vm1176, 1, 0
    %v1209 = vsel %vm1177, 1, 0
    %v1210 = vsel %vm1178, 1, 0
    %v1211 = vsel %vm1179, 1, 0
    %v1212 = vsel %vm1180, 1, 0
    %v1213 = vsel %vm1181, 1, 0
    %v1214 = vsel %vm1182, 1, 0
    %v1215 = vsel %vm1183, 1, 0
    %v1216 = vsel %vm1184, 1, 0
    %v1217 = vsel %vm1185, 1, 0
    %v1218 = vsel %vm1186, 1, 0
    %v1219 = vsel %vm1187, 1, 0
    %v1220 = vsel %vm1188, 1, 0
    %v1221 = vsel %vm1189, 1, 0
    %v1222 = vsel %vm1190, 1, 0
    %v1223 = vsel %vm1191, 1, 0
    %v1224 = vsel %vm1192, 1, 0
    %v1225 = vcvt.s32.f32 %v1193
    %v1226 = vcvt.s32.f32 %v1194
    %v1227 = vcvt.s32.f32 %v1195
    %v1228 = vcvt.s32.f32 %v1196
    %v1229 = vcvt.s32.f32 %v1197
    %v1230 = vcvt.s32.f32 %v1198
    %v1231 = vcvt.s32.f32 %v1199
    %v1232 = vcvt.s32.f32 %v1200
    %v1233 = vcvt.s32.f32 %v1201
    %v1234 = vcvt.s32.f32 %v1202
    %v1235 = vcvt.s32.f32 %v1203
    %v1236 = vcvt.s32.f32 %v1204
    %v1237 = vcvt.s32.f32 %v1205
    %v1238 = vcvt.s32.f32 %v1206
    %v1239 = vcvt.s32.f32 %v1207
    %v1240 = vcvt.s32.f32 %v1208
    %v1241 = vcvt.s32.f32 %v1209
    %v1242 = vcvt.s32.f32 %v1210
    %v1243 = vcvt.s32.f32 %v1211
    %v1244 = vcvt.s32.f32 %v1212
    %v1245 = vcvt.s32.f32 %v1213
    %v1246 = vcvt.s32.f32 %v1214
    %v1247 = vcvt.s32.f32 %v1215
    %v1248 = vcvt.s32.f32 %v1216
    %v1249 = vcvt.s32.f32 %v1217
    %v1250 = vcvt.s32.f32 %v1218
    %v1251 = vcvt.s32.f32 %v1219
    %v1252 = vcvt.s32.f32 %v1220
    %v1253 = vcvt.s32.f32 %v1221
    %v1254 = vcvt.s32.f32 %v1222
    %v1255 = vcvt.s32.f32 %v1223
    %v1256 = vcvt.s32.f32 %v1224
    %v1257 = vpack.c.bf16 %v1229, %v1225
    %v1258 = vpack.c.bf16 %v1230, %v1226
    %v1259 = vpack.c.bf16 %v1231, %v1227
    %v1260 = vpack.c.bf16 %v1232, %v1228
    %v1261 = vpack.c.bf16 %v1237, %v1233
    %v1262 = vpack.c.bf16 %v1238, %v1234
    %v1263 = vpack.c.bf16 %v1239, %v1235
    %v1264 = vpack.c.bf16 %v1240, %v1236
    %v1265 = vpack.c.bf16 %v1245, %v1241
    %v1266 = vpack.c.bf16 %v1246, %v1242
    %v1267 = vpack.c.bf16 %v1247, %v1243
    %v1268 = vpack.c.bf16 %v1248, %v1244
    %v1269 = vpack.c.bf16 %v1253, %v1249
    %v1270 = vpack.c.bf16 %v1254, %v1250
    %v1271 = vpack.c.bf16 %v1255, %v1251
    %v1272 = vpack.c.bf16 %v1256, %v1252
    %v1274 = vsel %vm753, %v950, 0
    %1276 = vmatprep.subr.bf16.mxu0 %v1258
    %1277 = vmatpush1.bf16.msra.mxu0 %v1257
    %1278 = vmatprep.subr.bf16.mxu0 %v1262
    %1279 = vmatpush1.bf16.msra.mxu0 %v1261
    %1280 = vmatprep.subr.bf16.mxu0 %v1266
    %1281 = vmatpush1.bf16.msra.mxu0 %v1265
    %1282 = vmatprep.subr.bf16.mxu0 %v1270
    %1283 = vmatpush1.bf16.msra.mxu0 %v1269
    %1284 = vmatprep.subr.bf16.mxu0 0
    %1285 = vmatpush1.bf16.msra.mxu0 0
    %1286 = vmatprep.subr.bf16.mxu0 0
    %1287 = vmatpush1.bf16.msra.mxu0 0
    %1288 = vmatprep.subr.bf16.mxu0 0
    %1289 = vmatpush1.bf16.msra.mxu0 0
    %1290 = vmatprep.subr.bf16.mxu0 0
    %1291 = vmatpush1.bf16.msra.mxu0 0
    %1292 = vmatprep.subr.bf16.mxu0 0
    %1293 = vmatpush1.bf16.msra.mxu0 0
    %1294 = vmatprep.subr.bf16.mxu0 0
    %1295 = vmatpush1.bf16.msra.mxu0 0
    %1296 = vmatprep.subr.bf16.mxu0 0
    %1297 = vmatpush1.bf16.msra.mxu0 0
    %1298 = vmatprep.subr.bf16.mxu0 0
    %1299 = vmatpush1.bf16.msra.mxu0 0
    %1300 = vmatprep.subr.bf16.mxu0 0
    %1301 = vmatpush1.bf16.msra.mxu0 0
    %1302 = vmatprep.subr.bf16.mxu0 0
    %1303 = vmatpush1.bf16.msra.mxu0 0
    %1304 = vmatprep.subr.bf16.mxu0 0
    %1305 = vmatpush1.bf16.msra.mxu0 0
    %1306 = vmatprep.subr.bf16.mxu0 0
    %1307 = vmatpush1.bf16.msra.mxu0 0
    %1308 = vmatprep.mubr.bf16.mxu0 0
    %1309 = vmatmul.mubr.bf16.gmra.mrb[0].mxu0 %v1274
    %v1310 = vpop.f32.mrb[0].mxu0
    %v1311 = vadd.f32 0.0, %v1310
    %v1312 = vpop.f32.mrb[0].mxu0
    %v1313 = vadd.f32 0.0, %v1312
    %v1314 = vpop.f32.mrb[0].mxu0
    %v1315 = vpop.f32.mrb[0].mxu0
    %1316 = vdwg.mxu0
    %1317 = vmatprep.subr.bf16.mxu0 %v1260
    %1318 = vmatpush1.bf16.msra.mxu0 %v1259
    %1319 = vmatprep.subr.bf16.mxu0 %v1264
    %1320 = vmatpush1.bf16.msra.mxu0 %v1263
    %1321 = vmatprep.subr.bf16.mxu0 %v1268
    %1322 = vmatpush1.bf16.msra.mxu0 %v1267
    %1323 = vmatprep.subr.bf16.mxu0 %v1272
    %1324 = vmatpush1.bf16.msra.mxu0 %v1271
    %1325 = vmatprep.subr.bf16.mxu0 0
    %1326 = vmatpush1.bf16.msra.mxu0 0
    %1327 = vmatprep.subr.bf16.mxu0 0
    %1328 = vmatpush1.bf16.msra.mxu0 0
    %1329 = vmatprep.subr.bf16.mxu0 0
    %1330 = vmatpush1.bf16.msra.mxu0 0
    %1331 = vmatprep.subr.bf16.mxu0 0
    %1332 = vmatpush1.bf16.msra.mxu0 0
    %1333 = vmatprep.subr.bf16.mxu0 0
    %1334 = vmatpush1.bf16.msra.mxu0 0
    %1335 = vmatprep.subr.bf16.mxu0 0
    %1336 = vmatpush1.bf16.msra.mxu0 0
    %1337 = vmatprep.subr.bf16.mxu0 0
    %1338 = vmatpush1.bf16.msra.mxu0 0
    %1339 = vmatprep.subr.bf16.mxu0 0
    %1340 = vmatpush1.bf16.msra.mxu0 0
    %1341 = vmatprep.subr.bf16.mxu0 0
    %1342 = vmatpush1.bf16.msra.mxu0 0
    %1343 = vmatprep.subr.bf16.mxu0 0
    %1344 = vmatpush1.bf16.msra.mxu0 0
    %1345 = vmatprep.subr.bf16.mxu0 0
    %1346 = vmatpush1.bf16.msra.mxu0 0
    %1347 = vmatprep.subr.bf16.mxu0 0
    %1348 = vmatpush1.bf16.msra.mxu0 0
    %1349 = vmatprep.mubr.bf16.mxu0 0
    %1350 = vmatmul.mubr.bf16.gmra.mrb[0].mxu0 %v1274
    %v1351 = vpop.f32.mrb[0].mxu0
    %v1352 = vadd.f32 0.0, %v1351
    %v1353 = vpop.f32.mrb[0].mxu0
    %v1354 = vadd.f32 0.0, %v1353
    %v1355 = vpop.f32.mrb[0].mxu0
    %v1356 = vpop.f32.mrb[0].mxu0
    %1357 = vdwg.mxu0
    %v1358 = vadd.f32 %v877, %v1311
    %v1359 = vadd.f32 %v879, %v1313
    %v1360 = vadd.f32 %v918, %v1352
    %v1361 = vadd.f32 %v920, %v1354
    %v1362 = vsel %vm1119, 1, 0
    %v1363 = vsel %vm1120, 1, 0
    %v1364 = vcvt.s32.f32 %v1362
    %v1365 = vcvt.s32.f32 %v1363
    %v1366 = vadd.f32 %v928, %v1364
    %v1367 = vadd.f32 %v929, %v1365
    %vm1368 = vcmp.gt.f32.partialorder %v1366, 0.0
    %vm1369 = vcmp.gt.f32.partialorder %v1367, 0.0
    %v1370 = vsel %vm1368, %v1366, 1.0
    %v1371 = vsel %vm1369, %v1367, 1.0
    %v1372 = vrcp.pop %v1370
    %v1373 = vrcp.pop %v1371
    %v1374 = vsel %vm1368, %v1372, 0.0
    %v1375 = vsel %vm1369, %v1373, 0.0
    %v1378 = vlaneseq
    %v1379 = vshrl.u32 %v1378, 7
    %v1380 = vsub.s32 0, %v1379
    %v1381 = vrot.slane %v1374, %v1380
    %v1382 = vlaneseq
    %v1383 = vshrl.u32 %v1382, 7
    %v1384 = vsub.s32 4, %v1383
    %v1385 = vrot.slane %v1374, %v1384
    %v1386 = vlaneseq
    %v1387 = vshrl.u32 %v1386, 7
    %v1388 = vsub.s32 0, %v1387
    %v1389 = vrot.slane %v1375, %v1388
    %v1390 = vlaneseq
    %v1391 = vshrl.u32 %v1390, 7
    %v1392 = vsub.s32 4, %v1391
    %v1393 = vrot.slane %v1375, %v1392
    %v1398 = vlaneseq
    %v1399 = vshrl.u32 %v1398, 7
    %v1400 = vsub.s32 0, %v1399
    %v1401 = vrot.slane %v1381, %v1400
    %v1402 = vlaneseq
    %v1403 = vshrl.u32 %v1402, 7
    %v1404 = vsub.s32 0, %v1403
    %v1405 = vrot.slane %v1385, %v1404
    %v1406 = vlaneseq
    %v1407 = vshrl.u32 %v1406, 7
    %v1408 = vsub.s32 0, %v1407
    %v1409 = vrot.slane %v1389, %v1408
    %v1410 = vlaneseq
    %v1411 = vshrl.u32 %v1410, 7
    %v1412 = vsub.s32 0, %v1411
    %v1413 = vrot.slane %v1393, %v1412
    %v1414 = vmul.f32 %v1358, %v1401
    %v1415 = vmul.f32 %v1359, %v1405
    %v1416 = vmul.f32 %v1360, %v1409
    %v1417 = vmul.f32 %v1361, %v1413
    %1418 = vst [vmem:[%s4] sm:$0xff] %v1414
    %1419 = vst [vmem:[%s4 + $0x8] sm:$0xff] %v1415
    %1420 = vst [vmem:[%s4 + $0x10] sm:$0xff] %v1416
    %1421 = vst [vmem:[%s4 + $0x18] sm:$0xff] %v1417
    %v1425 = vunpack.c.l.s4 1966171168
    %v1426 = vunpack.c.0.s8 %v1425
    %v1427 = vlaneseq
    %v1428 = vshrl.u32 %v1427, 7
    %v1429 = vsub.s32 %v1426, %v1428
    %v1430 = vrot.slane %v1366, %v1429
    %v1432 = vunpack.c.l.s4 1966171168
    %v1433 = vunpack.c.0.s8 %v1432
    %v1434 = vlaneseq
    %v1435 = vshrl.u32 %v1434, 7
    %v1436 = vsub.s32 %v1433, %v1435
    %v1437 = vrot.slane %v1367, %v1436
    %v1438 = vcombine.low %v1430, %v1437
    %v1440 = vunpack.c.l.s4 1966171168
    %v1441 = vunpack.c.0.s8 %v1440
    %v1442 = vlaneseq
    %v1443 = vshrl.u32 %v1442, 7
    %v1444 = vsub.s32 %v1441, %v1443
    %v1445 = vrot.slane %v1438, %v1444
    %v1447 = vlaneseq
    %vm1448 = vcmp.ge.s32.totalorder %v1447, 0
    %vm1449 = vcmp.lt.s32.totalorder %v1447, 512
    %vm1450 = vmand %vm1448, %vm1449
    %1451 = vst.msk [vmem:[%s5] sm:$0xf] %vm1450, %v1445
    %s1452 = scalar_lea.vmem %s1, 12
    %v1453 = vld [vmem:[%s1452] sm:$0x7]
    %v1454 = vlaneseq
    %v1455 = vshrl.u32 %v1454, 7
    %v1456 = vsub.s32 0, %v1455
    %v1457 = vrot.slane %v1453, %v1456
    %v1458 = vmul.f32 %v49, %v1457
    %v1459 = vlaneseq
    %v1460 = vshrl.u32 %v1459, 7
    %v1461 = vsub.s32 1, %v1460
    %v1462 = vrot.slane %v1453, %v1461
    %v1463 = vmul.f32 %v58, %v1462
    %v1464 = vadd.f32 %v1458, %v1463
    %v1465 = vlaneseq
    %v1466 = vshrl.u32 %v1465, 7
    %v1467 = vsub.s32 2, %v1466
    %v1468 = vrot.slane %v1453, %v1467
    %v1469 = vmul.f32 %v68, %v1468
    %v1470 = vadd.f32 %v1464, %v1469
    %v1471 = vadd.f32 %v1470, %v78
    %v1472 = vpack.c.bf16 %v1471, %v1471
    %s1473 = sld [smem:[#allocation2 + $0x24]]
    %s1474 = sld [smem:[#allocation2 + $0x25]]
    %s1475 = sld [smem:[#allocation2 + $0x26]]
    %s1476 = sld [smem:[#allocation2 + $0x27]]
    %s1477 = sld [smem:[#allocation2 + $0x28]]
    %s1478 = sld [smem:[#allocation2 + $0x29]]
    %s1479 = sld [smem:[#allocation2 + $0x2a]]
    %s1480 = sld [smem:[#allocation2 + $0x2b]]
    %s1481 = sld [smem:[#allocation2 + $0x2c]]
    %s1482 = sld [smem:[#allocation2 + $0x2d]]
    %s1483 = sld [smem:[#allocation2 + $0x2e]]
    %s1484 = sld [smem:[#allocation2 + $0x2f]]
    %v1485 = vstv %s1473
    %v1486 = vmul.f32 %v1485, %v33
    %v1487 = vmul.f32 %v1485, %v34
    %v1488 = vstv %s1474
    %v1489 = vmul.f32 %v1488, %v33
    %v1490 = vmul.f32 %v1488, %v34
    %v1493 = vrot.slane %v1489, 5
    %v1494 = vrot.slane %v1493, 4
    %v1495 = vrot.slane %v1490, 5
    %v1496 = vrot.slane %v1495, 4
    %v1499 = vadd.f32 %v1486, %v1494
    %v1500 = vadd.f32 %v1487, %v1496
    %v1501 = vstv %s1475
    %v1502 = vmul.f32 %v1501, %v33
    %v1503 = vmul.f32 %v1501, %v34
    %v1506 = vrot.slane %v1502, 6
    %v1507 = vrot.slane %v1506, 4
    %v1508 = vrot.slane %v1503, 6
    %v1509 = vrot.slane %v1508, 4
    %v1512 = vadd.f32 %v1499, %v1507
    %v1513 = vadd.f32 %v1500, %v1509
    %v1514 = vstv %s1476
    %v1515 = vmul.f32 %v1514, %v33
    %v1516 = vmul.f32 %v1514, %v34
    %v1519 = vrot.slane %v1515, 7
    %v1520 = vrot.slane %v1519, 4
    %v1521 = vrot.slane %v1516, 7
    %v1522 = vrot.slane %v1521, 4
    %v1525 = vadd.f32 %v1512, %v1520
    %v1526 = vadd.f32 %v1513, %v1522
    %v1527 = vstv %s1477
    %v1528 = vmul.f32 %v1527, %v33
    %v1529 = vmul.f32 %v1527, %v34
    %v1530 = vstv %s1478
    %v1531 = vmul.f32 %v1530, %v33
    %v1532 = vmul.f32 %v1530, %v34
    %v1535 = vrot.slane %v1531, 5
    %v1536 = vrot.slane %v1535, 4
    %v1537 = vrot.slane %v1532, 5
    %v1538 = vrot.slane %v1537, 4
    %v1541 = vadd.f32 %v1528, %v1536
    %v1542 = vadd.f32 %v1529, %v1538
    %v1543 = vstv %s1479
    %v1544 = vmul.f32 %v1543, %v33
    %v1545 = vmul.f32 %v1543, %v34
    %v1548 = vrot.slane %v1544, 6
    %v1549 = vrot.slane %v1548, 4
    %v1550 = vrot.slane %v1545, 6
    %v1551 = vrot.slane %v1550, 4
    %v1554 = vadd.f32 %v1541, %v1549
    %v1555 = vadd.f32 %v1542, %v1551
    %v1556 = vstv %s1480
    %v1557 = vmul.f32 %v1556, %v33
    %v1558 = vmul.f32 %v1556, %v34
    %v1561 = vrot.slane %v1557, 7
    %v1562 = vrot.slane %v1561, 4
    %v1563 = vrot.slane %v1558, 7
    %v1564 = vrot.slane %v1563, 4
    %v1567 = vadd.f32 %v1554, %v1562
    %v1568 = vadd.f32 %v1555, %v1564
    %v1569 = vstv %s1481
    %v1570 = vmul.f32 %v1569, %v33
    %v1571 = vmul.f32 %v1569, %v34
    %v1572 = vstv %s1482
    %v1573 = vmul.f32 %v1572, %v33
    %v1574 = vmul.f32 %v1572, %v34
    %v1577 = vrot.slane %v1573, 5
    %v1578 = vrot.slane %v1577, 4
    %v1579 = vrot.slane %v1574, 5
    %v1580 = vrot.slane %v1579, 4
    %v1583 = vadd.f32 %v1570, %v1578
    %v1584 = vadd.f32 %v1571, %v1580
    %v1585 = vstv %s1483
    %v1586 = vmul.f32 %v1585, %v33
    %v1587 = vmul.f32 %v1585, %v34
    %v1590 = vrot.slane %v1586, 6
    %v1591 = vrot.slane %v1590, 4
    %v1592 = vrot.slane %v1587, 6
    %v1593 = vrot.slane %v1592, 4
    %v1596 = vadd.f32 %v1583, %v1591
    %v1597 = vadd.f32 %v1584, %v1593
    %v1598 = vstv %s1484
    %v1599 = vmul.f32 %v1598, %v33
    %v1600 = vmul.f32 %v1598, %v34
    %v1603 = vrot.slane %v1599, 7
    %v1604 = vrot.slane %v1603, 4
    %v1605 = vrot.slane %v1600, 7
    %v1606 = vrot.slane %v1605, 4
    %v1609 = vadd.f32 %v1596, %v1604
    %v1610 = vadd.f32 %v1597, %v1606
    %vm1611 = vcmp.gt.f32.partialorder %v1609, 0.0
    %vm1612 = vcmp.gt.f32.partialorder %v1610, 0.0
    %v1613 = vsel %vm1611, %v1609, 1.0
    %v1614 = vsel %vm1612, %v1610, 1.0
    %v1615 = vrcp.pop %v1613
    %v1616 = vmul.f32 1.0, %v1615
    %v1617 = vrcp.pop %v1614
    %v1618 = vmul.f32 1.0, %v1617
    %v1619 = vmul.f32 %v1525, %v1616
    %v1620 = vmul.f32 %v1526, %v1618
    %v1621 = vround.ne.pseudo %v1619
    %v1622 = vround.ne.pseudo %v1620
    %v1623 = vmul.f32 %v1567, %v1616
    %v1624 = vmul.f32 %v1568, %v1618
    %v1625 = vround.ne.pseudo %v1623
    %v1626 = vround.ne.pseudo %v1624
    %vm1627 = vcmp.ge.f32.partialorder %v1621, 0.0
    %vm1628 = vcmp.ge.f32.partialorder %v1622, 0.0
    %vm1629 = vcmp.ge.f32.partialorder %v1625, 0.0
    %vm1630 = vcmp.ge.f32.partialorder %v1626, 0.0
    %vm1631 = vmand %vm1627, %vm1629
    %vm1632 = vmand %vm1628, %vm1630
    %vm1633 = vcmp.lt.f32.partialorder %v1621, 8.0
    %vm1634 = vcmp.lt.f32.partialorder %v1622, 8.0
    %vm1635 = vmand %vm1631, %vm1633
    %vm1636 = vmand %vm1632, %vm1634
    %vm1637 = vcmp.lt.f32.partialorder %v1625, 8.0
    %vm1638 = vcmp.lt.f32.partialorder %v1626, 8.0
    %vm1639 = vmand %vm1635, %vm1637
    %vm1640 = vmand %vm1636, %vm1638
    %vm1641 = vmand %vm1639, %vm1611
    %vm1642 = vmand %vm1640, %vm1612
    %v1643 = vmul.f32 %v1625, 8.0
    %v1644 = vmul.f32 %v1626, 8.0
    %v1645 = vadd.f32 %v1643, %v1621
    %v1646 = vadd.f32 %v1644, %v1622
    %v1647 = vsel %vm1641, %v1645, -1.0
    %v1648 = vsel %vm1642, %v1646, -1.0
    %v1649 = vcvt.f32.s32.to.zero.pseudo %v1647
    %v1650 = vcvt.f32.s32.to.zero.pseudo %v1648
    %v1651 = vlaneseq
    %v1652 = vshrl.u32 %v1651, 7
    %v1653 = vsub.s32 0, %v1652
    %v1654 = vrot.slane %v1649, %v1653
    %v1655 = vlaneseq
    %v1656 = vshrl.u32 %v1655, 7
    %v1657 = vsub.s32 4, %v1656
    %v1658 = vrot.slane %v1649, %v1657
    %v1659 = vlaneseq
    %v1660 = vshrl.u32 %v1659, 7
    %v1661 = vsub.s32 0, %v1660
    %v1662 = vrot.slane %v1650, %v1661
    %v1663 = vlaneseq
    %v1664 = vshrl.u32 %v1663, 7
    %v1665 = vsub.s32 4, %v1664
    %v1666 = vrot.slane %v1650, %v1665
    %v1667 = vlaneseq
    %v1668 = vshrl.u32 %v1667, 7
    %v1669 = vsub.s32 0, %v1668
    %v1670 = vrot.slane %v1654, %v1669
    %v1671 = vlaneseq
    %v1672 = vshrl.u32 %v1671, 7
    %v1673 = vsub.s32 0, %v1672
    %v1674 = vrot.slane %v1658, %v1673
    %v1675 = vlaneseq
    %v1676 = vshrl.u32 %v1675, 7
    %v1677 = vsub.s32 0, %v1676
    %v1678 = vrot.slane %v1662, %v1677
    %v1679 = vlaneseq
    %v1680 = vshrl.u32 %v1679, 7
    %v1681 = vsub.s32 0, %v1680
    %v1682 = vrot.slane %v1666, %v1681
    %vm1683 = vcmp.eq.s32.totalorder %v36, %v1670
    %vm1684 = vcmp.eq.s32.totalorder %v36, %v1674
    %vm1685 = vcmp.eq.s32.totalorder %v36, %v1678
    %vm1686 = vcmp.eq.s32.totalorder %v36, %v1682
    %vm1687 = vcmp.eq.s32.totalorder %v37, %v1670
    %vm1688 = vcmp.eq.s32.totalorder %v37, %v1674
    %vm1689 = vcmp.eq.s32.totalorder %v37, %v1678
    %vm1690 = vcmp.eq.s32.totalorder %v37, %v1682
    %vm1691 = vcmp.eq.s32.totalorder %v38, %v1670
    %vm1692 = vcmp.eq.s32.totalorder %v38, %v1674
    %vm1693 = vcmp.eq.s32.totalorder %v38, %v1678
    %vm1694 = vcmp.eq.s32.totalorder %v38, %v1682
    %vm1695 = vcmp.eq.s32.totalorder %v39, %v1670
    %vm1696 = vcmp.eq.s32.totalorder %v39, %v1674
    %vm1697 = vcmp.eq.s32.totalorder %v39, %v1678
    %vm1698 = vcmp.eq.s32.totalorder %v39, %v1682
    %vm1699 = vcmp.eq.s32.totalorder %v40, %v1670
    %vm1700 = vcmp.eq.s32.totalorder %v40, %v1674
    %vm1701 = vcmp.eq.s32.totalorder %v40, %v1678
    %vm1702 = vcmp.eq.s32.totalorder %v40, %v1682
    %vm1703 = vcmp.eq.s32.totalorder %v41, %v1670
    %vm1704 = vcmp.eq.s32.totalorder %v41, %v1674
    %vm1705 = vcmp.eq.s32.totalorder %v41, %v1678
    %vm1706 = vcmp.eq.s32.totalorder %v41, %v1682
    %vm1707 = vcmp.eq.s32.totalorder %v42, %v1670
    %vm1708 = vcmp.eq.s32.totalorder %v42, %v1674
    %vm1709 = vcmp.eq.s32.totalorder %v42, %v1678
    %vm1710 = vcmp.eq.s32.totalorder %v42, %v1682
    %vm1711 = vcmp.eq.s32.totalorder %v43, %v1670
    %vm1712 = vcmp.eq.s32.totalorder %v43, %v1674
    %vm1713 = vcmp.eq.s32.totalorder %v43, %v1678
    %vm1714 = vcmp.eq.s32.totalorder %v43, %v1682
    %v1715 = vsel %vm1683, 1, 0
    %v1716 = vsel %vm1684, 1, 0
    %v1717 = vsel %vm1685, 1, 0
    %v1718 = vsel %vm1686, 1, 0
    %v1719 = vsel %vm1687, 1, 0
    %v1720 = vsel %vm1688, 1, 0
    %v1721 = vsel %vm1689, 1, 0
    %v1722 = vsel %vm1690, 1, 0
    %v1723 = vsel %vm1691, 1, 0
    %v1724 = vsel %vm1692, 1, 0
    %v1725 = vsel %vm1693, 1, 0
    %v1726 = vsel %vm1694, 1, 0
    %v1727 = vsel %vm1695, 1, 0
    %v1728 = vsel %vm1696, 1, 0
    %v1729 = vsel %vm1697, 1, 0
    %v1730 = vsel %vm1698, 1, 0
    %v1731 = vsel %vm1699, 1, 0
    %v1732 = vsel %vm1700, 1, 0
    %v1733 = vsel %vm1701, 1, 0
    %v1734 = vsel %vm1702, 1, 0
    %v1735 = vsel %vm1703, 1, 0
    %v1736 = vsel %vm1704, 1, 0
    %v1737 = vsel %vm1705, 1, 0
    %v1738 = vsel %vm1706, 1, 0
    %v1739 = vsel %vm1707, 1, 0
    %v1740 = vsel %vm1708, 1, 0
    %v1741 = vsel %vm1709, 1, 0
    %v1742 = vsel %vm1710, 1, 0
    %v1743 = vsel %vm1711, 1, 0
    %v1744 = vsel %vm1712, 1, 0
    %v1745 = vsel %vm1713, 1, 0
    %v1746 = vsel %vm1714, 1, 0
    %v1747 = vcvt.s32.f32 %v1715
    %v1748 = vcvt.s32.f32 %v1716
    %v1749 = vcvt.s32.f32 %v1717
    %v1750 = vcvt.s32.f32 %v1718
    %v1751 = vcvt.s32.f32 %v1719
    %v1752 = vcvt.s32.f32 %v1720
    %v1753 = vcvt.s32.f32 %v1721
    %v1754 = vcvt.s32.f32 %v1722
    %v1755 = vcvt.s32.f32 %v1723
    %v1756 = vcvt.s32.f32 %v1724
    %v1757 = vcvt.s32.f32 %v1725
    %v1758 = vcvt.s32.f32 %v1726
    %v1759 = vcvt.s32.f32 %v1727
    %v1760 = vcvt.s32.f32 %v1728
    %v1761 = vcvt.s32.f32 %v1729
    %v1762 = vcvt.s32.f32 %v1730
    %v1763 = vcvt.s32.f32 %v1731
    %v1764 = vcvt.s32.f32 %v1732
    %v1765 = vcvt.s32.f32 %v1733
    %v1766 = vcvt.s32.f32 %v1734
    %v1767 = vcvt.s32.f32 %v1735
    %v1768 = vcvt.s32.f32 %v1736
    %v1769 = vcvt.s32.f32 %v1737
    %v1770 = vcvt.s32.f32 %v1738
    %v1771 = vcvt.s32.f32 %v1739
    %v1772 = vcvt.s32.f32 %v1740
    %v1773 = vcvt.s32.f32 %v1741
    %v1774 = vcvt.s32.f32 %v1742
    %v1775 = vcvt.s32.f32 %v1743
    %v1776 = vcvt.s32.f32 %v1744
    %v1777 = vcvt.s32.f32 %v1745
    %v1778 = vcvt.s32.f32 %v1746
    %v1779 = vpack.c.bf16 %v1751, %v1747
    %v1780 = vpack.c.bf16 %v1752, %v1748
    %v1781 = vpack.c.bf16 %v1753, %v1749
    %v1782 = vpack.c.bf16 %v1754, %v1750
    %v1783 = vpack.c.bf16 %v1759, %v1755
    %v1784 = vpack.c.bf16 %v1760, %v1756
    %v1785 = vpack.c.bf16 %v1761, %v1757
    %v1786 = vpack.c.bf16 %v1762, %v1758
    %v1787 = vpack.c.bf16 %v1767, %v1763
    %v1788 = vpack.c.bf16 %v1768, %v1764
    %v1789 = vpack.c.bf16 %v1769, %v1765
    %v1790 = vpack.c.bf16 %v1770, %v1766
    %v1791 = vpack.c.bf16 %v1775, %v1771
    %v1792 = vpack.c.bf16 %v1776, %v1772
    %v1793 = vpack.c.bf16 %v1777, %v1773
    %v1794 = vpack.c.bf16 %v1778, %v1774
    %v1795 = vsel %vm1641, 1, 0
    %v1796 = vsel %vm1642, 1, 0
    %v1797 = vcvt.s32.f32 %v1795
    %v1798 = vcvt.s32.f32 %v1796
    %v1799 = vadd.f32 %v1797, 0.0
    %v1800 = vadd.f32 %v1798, 0.0
    %s1801 = scalar_lea.vmem %s1, 16
    %v1802 = vld [vmem:[%s1801] sm:$0x7]
    %v1803 = vlaneseq
    %v1804 = vshrl.u32 %v1803, 7
    %v1805 = vsub.s32 0, %v1804
    %v1806 = vrot.slane %v1802, %v1805
    %v1807 = vmul.f32 %v49, %v1806
    %v1808 = vlaneseq
    %v1809 = vshrl.u32 %v1808, 7
    %v1810 = vsub.s32 1, %v1809
    %v1811 = vrot.slane %v1802, %v1810
    %v1812 = vmul.f32 %v58, %v1811
    %v1813 = vadd.f32 %v1807, %v1812
    %v1814 = vlaneseq
    %v1815 = vshrl.u32 %v1814, 7
    %v1816 = vsub.s32 2, %v1815
    %v1817 = vrot.slane %v1802, %v1816
    %v1818 = vmul.f32 %v68, %v1817
    %v1819 = vadd.f32 %v1813, %v1818
    %v1820 = vadd.f32 %v1819, %v78
    %v1821 = vpack.c.bf16 %v1820, %v1820
    %s1822 = sld [smem:[#allocation2 + $0x30]]
    %s1823 = sld [smem:[#allocation2 + $0x31]]
    %s1824 = sld [smem:[#allocation2 + $0x32]]
    %s1825 = sld [smem:[#allocation2 + $0x33]]
    %s1826 = sld [smem:[#allocation2 + $0x34]]
    %s1827 = sld [smem:[#allocation2 + $0x35]]
    %s1828 = sld [smem:[#allocation2 + $0x36]]
    %s1829 = sld [smem:[#allocation2 + $0x37]]
    %s1830 = sld [smem:[#allocation2 + $0x38]]
    %s1831 = sld [smem:[#allocation2 + $0x39]]
    %s1832 = sld [smem:[#allocation2 + $0x3a]]
    %s1833 = sld [smem:[#allocation2 + $0x3b]]
    %v1834 = vstv %s1822
    %v1835 = vmul.f32 %v1834, %v33
    %v1836 = vmul.f32 %v1834, %v34
    %v1837 = vstv %s1823
    %v1838 = vmul.f32 %v1837, %v33
    %v1839 = vmul.f32 %v1837, %v34
    %v1842 = vrot.slane %v1838, 5
    %v1843 = vrot.slane %v1842, 4
    %v1844 = vrot.slane %v1839, 5
    %v1845 = vrot.slane %v1844, 4
    %v1848 = vadd.f32 %v1835, %v1843
    %v1849 = vadd.f32 %v1836, %v1845
    %v1850 = vstv %s1824
    %v1851 = vmul.f32 %v1850, %v33
    %v1852 = vmul.f32 %v1850, %v34
    %v1855 = vrot.slane %v1851, 6
    %v1856 = vrot.slane %v1855, 4
    %v1857 = vrot.slane %v1852, 6
    %v1858 = vrot.slane %v1857, 4
    %v1861 = vadd.f32 %v1848, %v1856
    %v1862 = vadd.f32 %v1849, %v1858
    %v1863 = vstv %s1825
    %v1864 = vmul.f32 %v1863, %v33
    %v1865 = vmul.f32 %v1863, %v34
    %v1868 = vrot.slane %v1864, 7
    %v1869 = vrot.slane %v1868, 4
    %v1870 = vrot.slane %v1865, 7
    %v1871 = vrot.slane %v1870, 4
    %v1874 = vadd.f32 %v1861, %v1869
    %v1875 = vadd.f32 %v1862, %v1871
    %v1876 = vstv %s1826
    %v1877 = vmul.f32 %v1876, %v33
    %v1878 = vmul.f32 %v1876, %v34
    %v1879 = vstv %s1827
    %v1880 = vmul.f32 %v1879, %v33
    %v1881 = vmul.f32 %v1879, %v34
    %v1884 = vrot.slane %v1880, 5
    %v1885 = vrot.slane %v1884, 4
    %v1886 = vrot.slane %v1881, 5
    %v1887 = vrot.slane %v1886, 4
    %v1890 = vadd.f32 %v1877, %v1885
    %v1891 = vadd.f32 %v1878, %v1887
    %v1892 = vstv %s1828
    %v1893 = vmul.f32 %v1892, %v33
    %v1894 = vmul.f32 %v1892, %v34
    %v1897 = vrot.slane %v1893, 6
    %v1898 = vrot.slane %v1897, 4
    %v1899 = vrot.slane %v1894, 6
    %v1900 = vrot.slane %v1899, 4
    %v1903 = vadd.f32 %v1890, %v1898
    %v1904 = vadd.f32 %v1891, %v1900
    %v1905 = vstv %s1829
    %v1906 = vmul.f32 %v1905, %v33
    %v1907 = vmul.f32 %v1905, %v34
    %v1910 = vrot.slane %v1906, 7
    %v1911 = vrot.slane %v1910, 4
    %v1912 = vrot.slane %v1907, 7
    %v1913 = vrot.slane %v1912, 4
    %v1916 = vadd.f32 %v1903, %v1911
    %v1917 = vadd.f32 %v1904, %v1913
    %v1918 = vstv %s1830
    %v1919 = vmul.f32 %v1918, %v33
    %v1920 = vmul.f32 %v1918, %v34
    %v1921 = vstv %s1831
    %v1922 = vmul.f32 %v1921, %v33
    %v1923 = vmul.f32 %v1921, %v34
    %v1926 = vrot.slane %v1922, 5
    %v1927 = vrot.slane %v1926, 4
    %v1928 = vrot.slane %v1923, 5
    %v1929 = vrot.slane %v1928, 4
    %v1932 = vadd.f32 %v1919, %v1927
    %v1933 = vadd.f32 %v1920, %v1929
    %v1934 = vstv %s1832
    %v1935 = vmul.f32 %v1934, %v33
    %v1936 = vmul.f32 %v1934, %v34
    %v1939 = vrot.slane %v1935, 6
    %v1940 = vrot.slane %v1939, 4
    %v1941 = vrot.slane %v1936, 6
    %v1942 = vrot.slane %v1941, 4
    %v1945 = vadd.f32 %v1932, %v1940
    %v1946 = vadd.f32 %v1933, %v1942
    %v1947 = vstv %s1833
    %v1948 = vmul.f32 %v1947, %v33
    %v1949 = vmul.f32 %v1947, %v34
    %v1952 = vrot.slane %v1948, 7
    %v1953 = vrot.slane %v1952, 4
    %v1954 = vrot.slane %v1949, 7
    %v1955 = vrot.slane %v1954, 4
    %v1958 = vadd.f32 %v1945, %v1953
    %v1959 = vadd.f32 %v1946, %v1955
    %vm1960 = vcmp.gt.f32.partialorder %v1958, 0.0
    %vm1961 = vcmp.gt.f32.partialorder %v1959, 0.0
    %v1962 = vsel %vm1960, %v1958, 1.0
    %v1963 = vsel %vm1961, %v1959, 1.0
    %v1964 = vrcp.pop %v1962
    %v1965 = vmul.f32 1.0, %v1964
    %v1966 = vrcp.pop %v1963
    %v1967 = vmul.f32 1.0, %v1966
    %v1968 = vmul.f32 %v1874, %v1965
    %v1969 = vmul.f32 %v1875, %v1967
    %v1970 = vround.ne.pseudo %v1968
    %v1971 = vround.ne.pseudo %v1969
    %v1972 = vmul.f32 %v1916, %v1965
    %v1973 = vmul.f32 %v1917, %v1967
    %v1974 = vround.ne.pseudo %v1972
    %v1975 = vround.ne.pseudo %v1973
    %vm1976 = vcmp.ge.f32.partialorder %v1970, 0.0
    %vm1977 = vcmp.ge.f32.partialorder %v1971, 0.0
    %vm1978 = vcmp.ge.f32.partialorder %v1974, 0.0
    %vm1979 = vcmp.ge.f32.partialorder %v1975, 0.0
    %vm1980 = vmand %vm1976, %vm1978
    %vm1981 = vmand %vm1977, %vm1979
    %vm1982 = vcmp.lt.f32.partialorder %v1970, 8.0
    %vm1983 = vcmp.lt.f32.partialorder %v1971, 8.0
    %vm1984 = vmand %vm1980, %vm1982
    %vm1985 = vmand %vm1981, %vm1983
    %vm1986 = vcmp.lt.f32.partialorder %v1974, 8.0
    %vm1987 = vcmp.lt.f32.partialorder %v1975, 8.0
    %vm1988 = vmand %vm1984, %vm1986
    %vm1989 = vmand %vm1985, %vm1987
    %vm1990 = vmand %vm1988, %vm1960
    %vm1991 = vmand %vm1989, %vm1961
    %v1992 = vmul.f32 %v1974, 8.0
    %v1993 = vmul.f32 %v1975, 8.0
    %v1994 = vadd.f32 %v1992, %v1970
    %v1995 = vadd.f32 %v1993, %v1971
    %v1996 = vsel %vm1990, %v1994, -1.0
    %v1997 = vsel %vm1991, %v1995, -1.0
    %v1998 = vcvt.f32.s32.to.zero.pseudo %v1996
    %v1999 = vcvt.f32.s32.to.zero.pseudo %v1997
    %v2000 = vlaneseq
    %v2001 = vshrl.u32 %v2000, 7
    %v2002 = vsub.s32 0, %v2001
    %v2003 = vrot.slane %v1998, %v2002
    %v2004 = vlaneseq
    %v2005 = vshrl.u32 %v2004, 7
    %v2006 = vsub.s32 4, %v2005
    %v2007 = vrot.slane %v1998, %v2006
    %v2008 = vlaneseq
    %v2009 = vshrl.u32 %v2008, 7
    %v2010 = vsub.s32 0, %v2009
    %v2011 = vrot.slane %v1999, %v2010
    %v2012 = vlaneseq
    %v2013 = vshrl.u32 %v2012, 7
    %v2014 = vsub.s32 4, %v2013
    %v2015 = vrot.slane %v1999, %v2014
    %v2016 = vlaneseq
    %v2017 = vshrl.u32 %v2016, 7
    %v2018 = vsub.s32 0, %v2017
    %v2019 = vrot.slane %v2003, %v2018
    %v2020 = vlaneseq
    %v2021 = vshrl.u32 %v2020, 7
    %v2022 = vsub.s32 0, %v2021
    %v2023 = vrot.slane %v2007, %v2022
    %v2024 = vlaneseq
    %v2025 = vshrl.u32 %v2024, 7
    %v2026 = vsub.s32 0, %v2025
    %v2027 = vrot.slane %v2011, %v2026
    %v2028 = vlaneseq
    %v2029 = vshrl.u32 %v2028, 7
    %v2030 = vsub.s32 0, %v2029
    %v2031 = vrot.slane %v2015, %v2030
    %vm2032 = vcmp.eq.s32.totalorder %v36, %v2019
    %vm2033 = vcmp.eq.s32.totalorder %v36, %v2023
    %vm2034 = vcmp.eq.s32.totalorder %v36, %v2027
    %vm2035 = vcmp.eq.s32.totalorder %v36, %v2031
    %vm2036 = vcmp.eq.s32.totalorder %v37, %v2019
    %vm2037 = vcmp.eq.s32.totalorder %v37, %v2023
    %vm2038 = vcmp.eq.s32.totalorder %v37, %v2027
    %vm2039 = vcmp.eq.s32.totalorder %v37, %v2031
    %vm2040 = vcmp.eq.s32.totalorder %v38, %v2019
    %vm2041 = vcmp.eq.s32.totalorder %v38, %v2023
    %vm2042 = vcmp.eq.s32.totalorder %v38, %v2027
    %vm2043 = vcmp.eq.s32.totalorder %v38, %v2031
    %vm2044 = vcmp.eq.s32.totalorder %v39, %v2019
    %vm2045 = vcmp.eq.s32.totalorder %v39, %v2023
    %vm2046 = vcmp.eq.s32.totalorder %v39, %v2027
    %vm2047 = vcmp.eq.s32.totalorder %v39, %v2031
    %vm2048 = vcmp.eq.s32.totalorder %v40, %v2019
    %vm2049 = vcmp.eq.s32.totalorder %v40, %v2023
    %vm2050 = vcmp.eq.s32.totalorder %v40, %v2027
    %vm2051 = vcmp.eq.s32.totalorder %v40, %v2031
    %vm2052 = vcmp.eq.s32.totalorder %v41, %v2019
    %vm2053 = vcmp.eq.s32.totalorder %v41, %v2023
    %vm2054 = vcmp.eq.s32.totalorder %v41, %v2027
    %vm2055 = vcmp.eq.s32.totalorder %v41, %v2031
    %vm2056 = vcmp.eq.s32.totalorder %v42, %v2019
    %vm2057 = vcmp.eq.s32.totalorder %v42, %v2023
    %vm2058 = vcmp.eq.s32.totalorder %v42, %v2027
    %vm2059 = vcmp.eq.s32.totalorder %v42, %v2031
    %vm2060 = vcmp.eq.s32.totalorder %v43, %v2019
    %vm2061 = vcmp.eq.s32.totalorder %v43, %v2023
    %vm2062 = vcmp.eq.s32.totalorder %v43, %v2027
    %vm2063 = vcmp.eq.s32.totalorder %v43, %v2031
    %v2064 = vsel %vm2032, 1, 0
    %v2065 = vsel %vm2033, 1, 0
    %v2066 = vsel %vm2034, 1, 0
    %v2067 = vsel %vm2035, 1, 0
    %v2068 = vsel %vm2036, 1, 0
    %v2069 = vsel %vm2037, 1, 0
    %v2070 = vsel %vm2038, 1, 0
    %v2071 = vsel %vm2039, 1, 0
    %v2072 = vsel %vm2040, 1, 0
    %v2073 = vsel %vm2041, 1, 0
    %v2074 = vsel %vm2042, 1, 0
    %v2075 = vsel %vm2043, 1, 0
    %v2076 = vsel %vm2044, 1, 0
    %v2077 = vsel %vm2045, 1, 0
    %v2078 = vsel %vm2046, 1, 0
    %v2079 = vsel %vm2047, 1, 0
    %v2080 = vsel %vm2048, 1, 0
    %v2081 = vsel %vm2049, 1, 0
    %v2082 = vsel %vm2050, 1, 0
    %v2083 = vsel %vm2051, 1, 0
    %v2084 = vsel %vm2052, 1, 0
    %v2085 = vsel %vm2053, 1, 0
    %v2086 = vsel %vm2054, 1, 0
    %v2087 = vsel %vm2055, 1, 0
    %v2088 = vsel %vm2056, 1, 0
    %v2089 = vsel %vm2057, 1, 0
    %v2090 = vsel %vm2058, 1, 0
    %v2091 = vsel %vm2059, 1, 0
    %v2092 = vsel %vm2060, 1, 0
    %v2093 = vsel %vm2061, 1, 0
    %v2094 = vsel %vm2062, 1, 0
    %v2095 = vsel %vm2063, 1, 0
    %v2096 = vcvt.s32.f32 %v2064
    %v2097 = vcvt.s32.f32 %v2065
    %v2098 = vcvt.s32.f32 %v2066
    %v2099 = vcvt.s32.f32 %v2067
    %v2100 = vcvt.s32.f32 %v2068
    %v2101 = vcvt.s32.f32 %v2069
    %v2102 = vcvt.s32.f32 %v2070
    %v2103 = vcvt.s32.f32 %v2071
    %v2104 = vcvt.s32.f32 %v2072
    %v2105 = vcvt.s32.f32 %v2073
    %v2106 = vcvt.s32.f32 %v2074
    %v2107 = vcvt.s32.f32 %v2075
    %v2108 = vcvt.s32.f32 %v2076
    %v2109 = vcvt.s32.f32 %v2077
    %v2110 = vcvt.s32.f32 %v2078
    %v2111 = vcvt.s32.f32 %v2079
    %v2112 = vcvt.s32.f32 %v2080
    %v2113 = vcvt.s32.f32 %v2081
    %v2114 = vcvt.s32.f32 %v2082
    %v2115 = vcvt.s32.f32 %v2083
    %v2116 = vcvt.s32.f32 %v2084
    %v2117 = vcvt.s32.f32 %v2085
    %v2118 = vcvt.s32.f32 %v2086
    %v2119 = vcvt.s32.f32 %v2087
    %v2120 = vcvt.s32.f32 %v2088
    %v2121 = vcvt.s32.f32 %v2089
    %v2122 = vcvt.s32.f32 %v2090
    %v2123 = vcvt.s32.f32 %v2091
    %v2124 = vcvt.s32.f32 %v2092
    %v2125 = vcvt.s32.f32 %v2093
    %v2126 = vcvt.s32.f32 %v2094
    %v2127 = vcvt.s32.f32 %v2095
    %v2128 = vpack.c.bf16 %v2100, %v2096
    %v2129 = vpack.c.bf16 %v2101, %v2097
    %v2130 = vpack.c.bf16 %v2102, %v2098
    %v2131 = vpack.c.bf16 %v2103, %v2099
    %v2132 = vpack.c.bf16 %v2108, %v2104
    %v2133 = vpack.c.bf16 %v2109, %v2105
    %v2134 = vpack.c.bf16 %v2110, %v2106
    %v2135 = vpack.c.bf16 %v2111, %v2107
    %v2136 = vpack.c.bf16 %v2116, %v2112
    %v2137 = vpack.c.bf16 %v2117, %v2113
    %v2138 = vpack.c.bf16 %v2118, %v2114
    %v2139 = vpack.c.bf16 %v2119, %v2115
    %v2140 = vpack.c.bf16 %v2124, %v2120
    %v2141 = vpack.c.bf16 %v2125, %v2121
    %v2142 = vpack.c.bf16 %v2126, %v2122
    %v2143 = vpack.c.bf16 %v2127, %v2123
    %v2145 = vsel %vm753, %v1821, 0
    %2147 = vmatprep.subr.bf16.mxu0 %v2129
    %2148 = vmatpush1.bf16.msra.mxu0 %v2128
    %2149 = vmatprep.subr.bf16.mxu0 %v2133
    %2150 = vmatpush1.bf16.msra.mxu0 %v2132
    %2151 = vmatprep.subr.bf16.mxu0 %v2137
    %2152 = vmatpush1.bf16.msra.mxu0 %v2136
    %2153 = vmatprep.subr.bf16.mxu0 %v2141
    %2154 = vmatpush1.bf16.msra.mxu0 %v2140
    %2155 = vmatprep.subr.bf16.mxu0 0
    %2156 = vmatpush1.bf16.msra.mxu0 0
    %2157 = vmatprep.subr.bf16.mxu0 0
    %2158 = vmatpush1.bf16.msra.mxu0 0
    %2159 = vmatprep.subr.bf16.mxu0 0
    %2160 = vmatpush1.bf16.msra.mxu0 0
    %2161 = vmatprep.subr.bf16.mxu0 0
    %2162 = vmatpush1.bf16.msra.mxu0 0
    %2163 = vmatprep.subr.bf16.mxu0 0
    %2164 = vmatpush1.bf16.msra.mxu0 0
    %2165 = vmatprep.subr.bf16.mxu0 0
    %2166 = vmatpush1.bf16.msra.mxu0 0
    %2167 = vmatprep.subr.bf16.mxu0 0
    %2168 = vmatpush1.bf16.msra.mxu0 0
    %2169 = vmatprep.subr.bf16.mxu0 0
    %2170 = vmatpush1.bf16.msra.mxu0 0
    %2171 = vmatprep.subr.bf16.mxu0 0
    %2172 = vmatpush1.bf16.msra.mxu0 0
    %2173 = vmatprep.subr.bf16.mxu0 0
    %2174 = vmatpush1.bf16.msra.mxu0 0
    %2175 = vmatprep.subr.bf16.mxu0 0
    %2176 = vmatpush1.bf16.msra.mxu0 0
    %2177 = vmatprep.subr.bf16.mxu0 0
    %2178 = vmatpush1.bf16.msra.mxu0 0
    %2179 = vmatprep.mubr.bf16.mxu0 0
    %2180 = vmatmul.mubr.bf16.gmra.mrb[0].mxu0 %v2145
    %v2181 = vpop.f32.mrb[0].mxu0
    %v2182 = vadd.f32 0.0, %v2181
    %v2183 = vpop.f32.mrb[0].mxu0
    %v2184 = vadd.f32 0.0, %v2183
    %v2185 = vpop.f32.mrb[0].mxu0
    %v2186 = vpop.f32.mrb[0].mxu0
    %2187 = vdwg.mxu0
    %2188 = vmatprep.subr.bf16.mxu0 %v2131
    %2189 = vmatpush1.bf16.msra.mxu0 %v2130
    %2190 = vmatprep.subr.bf16.mxu0 %v2135
    %2191 = vmatpush1.bf16.msra.mxu0 %v2134
    %2192 = vmatprep.subr.bf16.mxu0 %v2139
    %2193 = vmatpush1.bf16.msra.mxu0 %v2138
    %2194 = vmatprep.subr.bf16.mxu0 %v2143
    %2195 = vmatpush1.bf16.msra.mxu0 %v2142
    %2196 = vmatprep.subr.bf16.mxu0 0
    %2197 = vmatpush1.bf16.msra.mxu0 0
    %2198 = vmatprep.subr.bf16.mxu0 0
    %2199 = vmatpush1.bf16.msra.mxu0 0
    %2200 = vmatprep.subr.bf16.mxu0 0
    %2201 = vmatpush1.bf16.msra.mxu0 0
    %2202 = vmatprep.subr.bf16.mxu0 0
    %2203 = vmatpush1.bf16.msra.mxu0 0
    %2204 = vmatprep.subr.bf16.mxu0 0
    %2205 = vmatpush1.bf16.msra.mxu0 0
    %2206 = vmatprep.subr.bf16.mxu0 0
    %2207 = vmatpush1.bf16.msra.mxu0 0
    %2208 = vmatprep.subr.bf16.mxu0 0
    %2209 = vmatpush1.bf16.msra.mxu0 0
    %2210 = vmatprep.subr.bf16.mxu0 0
    %2211 = vmatpush1.bf16.msra.mxu0 0
    %2212 = vmatprep.subr.bf16.mxu0 0
    %2213 = vmatpush1.bf16.msra.mxu0 0
    %2214 = vmatprep.subr.bf16.mxu0 0
    %2215 = vmatpush1.bf16.msra.mxu0 0
    %2216 = vmatprep.subr.bf16.mxu0 0
    %2217 = vmatpush1.bf16.msra.mxu0 0
    %2218 = vmatprep.subr.bf16.mxu0 0
    %2219 = vmatpush1.bf16.msra.mxu0 0
    %2220 = vmatprep.mubr.bf16.mxu0 0
    %2221 = vmatmul.mubr.bf16.gmra.mrb[0].mxu0 %v2145
    %v2222 = vpop.f32.mrb[0].mxu0
    %v2223 = vadd.f32 0.0, %v2222
    %v2224 = vpop.f32.mrb[0].mxu0
    %v2225 = vadd.f32 0.0, %v2224
    %v2226 = vpop.f32.mrb[0].mxu0
    %v2227 = vpop.f32.mrb[0].mxu0
    %2228 = vdwg.mxu0
    %v2230 = vsel %vm753, %v1472, 0
    %2232 = vmatprep.subr.bf16.mxu0 %v1780
    %2233 = vmatpush1.bf16.msra.mxu0 %v1779
    %2234 = vmatprep.subr.bf16.mxu0 %v1784
    %2235 = vmatpush1.bf16.msra.mxu0 %v1783
    %2236 = vmatprep.subr.bf16.mxu0 %v1788
    %2237 = vmatpush1.bf16.msra.mxu0 %v1787
    %2238 = vmatprep.subr.bf16.mxu0 %v1792
    %2239 = vmatpush1.bf16.msra.mxu0 %v1791
    %2240 = vmatprep.subr.bf16.mxu0 0
    %2241 = vmatpush1.bf16.msra.mxu0 0
    %2242 = vmatprep.subr.bf16.mxu0 0
    %2243 = vmatpush1.bf16.msra.mxu0 0
    %2244 = vmatprep.subr.bf16.mxu0 0
    %2245 = vmatpush1.bf16.msra.mxu0 0
    %2246 = vmatprep.subr.bf16.mxu0 0
    %2247 = vmatpush1.bf16.msra.mxu0 0
    %2248 = vmatprep.subr.bf16.mxu0 0
    %2249 = vmatpush1.bf16.msra.mxu0 0
    %2250 = vmatprep.subr.bf16.mxu0 0
    %2251 = vmatpush1.bf16.msra.mxu0 0
    %2252 = vmatprep.subr.bf16.mxu0 0
    %2253 = vmatpush1.bf16.msra.mxu0 0
    %2254 = vmatprep.subr.bf16.mxu0 0
    %2255 = vmatpush1.bf16.msra.mxu0 0
    %2256 = vmatprep.subr.bf16.mxu0 0
    %2257 = vmatpush1.bf16.msra.mxu0 0
    %2258 = vmatprep.subr.bf16.mxu0 0
    %2259 = vmatpush1.bf16.msra.mxu0 0
    %2260 = vmatprep.subr.bf16.mxu0 0
    %2261 = vmatpush1.bf16.msra.mxu0 0
    %2262 = vmatprep.subr.bf16.mxu0 0
    %2263 = vmatpush1.bf16.msra.mxu0 0
    %2264 = vmatprep.mubr.bf16.mxu0 0
    %2265 = vmatmul.mubr.bf16.gmra.mrb[0].mxu0 %v2230
    %v2266 = vpop.f32.mrb[0].mxu0
    %v2267 = vadd.f32 %v2182, %v2266
    %v2268 = vpop.f32.mrb[0].mxu0
    %v2269 = vadd.f32 %v2184, %v2268
    %v2270 = vpop.f32.mrb[0].mxu0
    %v2271 = vpop.f32.mrb[0].mxu0
    %2272 = vdwg.mxu0
    %2273 = vmatprep.subr.bf16.mxu0 %v1782
    %2274 = vmatpush1.bf16.msra.mxu0 %v1781
    %2275 = vmatprep.subr.bf16.mxu0 %v1786
    %2276 = vmatpush1.bf16.msra.mxu0 %v1785
    %2277 = vmatprep.subr.bf16.mxu0 %v1790
    %2278 = vmatpush1.bf16.msra.mxu0 %v1789
    %2279 = vmatprep.subr.bf16.mxu0 %v1794
    %2280 = vmatpush1.bf16.msra.mxu0 %v1793
    %2281 = vmatprep.subr.bf16.mxu0 0
    %2282 = vmatpush1.bf16.msra.mxu0 0
    %2283 = vmatprep.subr.bf16.mxu0 0
    %2284 = vmatpush1.bf16.msra.mxu0 0
    %2285 = vmatprep.subr.bf16.mxu0 0
    %2286 = vmatpush1.bf16.msra.mxu0 0
    %2287 = vmatprep.subr.bf16.mxu0 0
    %2288 = vmatpush1.bf16.msra.mxu0 0
    %2289 = vmatprep.subr.bf16.mxu0 0
    %2290 = vmatpush1.bf16.msra.mxu0 0
    %2291 = vmatprep.subr.bf16.mxu0 0
    %2292 = vmatpush1.bf16.msra.mxu0 0
    %2293 = vmatprep.subr.bf16.mxu0 0
    %2294 = vmatpush1.bf16.msra.mxu0 0
    %2295 = vmatprep.subr.bf16.mxu0 0
    %2296 = vmatpush1.bf16.msra.mxu0 0
    %2297 = vmatprep.subr.bf16.mxu0 0
    %2298 = vmatpush1.bf16.msra.mxu0 0
    %2299 = vmatprep.subr.bf16.mxu0 0
    %2300 = vmatpush1.bf16.msra.mxu0 0
    %2301 = vmatprep.subr.bf16.mxu0 0
    %2302 = vmatpush1.bf16.msra.mxu0 0
    %2303 = vmatprep.subr.bf16.mxu0 0
    %2304 = vmatpush1.bf16.msra.mxu0 0
    %2305 = vmatprep.mubr.bf16.mxu0 0
    %2306 = vmatmul.mubr.bf16.gmra.mrb[0].mxu0 %v2230
    %v2307 = vpop.f32.mrb[0].mxu0
    %v2308 = vadd.f32 %v2223, %v2307
    %v2309 = vpop.f32.mrb[0].mxu0
    %v2310 = vadd.f32 %v2225, %v2309
    %v2311 = vpop.f32.mrb[0].mxu0
    %v2312 = vpop.f32.mrb[0].mxu0
    %2313 = vdwg.mxu0
    %v2314 = vsel %vm1990, 1, 0
    %v2315 = vsel %vm1991, 1, 0
    %v2316 = vcvt.s32.f32 %v2314
    %v2317 = vcvt.s32.f32 %v2315
    %v2318 = vadd.f32 %v1799, %v2316
    %v2319 = vadd.f32 %v1800, %v2317
    %s2320 = scalar_lea.vmem %s1, 20
    %v2321 = vld [vmem:[%s2320] sm:$0x7]
    %v2322 = vlaneseq
    %v2323 = vshrl.u32 %v2322, 7
    %v2324 = vsub.s32 0, %v2323
    %v2325 = vrot.slane %v2321, %v2324
    %v2326 = vmul.f32 %v49, %v2325
    %v2327 = vlaneseq
    %v2328 = vshrl.u32 %v2327, 7
    %v2329 = vsub.s32 1, %v2328
    %v2330 = vrot.slane %v2321, %v2329
    %v2331 = vmul.f32 %v58, %v2330
    %v2332 = vadd.f32 %v2326, %v2331
    %v2333 = vlaneseq
    %v2334 = vshrl.u32 %v2333, 7
    %v2335 = vsub.s32 2, %v2334
    %v2336 = vrot.slane %v2321, %v2335
    %v2337 = vmul.f32 %v68, %v2336
    %v2338 = vadd.f32 %v2332, %v2337
    %v2339 = vadd.f32 %v2338, %v78
    %v2340 = vpack.c.bf16 %v2339, %v2339
    %s2341 = sld [smem:[#allocation2 + $0x3c]]
    %s2342 = sld [smem:[#allocation2 + $0x3d]]
    %s2343 = sld [smem:[#allocation2 + $0x3e]]
    %s2344 = sld [smem:[#allocation2 + $0x3f]]
    %s2345 = sld [smem:[#allocation2 + $0x40]]
    %s2346 = sld [smem:[#allocation2 + $0x41]]
    %s2347 = sld [smem:[#allocation2 + $0x42]]
    %s2348 = sld [smem:[#allocation2 + $0x43]]
    %s2349 = sld [smem:[#allocation2 + $0x44]]
    %s2350 = sld [smem:[#allocation2 + $0x45]]
    %s2351 = sld [smem:[#allocation2 + $0x46]]
    %s2352 = sld [smem:[#allocation2 + $0x47]]
    %v2353 = vstv %s2341
    %v2354 = vmul.f32 %v2353, %v33
    %v2355 = vmul.f32 %v2353, %v34
    %v2356 = vstv %s2342
    %v2357 = vmul.f32 %v2356, %v33
    %v2358 = vmul.f32 %v2356, %v34
    %v2361 = vrot.slane %v2357, 5
    %v2362 = vrot.slane %v2361, 4
    %v2363 = vrot.slane %v2358, 5
    %v2364 = vrot.slane %v2363, 4
    %v2367 = vadd.f32 %v2354, %v2362
    %v2368 = vadd.f32 %v2355, %v2364
    %v2369 = vstv %s2343
    %v2370 = vmul.f32 %v2369, %v33
    %v2371 = vmul.f32 %v2369, %v34
    %v2374 = vrot.slane %v2370, 6
    %v2375 = vrot.slane %v2374, 4
    %v2376 = vrot.slane %v2371, 6
    %v2377 = vrot.slane %v2376, 4
    %v2380 = vadd.f32 %v2367, %v2375
    %v2381 = vadd.f32 %v2368, %v2377
    %v2382 = vstv %s2344
    %v2383 = vmul.f32 %v2382, %v33
    %v2384 = vmul.f32 %v2382, %v34
    %v2387 = vrot.slane %v2383, 7
    %v2388 = vrot.slane %v2387, 4
    %v2389 = vrot.slane %v2384, 7
    %v2390 = vrot.slane %v2389, 4
    %v2393 = vadd.f32 %v2380, %v2388
    %v2394 = vadd.f32 %v2381, %v2390
    %v2395 = vstv %s2345
    %v2396 = vmul.f32 %v2395, %v33
    %v2397 = vmul.f32 %v2395, %v34
    %v2398 = vstv %s2346
    %v2399 = vmul.f32 %v2398, %v33
    %v2400 = vmul.f32 %v2398, %v34
    %v2403 = vrot.slane %v2399, 5
    %v2404 = vrot.slane %v2403, 4
    %v2405 = vrot.slane %v2400, 5
    %v2406 = vrot.slane %v2405, 4
    %v2409 = vadd.f32 %v2396, %v2404
    %v2410 = vadd.f32 %v2397, %v2406
    %v2411 = vstv %s2347
    %v2412 = vmul.f32 %v2411, %v33
    %v2413 = vmul.f32 %v2411, %v34
    %v2416 = vrot.slane %v2412, 6
    %v2417 = vrot.slane %v2416, 4
    %v2418 = vrot.slane %v2413, 6
    %v2419 = vrot.slane %v2418, 4
    %v2422 = vadd.f32 %v2409, %v2417
    %v2423 = vadd.f32 %v2410, %v2419
    %v2424 = vstv %s2348
    %v2425 = vmul.f32 %v2424, %v33
    %v2426 = vmul.f32 %v2424, %v34
    %v2429 = vrot.slane %v2425, 7
    %v2430 = vrot.slane %v2429, 4
    %v2431 = vrot.slane %v2426, 7
    %v2432 = vrot.slane %v2431, 4
    %v2435 = vadd.f32 %v2422, %v2430
    %v2436 = vadd.f32 %v2423, %v2432
    %v2437 = vstv %s2349
    %v2438 = vmul.f32 %v2437, %v33
    %v2439 = vmul.f32 %v2437, %v34
    %v2440 = vstv %s2350
    %v2441 = vmul.f32 %v2440, %v33
    %v2442 = vmul.f32 %v2440, %v34
    %v2445 = vrot.slane %v2441, 5
    %v2446 = vrot.slane %v2445, 4
    %v2447 = vrot.slane %v2442, 5
    %v2448 = vrot.slane %v2447, 4
    %v2451 = vadd.f32 %v2438, %v2446
    %v2452 = vadd.f32 %v2439, %v2448
    %v2453 = vstv %s2351
    %v2454 = vmul.f32 %v2453, %v33
    %v2455 = vmul.f32 %v2453, %v34
    %v2458 = vrot.slane %v2454, 6
    %v2459 = vrot.slane %v2458, 4
    %v2460 = vrot.slane %v2455, 6
    %v2461 = vrot.slane %v2460, 4
    %v2464 = vadd.f32 %v2451, %v2459
    %v2465 = vadd.f32 %v2452, %v2461
    %v2466 = vstv %s2352
    %v2467 = vmul.f32 %v2466, %v33
    %v2468 = vmul.f32 %v2466, %v34
    %v2471 = vrot.slane %v2467, 7
    %v2472 = vrot.slane %v2471, 4
    %v2473 = vrot.slane %v2468, 7
    %v2474 = vrot.slane %v2473, 4
    %v2477 = vadd.f32 %v2464, %v2472
    %v2478 = vadd.f32 %v2465, %v2474
    %vm2479 = vcmp.gt.f32.partialorder %v2477, 0.0
    %vm2480 = vcmp.gt.f32.partialorder %v2478, 0.0
    %v2481 = vsel %vm2479, %v2477, 1.0
    %v2482 = vsel %vm2480, %v2478, 1.0
    %v2483 = vrcp.pop %v2481
    %v2484 = vmul.f32 1.0, %v2483
    %v2485 = vrcp.pop %v2482
    %v2486 = vmul.f32 1.0, %v2485
    %v2487 = vmul.f32 %v2393, %v2484
    %v2488 = vmul.f32 %v2394, %v2486
    %v2489 = vround.ne.pseudo %v2487
    %v2490 = vround.ne.pseudo %v2488
    %v2491 = vmul.f32 %v2435, %v2484
    %v2492 = vmul.f32 %v2436, %v2486
    %v2493 = vround.ne.pseudo %v2491
    %v2494 = vround.ne.pseudo %v2492
    %vm2495 = vcmp.ge.f32.partialorder %v2489, 0.0
    %vm2496 = vcmp.ge.f32.partialorder %v2490, 0.0
    %vm2497 = vcmp.ge.f32.partialorder %v2493, 0.0
    %vm2498 = vcmp.ge.f32.partialorder %v2494, 0.0
    %vm2499 = vmand %vm2495, %vm2497
    %vm2500 = vmand %vm2496, %vm2498
    %vm2501 = vcmp.lt.f32.partialorder %v2489, 8.0
    %vm2502 = vcmp.lt.f32.partialorder %v2490, 8.0
    %vm2503 = vmand %vm2499, %vm2501
    %vm2504 = vmand %vm2500, %vm2502
    %vm2505 = vcmp.lt.f32.partialorder %v2493, 8.0
    %vm2506 = vcmp.lt.f32.partialorder %v2494, 8.0
    %vm2507 = vmand %vm2503, %vm2505
    %vm2508 = vmand %vm2504, %vm2506
    %vm2509 = vmand %vm2507, %vm2479
    %vm2510 = vmand %vm2508, %vm2480
    %v2511 = vmul.f32 %v2493, 8.0
    %v2512 = vmul.f32 %v2494, 8.0
    %v2513 = vadd.f32 %v2511, %v2489
    %v2514 = vadd.f32 %v2512, %v2490
    %v2515 = vsel %vm2509, %v2513, -1.0
    %v2516 = vsel %vm2510, %v2514, -1.0
    %v2517 = vcvt.f32.s32.to.zero.pseudo %v2515
    %v2518 = vcvt.f32.s32.to.zero.pseudo %v2516
    %v2519 = vlaneseq
    %v2520 = vshrl.u32 %v2519, 7
    %v2521 = vsub.s32 0, %v2520
    %v2522 = vrot.slane %v2517, %v2521
    %v2523 = vlaneseq
    %v2524 = vshrl.u32 %v2523, 7
    %v2525 = vsub.s32 4, %v2524
    %v2526 = vrot.slane %v2517, %v2525
    %v2527 = vlaneseq
    %v2528 = vshrl.u32 %v2527, 7
    %v2529 = vsub.s32 0, %v2528
    %v2530 = vrot.slane %v2518, %v2529
    %v2531 = vlaneseq
    %v2532 = vshrl.u32 %v2531, 7
    %v2533 = vsub.s32 4, %v2532
    %v2534 = vrot.slane %v2518, %v2533
    %v2535 = vlaneseq
    %v2536 = vshrl.u32 %v2535, 7
    %v2537 = vsub.s32 0, %v2536
    %v2538 = vrot.slane %v2522, %v2537
    %v2539 = vlaneseq
    %v2540 = vshrl.u32 %v2539, 7
    %v2541 = vsub.s32 0, %v2540
    %v2542 = vrot.slane %v2526, %v2541
    %v2543 = vlaneseq
    %v2544 = vshrl.u32 %v2543, 7
    %v2545 = vsub.s32 0, %v2544
    %v2546 = vrot.slane %v2530, %v2545
    %v2547 = vlaneseq
    %v2548 = vshrl.u32 %v2547, 7
    %v2549 = vsub.s32 0, %v2548
    %v2550 = vrot.slane %v2534, %v2549
    %vm2551 = vcmp.eq.s32.totalorder %v36, %v2538
    %vm2552 = vcmp.eq.s32.totalorder %v36, %v2542
    %vm2553 = vcmp.eq.s32.totalorder %v36, %v2546
    %vm2554 = vcmp.eq.s32.totalorder %v36, %v2550
    %vm2555 = vcmp.eq.s32.totalorder %v37, %v2538
    %vm2556 = vcmp.eq.s32.totalorder %v37, %v2542
    %vm2557 = vcmp.eq.s32.totalorder %v37, %v2546
    %vm2558 = vcmp.eq.s32.totalorder %v37, %v2550
    %vm2559 = vcmp.eq.s32.totalorder %v38, %v2538
    %vm2560 = vcmp.eq.s32.totalorder %v38, %v2542
    %vm2561 = vcmp.eq.s32.totalorder %v38, %v2546
    %vm2562 = vcmp.eq.s32.totalorder %v38, %v2550
    %vm2563 = vcmp.eq.s32.totalorder %v39, %v2538
    %vm2564 = vcmp.eq.s32.totalorder %v39, %v2542
    %vm2565 = vcmp.eq.s32.totalorder %v39, %v2546
    %vm2566 = vcmp.eq.s32.totalorder %v39, %v2550
    %vm2567 = vcmp.eq.s32.totalorder %v40, %v2538
    %vm2568 = vcmp.eq.s32.totalorder %v40, %v2542
    %vm2569 = vcmp.eq.s32.totalorder %v40, %v2546
    %vm2570 = vcmp.eq.s32.totalorder %v40, %v2550
    %vm2571 = vcmp.eq.s32.totalorder %v41, %v2538
    %vm2572 = vcmp.eq.s32.totalorder %v41, %v2542
    %vm2573 = vcmp.eq.s32.totalorder %v41, %v2546
    %vm2574 = vcmp.eq.s32.totalorder %v41, %v2550
    %vm2575 = vcmp.eq.s32.totalorder %v42, %v2538
    %vm2576 = vcmp.eq.s32.totalorder %v42, %v2542
    %vm2577 = vcmp.eq.s32.totalorder %v42, %v2546
    %vm2578 = vcmp.eq.s32.totalorder %v42, %v2550
    %vm2579 = vcmp.eq.s32.totalorder %v43, %v2538
    %vm2580 = vcmp.eq.s32.totalorder %v43, %v2542
    %vm2581 = vcmp.eq.s32.totalorder %v43, %v2546
    %vm2582 = vcmp.eq.s32.totalorder %v43, %v2550
    %v2583 = vsel %vm2551, 1, 0
    %v2584 = vsel %vm2552, 1, 0
    %v2585 = vsel %vm2553, 1, 0
    %v2586 = vsel %vm2554, 1, 0
    %v2587 = vsel %vm2555, 1, 0
    %v2588 = vsel %vm2556, 1, 0
    %v2589 = vsel %vm2557, 1, 0
    %v2590 = vsel %vm2558, 1, 0
    %v2591 = vsel %vm2559, 1, 0
    %v2592 = vsel %vm2560, 1, 0
    %v2593 = vsel %vm2561, 1, 0
    %v2594 = vsel %vm2562, 1, 0
    %v2595 = vsel %vm2563, 1, 0
    %v2596 = vsel %vm2564, 1, 0
    %v2597 = vsel %vm2565, 1, 0
    %v2598 = vsel %vm2566, 1, 0
    %v2599 = vsel %vm2567, 1, 0
    %v2600 = vsel %vm2568, 1, 0
    %v2601 = vsel %vm2569, 1, 0
    %v2602 = vsel %vm2570, 1, 0
    %v2603 = vsel %vm2571, 1, 0
    %v2604 = vsel %vm2572, 1, 0
    %v2605 = vsel %vm2573, 1, 0
    %v2606 = vsel %vm2574, 1, 0
    %v2607 = vsel %vm2575, 1, 0
    %v2608 = vsel %vm2576, 1, 0
    %v2609 = vsel %vm2577, 1, 0
    %v2610 = vsel %vm2578, 1, 0
    %v2611 = vsel %vm2579, 1, 0
    %v2612 = vsel %vm2580, 1, 0
    %v2613 = vsel %vm2581, 1, 0
    %v2614 = vsel %vm2582, 1, 0
    %v2615 = vcvt.s32.f32 %v2583
    %v2616 = vcvt.s32.f32 %v2584
    %v2617 = vcvt.s32.f32 %v2585
    %v2618 = vcvt.s32.f32 %v2586
    %v2619 = vcvt.s32.f32 %v2587
    %v2620 = vcvt.s32.f32 %v2588
    %v2621 = vcvt.s32.f32 %v2589
    %v2622 = vcvt.s32.f32 %v2590
    %v2623 = vcvt.s32.f32 %v2591
    %v2624 = vcvt.s32.f32 %v2592
    %v2625 = vcvt.s32.f32 %v2593
    %v2626 = vcvt.s32.f32 %v2594
    %v2627 = vcvt.s32.f32 %v2595
    %v2628 = vcvt.s32.f32 %v2596
    %v2629 = vcvt.s32.f32 %v2597
    %v2630 = vcvt.s32.f32 %v2598
    %v2631 = vcvt.s32.f32 %v2599
    %v2632 = vcvt.s32.f32 %v2600
    %v2633 = vcvt.s32.f32 %v2601
    %v2634 = vcvt.s32.f32 %v2602
    %v2635 = vcvt.s32.f32 %v2603
    %v2636 = vcvt.s32.f32 %v2604
    %v2637 = vcvt.s32.f32 %v2605
    %v2638 = vcvt.s32.f32 %v2606
    %v2639 = vcvt.s32.f32 %v2607
    %v2640 = vcvt.s32.f32 %v2608
    %v2641 = vcvt.s32.f32 %v2609
    %v2642 = vcvt.s32.f32 %v2610
    %v2643 = vcvt.s32.f32 %v2611
    %v2644 = vcvt.s32.f32 %v2612
    %v2645 = vcvt.s32.f32 %v2613
    %v2646 = vcvt.s32.f32 %v2614
    %v2647 = vpack.c.bf16 %v2619, %v2615
    %v2648 = vpack.c.bf16 %v2620, %v2616
    %v2649 = vpack.c.bf16 %v2621, %v2617
    %v2650 = vpack.c.bf16 %v2622, %v2618
    %v2651 = vpack.c.bf16 %v2627, %v2623
    %v2652 = vpack.c.bf16 %v2628, %v2624
    %v2653 = vpack.c.bf16 %v2629, %v2625
    %v2654 = vpack.c.bf16 %v2630, %v2626
    %v2655 = vpack.c.bf16 %v2635, %v2631
    %v2656 = vpack.c.bf16 %v2636, %v2632
    %v2657 = vpack.c.bf16 %v2637, %v2633
    %v2658 = vpack.c.bf16 %v2638, %v2634
    %v2659 = vpack.c.bf16 %v2643, %v2639
    %v2660 = vpack.c.bf16 %v2644, %v2640
    %v2661 = vpack.c.bf16 %v2645, %v2641
    %v2662 = vpack.c.bf16 %v2646, %v2642
    %v2664 = vsel %vm753, %v2340, 0
    %2666 = vmatprep.subr.bf16.mxu0 %v2648
    %2667 = vmatpush1.bf16.msra.mxu0 %v2647
    %2668 = vmatprep.subr.bf16.mxu0 %v2652
    %2669 = vmatpush1.bf16.msra.mxu0 %v2651
    %2670 = vmatprep.subr.bf16.mxu0 %v2656
    %2671 = vmatpush1.bf16.msra.mxu0 %v2655
    %2672 = vmatprep.subr.bf16.mxu0 %v2660
    %2673 = vmatpush1.bf16.msra.mxu0 %v2659
    %2674 = vmatprep.subr.bf16.mxu0 0
    %2675 = vmatpush1.bf16.msra.mxu0 0
    %2676 = vmatprep.subr.bf16.mxu0 0
    %2677 = vmatpush1.bf16.msra.mxu0 0
    %2678 = vmatprep.subr.bf16.mxu0 0
    %2679 = vmatpush1.bf16.msra.mxu0 0
    %2680 = vmatprep.subr.bf16.mxu0 0
    %2681 = vmatpush1.bf16.msra.mxu0 0
    %2682 = vmatprep.subr.bf16.mxu0 0
    %2683 = vmatpush1.bf16.msra.mxu0 0
    %2684 = vmatprep.subr.bf16.mxu0 0
    %2685 = vmatpush1.bf16.msra.mxu0 0
    %2686 = vmatprep.subr.bf16.mxu0 0
    %2687 = vmatpush1.bf16.msra.mxu0 0
    %2688 = vmatprep.subr.bf16.mxu0 0
    %2689 = vmatpush1.bf16.msra.mxu0 0
    %2690 = vmatprep.subr.bf16.mxu0 0
    %2691 = vmatpush1.bf16.msra.mxu0 0
    %2692 = vmatprep.subr.bf16.mxu0 0
    %2693 = vmatpush1.bf16.msra.mxu0 0
    %2694 = vmatprep.subr.bf16.mxu0 0
    %2695 = vmatpush1.bf16.msra.mxu0 0
    %2696 = vmatprep.subr.bf16.mxu0 0
    %2697 = vmatpush1.bf16.msra.mxu0 0
    %2698 = vmatprep.mubr.bf16.mxu0 0
    %2699 = vmatmul.mubr.bf16.gmra.mrb[0].mxu0 %v2664
    %v2700 = vpop.f32.mrb[0].mxu0
    %v2701 = vadd.f32 0.0, %v2700
    %v2702 = vpop.f32.mrb[0].mxu0
    %v2703 = vadd.f32 0.0, %v2702
    %v2704 = vpop.f32.mrb[0].mxu0
    %v2705 = vpop.f32.mrb[0].mxu0
    %2706 = vdwg.mxu0
    %2707 = vmatprep.subr.bf16.mxu0 %v2650
    %2708 = vmatpush1.bf16.msra.mxu0 %v2649
    %2709 = vmatprep.subr.bf16.mxu0 %v2654
    %2710 = vmatpush1.bf16.msra.mxu0 %v2653
    %2711 = vmatprep.subr.bf16.mxu0 %v2658
    %2712 = vmatpush1.bf16.msra.mxu0 %v2657
    %2713 = vmatprep.subr.bf16.mxu0 %v2662
    %2714 = vmatpush1.bf16.msra.mxu0 %v2661
    %2715 = vmatprep.subr.bf16.mxu0 0
    %2716 = vmatpush1.bf16.msra.mxu0 0
    %2717 = vmatprep.subr.bf16.mxu0 0
    %2718 = vmatpush1.bf16.msra.mxu0 0
    %2719 = vmatprep.subr.bf16.mxu0 0
    %2720 = vmatpush1.bf16.msra.mxu0 0
    %2721 = vmatprep.subr.bf16.mxu0 0
    %2722 = vmatpush1.bf16.msra.mxu0 0
    %2723 = vmatprep.subr.bf16.mxu0 0
    %2724 = vmatpush1.bf16.msra.mxu0 0
    %2725 = vmatprep.subr.bf16.mxu0 0
    %2726 = vmatpush1.bf16.msra.mxu0 0
    %2727 = vmatprep.subr.bf16.mxu0 0
    %2728 = vmatpush1.bf16.msra.mxu0 0
    %2729 = vmatprep.subr.bf16.mxu0 0
    %2730 = vmatpush1.bf16.msra.mxu0 0
    %2731 = vmatprep.subr.bf16.mxu0 0
    %2732 = vmatpush1.bf16.msra.mxu0 0
    %2733 = vmatprep.subr.bf16.mxu0 0
    %2734 = vmatpush1.bf16.msra.mxu0 0
    %2735 = vmatprep.subr.bf16.mxu0 0
    %2736 = vmatpush1.bf16.msra.mxu0 0
    %2737 = vmatprep.subr.bf16.mxu0 0
    %2738 = vmatpush1.bf16.msra.mxu0 0
    %2739 = vmatprep.mubr.bf16.mxu0 0
    %2740 = vmatmul.mubr.bf16.gmra.mrb[0].mxu0 %v2664
    %v2741 = vpop.f32.mrb[0].mxu0
    %v2742 = vadd.f32 0.0, %v2741
    %v2743 = vpop.f32.mrb[0].mxu0
    %v2744 = vadd.f32 0.0, %v2743
    %v2745 = vpop.f32.mrb[0].mxu0
    %v2746 = vpop.f32.mrb[0].mxu0
    %2747 = vdwg.mxu0
    %v2748 = vadd.f32 %v2267, %v2701
    %v2749 = vadd.f32 %v2269, %v2703
    %v2750 = vadd.f32 %v2308, %v2742
    %v2751 = vadd.f32 %v2310, %v2744
    %v2752 = vsel %vm2509, 1, 0
    %v2753 = vsel %vm2510, 1, 0
    %v2754 = vcvt.s32.f32 %v2752
    %v2755 = vcvt.s32.f32 %v2753
    %v2756 = vadd.f32 %v2318, %v2754
    %v2757 = vadd.f32 %v2319, %v2755
    %vm2758 = vcmp.gt.f32.partialorder %v2756, 0.0
    %vm2759 = vcmp.gt.f32.partialorder %v2757, 0.0
    %v2760 = vsel %vm2758, %v2756, 1.0
    %v2761 = vsel %vm2759, %v2757, 1.0
    %v2762 = vrcp.pop %v2760
    %v2763 = vrcp.pop %v2761
    %v2764 = vsel %vm2758, %v2762, 0.0
    %v2765 = vsel %vm2759, %v2763, 0.0
    %v2768 = vlaneseq
    %v2769 = vshrl.u32 %v2768, 7
    %v2770 = vsub.s32 0, %v2769
    %v2771 = vrot.slane %v2764, %v2770
    %v2772 = vlaneseq
    %v2773 = vshrl.u32 %v2772, 7
    %v2774 = vsub.s32 4, %v2773
    %v2775 = vrot.slane %v2764, %v2774
    %v2776 = vlaneseq
    %v2777 = vshrl.u32 %v2776, 7
    %v2778 = vsub.s32 0, %v2777
    %v2779 = vrot.slane %v2765, %v2778
    %v2780 = vlaneseq
    %v2781 = vshrl.u32 %v2780, 7
    %v2782 = vsub.s32 4, %v2781
    %v2783 = vrot.slane %v2765, %v2782
    %v2788 = vlaneseq
    %v2789 = vshrl.u32 %v2788, 7
    %v2790 = vsub.s32 0, %v2789
    %v2791 = vrot.slane %v2771, %v2790
    %v2792 = vlaneseq
    %v2793 = vshrl.u32 %v2792, 7
    %v2794 = vsub.s32 0, %v2793
    %v2795 = vrot.slane %v2775, %v2794
    %v2796 = vlaneseq
    %v2797 = vshrl.u32 %v2796, 7
    %v2798 = vsub.s32 0, %v2797
    %v2799 = vrot.slane %v2779, %v2798
    %v2800 = vlaneseq
    %v2801 = vshrl.u32 %v2800, 7
    %v2802 = vsub.s32 0, %v2801
    %v2803 = vrot.slane %v2783, %v2802
    %v2804 = vmul.f32 %v2748, %v2791
    %v2805 = vmul.f32 %v2749, %v2795
    %v2806 = vmul.f32 %v2750, %v2799
    %v2807 = vmul.f32 %v2751, %v2803
    %s2808 = scalar_lea.vmem %s4, 32
    %2809 = vst [vmem:[%s2808] sm:$0xff] %v2804
    %2810 = vst [vmem:[%s2808 + $0x8] sm:$0xff] %v2805
    %2811 = vst [vmem:[%s2808 + $0x10] sm:$0xff] %v2806
    %2812 = vst [vmem:[%s2808 + $0x18] sm:$0xff] %v2807
    %v2816 = vunpack.c.l.s4 1966171168
    %v2817 = vunpack.c.0.s8 %v2816
    %v2818 = vlaneseq
    %v2819 = vshrl.u32 %v2818, 7
    %v2820 = vsub.s32 %v2817, %v2819
    %v2821 = vrot.slane %v2756, %v2820
    %v2823 = vunpack.c.l.s4 1966171168
    %v2824 = vunpack.c.0.s8 %v2823
    %v2825 = vlaneseq
    %v2826 = vshrl.u32 %v2825, 7
    %v2827 = vsub.s32 %v2824, %v2826
    %v2828 = vrot.slane %v2757, %v2827
    %v2829 = vcombine.low %v2821, %v2828
    %v2831 = vunpack.c.l.s4 1966171168
    %v2832 = vunpack.c.0.s8 %v2831
    %v2833 = vlaneseq
    %v2834 = vshrl.u32 %v2833, 7
    %v2835 = vsub.s32 %v2832, %v2834
    %v2836 = vrot.slane %v2829, %v2835
    %s2838 = scalar_lea.vmem %s5, 4
    %2839 = vst.msk [vmem:[%s2838] sm:$0xf] %vm1450, %v2836
    // Predicated region
    $region22: #{_lambda_.1} parent=1 // pred_check
      _
    $region23: #{_lambda_.1} parent=1 // pred_check_branch
      %2841 = sbr.rel (0) target = $region25
    $region24: #{_lambda_.1} parent=1 // pred_region
      _
    $region25: #{_lambda_.1} parent=1 // pred_fallthru
      _
    // Predicated region
    $region26: #{_lambda_.1} parent=1 // pred_check
      _
    $region27: #{_lambda_.1} parent=1 // pred_check_branch
      %2843 = sbr.rel (0) target = $region29
    $region28: #{_lambda_.1} parent=1 // pred_region
      _
    $region29: #{_lambda_.1} parent=1 // pred_fallthru
      _
    // Predicated region
    $region30: #{_lambda_.1} parent=1 // pred_check
      _
    $region31: #{_lambda_.1} parent=1 // pred_check_branch
      %2845 = sbr.rel (0) target = $region33
    $region32: #{_lambda_.1} parent=1 // pred_region
      _
    $region33: #{_lambda_.1} parent=1 // pred_fallthru
      _
    // Predicated region
    $region34: #{_lambda_.1} parent=1 // pred_check
      _
    $region35: #{_lambda_.1} parent=1 // pred_check_branch
      %2847 = sbr.rel (0) target = $region37
    $region36: #{_lambda_.1} parent=1 // pred_region
      _
    $region37: #{_lambda_.1} parent=1 // pred_fallthru
      _
    %2848 = vsyncpa [#allocation3], 1

</llo_original>
